<compile_context>
chip_gen: v7x
topology: tpu7x:2x2x1
jax: 0.10.0
libtpu: 0.0.40
codegen_flags: <defaults>
</compile_context>

<pallas_src>
import math
import functools

import jax
import jax.numpy as jnp
from jax import lax
from jax.experimental import pallas as pl
from jax.experimental.pallas import tpu as pltpu


_NEG_BIAS = -10000.0  # exactly representable in bf16; matches the masked_fill value.


def _layernorm(v, g, b, eps=1e-12):
    # eps matches the custom LayerNorm in the reference module (not nn.LayerNorm's 1e-5).
    mu = jnp.mean(v, axis=-1, keepdims=True)
    var = jnp.mean((v - mu) ** 2, axis=-1, keepdims=True)
    return g * ((v - mu) * lax.rsqrt(var + eps)) + b


def _to_head_major(t):
    """(S, H, dh) -> (H, S, dh); prefer the lane-layout-aware einshape."""
    try:
        return pltpu.einshape("mhd->hmd", t)
    except Exception:                       # older jax without einshape
        return jnp.transpose(t, (1, 0, 2))


def _to_row_major(t):
    """(H, S, dh) -> (S, H, dh)."""
    try:
        return pltpu.einshape("hmd->mhd", t)
    except Exception:
        return jnp.transpose(t, (1, 0, 2))


def encoder_layer_kernel(x_ref, bias_ref,
                         wqkv_ref, bqkv_ref, wo_ref, bo_ref,
                         g1_ref, be1_ref, w1_ref, b1_ref,
                         w2_ref, b2_ref, g2_ref, be2_ref,
                         out_ref, ctx_ref,
                         *, n_head, seq_len, block_b, row_tile):
    f32, bf16 = jnp.float32, jnp.bfloat16
    S = seq_len
    H = n_head
    N, D = x_ref.shape              # N = block_b * S rows for this grid step
    dh = D // H

    x2d = x_ref[...]                # (N, D) f32

    # ---- fused QKV projection: one wide (N, D) x (D, 3D) MXU matmul ----------------
    # (1/sqrt(dh) is folded into the Q weights/bias on the wrapper side.)
    qkv = jnp.dot(x2d.astype(bf16), wqkv_ref[...],
                  preferred_element_type=f32) + bqkv_ref[...]

    # ---- attention core -------------------------------------------------------------
    # Queries only attend within their own batch element, so loop over the block_b
    # batch rows of this step; all heads are batched in a single 3-D einsum
    # (no per-head lane slices, no kh.T, one lane-dense full-width ctx store per batch).
    # TODO(synk): for S >~ 1k add a kv-tile axis with flash-style online softmax so the
    # (H, S, S) score tile never fully materializes (needed to fit v7x's 64 MiB VMEM).
    for b in range(block_b):
        r0 = b * S
        qh = _to_head_major(qkv[r0:r0 + S, 0:D].reshape(S, H, dh)).astype(bf16)
        kh = _to_head_major(qkv[r0:r0 + S, D:2 * D].reshape(S, H, dh)).astype(bf16)
        vh = _to_head_major(qkv[r0:r0 + S, 2 * D:3 * D].reshape(S, H, dh)).astype(bf16)

        # contraction on the last dim of both operands -> no explicit transpose.
        s = jnp.einsum("hqd,hkd->hqk", qh, kh, preferred_element_type=f32)
        # bf16 additive mask bias ((1,S) key-padding or (S,S) full); the add promotes.
        s = s + bias_ref[b][None]
        s = s - jnp.max(s, axis=-1, keepdims=True)
        # exp / scaling kept in f32 (v5e has no bf16 VPU/EUP).
        p = jnp.exp(s)
        p = p * pl.reciprocal(jnp.sum(p, axis=-1, keepdims=True), approx=True)
        ctx_h = jnp.einsum("hqk,hkd->hqd", p.astype(bf16), vh,
                           preferred_element_type=f32)           # (H, S, dh)
        # back to row-major (S, D): one full-width, lane-dense bf16 store.
        ctx_ref[r0:r0 + S, :] = _to_row_major(ctx_h).reshape(S, D).astype(bf16)

    # ---- output projection + residual + LayerNorm 1 (dropout1 = identity) -----------
    att = jnp.dot(ctx_ref[...], wo_ref[...],
                  preferred_element_type=f32) + bo_ref[...]
    y = _layernorm(x2d + att, g1_ref[...], be1_ref[...])

    # ---- FFN in row tiles so the (rows, ffn_hidden) activation stays bounded --------
    # TODO(synk): intra-MLP dropout omitted (eval mode / identity).
    for t in range(N // row_tile):
        r0 = t * row_tile
        y_t = y[r0:r0 + row_tile]
        h1 = jnp.dot(y_t.astype(bf16), w1_ref[...],
                     preferred_element_type=f32) + b1_ref[...]
        h1 = jnp.maximum(h1, 0.0)
        f = jnp.dot(h1.astype(bf16), w2_ref[...],
                    preferred_element_type=f32) + b2_ref[...]
        # residual + LayerNorm 2 (dropout2 = identity in eval mode)
        out_ref[r0:r0 + row_tile, :] = _layernorm(
            f + y_t, g2_ref[...], be2_ref[...]).astype(out_ref.dtype)


def encoder_layer(x, src_mask, params, n_head, *, block_b=None):
    B, S, D = x.shape
    assert D % n_head == 0, "d_model must be divisible by n_head"
    dh = D // n_head
    scale = 1.0 / math.sqrt(dh)
    bf16 = jnp.bfloat16
    ffn_hidden = params["w1"].shape[1]

    # Batch folding: process block_b batch elements (block_b*S MXU rows) per grid step.
    if block_b is None:
        block_b = max(1, min(B, 8, max(1, 256 // S)))
    while B % block_b:
        block_b -= 1
    n_rows = block_b * S

    # FFN row tile: largest divisor of n_rows not above 512.
    row_tile = n_rows
    if n_rows > 512:
        for cand in range(512, 0, -1):
            if n_rows % cand == 0:
                row_tile = cand
                break

    # ---- weight prep (once, outside the kernel) --------------------------------------
    #  * fuse Q|K|V into one (D, 3D) matmul, folding 1/sqrt(dh) into the Q half,
    #  * cast matmul weights to bf16 (MXU-native), keep biases / LN params f32.
    wqkv = jnp.concatenate(
        [params["wq"] * scale, params["wk"], params["wv"]], axis=1).astype(bf16)
    bqkv = jnp.concatenate(
        [params["bq"] * scale, params["bk"], params["bv"]], axis=1).astype(jnp.float32)
    weights = [
        wqkv, bqkv,
        params["wo"].astype(bf16), params["bo"],
        params["g1"], params["be1"],
        params["w1"].astype(bf16), params["b1"],
        params["w2"].astype(bf16), params["b2"],
        params["g2"], params["be2"],
    ]

    # ---- mask -> compact additive bias ------------------------------------------------
    # (B, S) / (B, 1, S) key-padding mask keeps mask DMA/VMEM at O(S) per batch; a full
    # (B, S, S) mask is also accepted and handled by the same kernel code path.
    mask = src_mask
    if mask.ndim == 2:
        mask = mask[:, None, :]
    assert mask.ndim == 3 and mask.shape[0] == B and mask.shape[-1] == S
    bias = jnp.where(mask == 0.0, _NEG_BIAS, 0.0).astype(bf16)

    x_flat = x.reshape(B * S, D)   # free in XLA; keeps the kernel 2-D and lane-dense

    # ---- VMEM budget: sized from the actual buffers (+headroom), not hardcoded -------
    def nbytes(a):
        return int(a.size) * a.dtype.itemsize

    weight_bytes = sum(nbytes(w) for w in weights)
    x_bytes = n_rows * D * 4
    bias_bytes = block_b * mask.shape[1] * S * 2
    out_bytes = n_rows * D * x.dtype.itemsize
    tmp_bytes = (n_rows * 3 * D * 4                      # qkv
                 + 3 * n_head * S * dh * 6               # head-major q/k/v (f32 + bf16)
                 + 2 * n_head * S * S * 4                # scores / probs
                 + 3 * n_rows * D * 4                    # att / y / residuals
                 + 2 * row_tile * ffn_hidden * 4)        # FFN hidden tile

    def build(single_buffer_weights):
        weight_buf = 1 if single_buffer_weights else 2
        needed = (weight_buf * weight_bytes
                  + 2 * (x_bytes + bias_bytes + out_bytes)   # double-buffered blocks
                  + n_rows * D * 2                           # ctx scratch (bf16)
                  + tmp_bytes)
        vmem_limit = int(min(max(2 * needed + (4 << 20), 16 << 20), 128 << 20))

        def weight_spec(arr):
            nd = arr.ndim
            kwargs = {}
            if single_buffer_weights:
                # Constant index map -> content never changes; one resident buffer
                # halves weight VMEM (matters under v7x's 64 MiB physical VMEM).
                kwargs["pipeline_mode"] = pl.Buffered(1)
            return pl.BlockSpec(arr.shape, lambda i, _n=nd: (0,) * _n, **kwargs)

        in_specs = [
            pl.BlockSpec((n_rows, D), lambda i: (i, 0)),                     # x rows
            pl.BlockSpec((block_b, mask.shape[1], S), lambda i: (i, 0, 0)),  # mask bias
        ] + [weight_spec(w) for w in weights]

        kernel = functools.partial(
            encoder_layer_kernel, n_head=n_head, seq_len=S,
            block_b=block_b, row_tile=row_tile)

        return pl.pallas_call(
            kernel,
            out_shape=jax.ShapeDtypeStruct((B * S, D), x.dtype),
            grid_spec=pltpu.PrefetchScalarGridSpec(
                num_scalar_prefetch=0,
                grid=(B // block_b,),
                in_specs=in_specs,
                out_specs=pl.BlockSpec((n_rows, D), lambda i: (i, 0)),
                scratch_shapes=[pltpu.VMEM((n_rows, D), jnp.bfloat16)],  # ctx slab
            ),
            compiler_params=pltpu.CompilerParams(
                # TODO(synk): add a second "parallel" axis over query-row tiles so both
                # v7x TensorCores stay busy when B // block_b is 1 or odd.
                dimension_semantics=("parallel",),
                vmem_limit_bytes=vmem_limit,
            ),
        )

    last_err = None
    for single in (True, False):
        try:
            out_flat = build(single)(x_flat, bias, *weights)
            out_flat = jax.block_until_ready(out_flat)
            return out_flat.reshape(B, S, D)
        except Exception as err:   # fall back to default double-buffered weights
            last_err = err
    raise last_err


def reference_encoder_layer(x, src_mask, p, n_head):
    """Pure-JAX f32 reference mirroring the PyTorch module (eval mode)."""
    B, S, D = x.shape
    dh = D // n_head

    def ln(v, g, b, eps=1e-12):
        mu = jnp.mean(v, axis=-1, keepdims=True)
        var = jnp.mean((v - mu) ** 2, axis=-1, keepdims=True)
        return g * ((v - mu) / jnp.sqrt(var + eps)) + b

    q = x @ p["wq"] + p["bq"]
    k = x @ p["wk"] + p["bk"]
    v = x @ p["wv"] + p["bv"]

    def split(t):  # (B,S,D) -> (B,H,S,dh)
        return t.reshape(B, S, n_head, dh).transpose(0, 2, 1, 3)

    qh, kh, vh = split(q), split(k), split(v)
    s = jnp.einsum("bhqd,bhkd->bhqk", qh, kh) / math.sqrt(dh)
    mask = src_mask
    if mask.ndim == 2:
        mask = mask[:, None, :]
    s = jnp.where(mask[:, None, :, :] == 0.0, _NEG_BIAS, s)
    pat = jax.nn.softmax(s, axis=-1)
    ctx = jnp.einsum("bhqk,bhkd->bhqd", pat, vh)
    ctx = ctx.transpose(0, 2, 1, 3).reshape(B, S, D)
    att = ctx @ p["wo"] + p["bo"]

    y = ln(x + att, p["g1"], p["be1"])
    f = jnp.maximum(y @ p["w1"] + p["b1"], 0.0) @ p["w2"] + p["b2"]
    return ln(f + y, p["g2"], p["be2"])


def init_params(key, d_model, ffn_hidden):
    ks = jax.random.split(key, 8)
    s = 0.05
    return {
        "wq": s * jax.random.normal(ks[0], (d_model, d_model), jnp.float32),
        "bq": jnp.zeros((1, d_model), jnp.float32),
        "wk": s * jax.random.normal(ks[1], (d_model, d_model), jnp.float32),
        "bk": jnp.zeros((1, d_model), jnp.float32),
        "wv": s * jax.random.normal(ks[2], (d_model, d_model), jnp.float32),
        "bv": jnp.zeros((1, d_model), jnp.float32),
        "wo": s * jax.random.normal(ks[3], (d_model, d_model), jnp.float32),
        "bo": jnp.zeros((1, d_model), jnp.float32),
        "g1": jnp.ones((1, d_model), jnp.float32),
        "be1": jnp.zeros((1, d_model), jnp.float32),
        "w1": s * jax.random.normal(ks[4], (d_model, ffn_hidden), jnp.float32),
        "b1": 0.01 * jnp.ones((1, ffn_hidden), jnp.float32),
        "w2": s * jax.random.normal(ks[5], (ffn_hidden, d_model), jnp.float32),
        "b2": 0.01 * jnp.ones((1, d_model), jnp.float32),
        "g2": jnp.ones((1, d_model), jnp.float32),
        "be2": jnp.zeros((1, d_model), jnp.float32),
    }


if __name__ == "__main__":
    B, S, D, H, F = 4, 8, 32, 4, 64   # batch, seq, d_model, n_head, ffn_hidden
    key = jax.random.PRNGKey(0)
    kx, kp = jax.random.split(key)

    x = jax.random.normal(kx, (B, S, D), jnp.float32)
    # key-padding mask (1 = keep, 0 = masked): batches 1 and 3 pad their last keys.
    src_mask = jnp.ones((B, S), jnp.float32)
    src_mask = src_mask.at[1, S - 2:].set(0.0)
    src_mask = src_mask.at[3, S - 3:].set(0.0)

    params = init_params(kp, D, F)

    # block_b=2 folds 2 batch elements per grid step -> grid=(2,), exercising the
    # batch-folding index maps while staying at small demo shapes.
    out = encoder_layer(x, src_mask, params, n_head=H, block_b=2)
    out = jax.block_until_ready(out)

    ref = reference_encoder_layer(x, src_mask, params, n_head=H)
    assert out.shape == (B, S, D)
    # Tolerance accounts for bf16 MXU inputs (f32 accumulation) vs the f32 reference.
    assert jnp.allclose(out, ref, atol=2e-2, rtol=2e-2), "mismatch vs reference"

    print("KERNEL_OK")
</pallas_src>

<mosaic_0001>
module attributes {stable_mosaic.version = 11 : i64} {
  func.func @encoder_layer_kernel(%arg0: i32, %arg1: memref<16x32xf32, #tpu.memory_space<vmem>>, %arg2: memref<2x1x8xbf16, #tpu.memory_space<vmem>>, %arg3: memref<32x96xbf16, #tpu.memory_space<vmem>>, %arg4: memref<1x96xf32, #tpu.memory_space<vmem>>, %arg5: memref<32x32xbf16, #tpu.memory_space<vmem>>, %arg6: memref<1x32xf32, #tpu.memory_space<vmem>>, %arg7: memref<1x32xf32, #tpu.memory_space<vmem>>, %arg8: memref<1x32xf32, #tpu.memory_space<vmem>>, %arg9: memref<32x64xbf16, #tpu.memory_space<vmem>>, %arg10: memref<1x64xf32, #tpu.memory_space<vmem>>, %arg11: memref<64x32xbf16, #tpu.memory_space<vmem>>, %arg12: memref<1x32xf32, #tpu.memory_space<vmem>>, %arg13: memref<1x32xf32, #tpu.memory_space<vmem>>, %arg14: memref<1x32xf32, #tpu.memory_space<vmem>>, %arg15: memref<16x32xf32, #tpu.memory_space<vmem>>, %arg16: memref<16x32xbf16, #tpu.memory_space<vmem>>) attributes {dimension_semantics = [#tpu.dimension_semantics<parallel>], iteration_bounds = array<i64: 2>, scalar_prefetch = 0 : i64, scratch_operands = 1 : i64, tpu.core_type = #tpu.core_type<tc>, window_params = [{transform_indices = @transform_0, window_bounds = array<i64: 16, 32>}, {transform_indices = @transform_1, window_bounds = array<i64: 2, 1, 8>}, {pipeline_mode = #tpu.pipeline_mode<synchronous>, transform_indices = @transform_2, window_bounds = array<i64: 32, 96>}, {pipeline_mode = #tpu.pipeline_mode<synchronous>, transform_indices = @transform_3, window_bounds = array<i64: 1, 96>}, {pipeline_mode = #tpu.pipeline_mode<synchronous>, transform_indices = @transform_4, window_bounds = array<i64: 32, 32>}, {pipeline_mode = #tpu.pipeline_mode<synchronous>, transform_indices = @transform_5, window_bounds = array<i64: 1, 32>}, {pipeline_mode = #tpu.pipeline_mode<synchronous>, transform_indices = @transform_6, window_bounds = array<i64: 1, 32>}, {pipeline_mode = #tpu.pipeline_mode<synchronous>, transform_indices = @transform_7, window_bounds = array<i64: 1, 32>}, {pipeline_mode = #tpu.pipeline_mode<synchronous>, transform_indices = @transform_8, window_bounds = array<i64: 32, 64>}, {pipeline_mode = #tpu.pipeline_mode<synchronous>, transform_indices = @transform_9, window_bounds = array<i64: 1, 64>}, {pipeline_mode = #tpu.pipeline_mode<synchronous>, transform_indices = @transform_10, window_bounds = array<i64: 64, 32>}, {pipeline_mode = #tpu.pipeline_mode<synchronous>, transform_indices = @transform_11, window_bounds = array<i64: 1, 32>}, {pipeline_mode = #tpu.pipeline_mode<synchronous>, transform_indices = @transform_12, window_bounds = array<i64: 1, 32>}, {pipeline_mode = #tpu.pipeline_mode<synchronous>, transform_indices = @transform_13, window_bounds = array<i64: 1, 32>}, {transform_indices = @transform_14, window_bounds = array<i64: 16, 32>}]} {
    %c0 = arith.constant 0 : index
    %c0_0 = arith.constant 0 : index
    %0 = vector.load %arg1[%c0, %c0_0] : memref<16x32xf32, #tpu.memory_space<vmem>>, vector<16x32xf32>
    %1 = arith.truncf %0 : vector<16x32xf32> to vector<16x32xbf16>
    %c0_1 = arith.constant 0 : index
    %c0_2 = arith.constant 0 : index
    %2 = vector.load %arg3[%c0_1, %c0_2] : memref<32x96xbf16, #tpu.memory_space<vmem>>, vector<32x96xbf16>
    %cst = arith.constant dense<0.000000e+00> : vector<16x96xf32>
    %3 = tpu.matmul %1, %2, %cst {dimension_numbers = #tpu.dot_dimension_numbers<[1], [0], [0], [1], [0, 0, 1, 1], [], []>} : vector<16x32xbf16>, vector<32x96xbf16>, vector<16x96xf32> -> vector<16x96xf32>
    %c0_3 = arith.constant 0 : index
    %c0_4 = arith.constant 0 : index
    %4 = vector.load %arg4[%c0_3, %c0_4] : memref<1x96xf32, #tpu.memory_space<vmem>>, vector<1x96xf32>
    %5 = vector.broadcast %4 : vector<1x96xf32> to vector<16x96xf32>
    %6 = arith.addf %3, %5 : vector<16x96xf32>
    %7 = vector.extract_strided_slice %6 {offsets = [0, 0], sizes = [8, 32], strides = [1, 1]} : vector<16x96xf32> to vector<8x32xf32>
    %8 = vector.shape_cast %7 : vector<8x32xf32> to vector<8x4x8xf32>
    %9 = tpu.transpose %8, [1, 0, 2] : vector<8x4x8xf32> -> vector<4x8x8xf32>
    %10 = arith.truncf %9 : vector<4x8x8xf32> to vector<4x8x8xbf16>
    %11 = vector.extract_strided_slice %6 {offsets = [0, 32], sizes = [8, 32], strides = [1, 1]} : vector<16x96xf32> to vector<8x32xf32>
    %12 = vector.shape_cast %11 : vector<8x32xf32> to vector<8x4x8xf32>
    %13 = tpu.transpose %12, [1, 0, 2] : vector<8x4x8xf32> -> vector<4x8x8xf32>
    %14 = arith.truncf %13 : vector<4x8x8xf32> to vector<4x8x8xbf16>
    %15 = vector.extract_strided_slice %6 {offsets = [0, 64], sizes = [8, 32], strides = [1, 1]} : vector<16x96xf32> to vector<8x32xf32>
    %16 = vector.shape_cast %15 : vector<8x32xf32> to vector<8x4x8xf32>
    %17 = tpu.transpose %16, [1, 0, 2] : vector<8x4x8xf32> -> vector<4x8x8xf32>
    %18 = arith.truncf %17 : vector<4x8x8xf32> to vector<4x8x8xbf16>
    "tpu.trace_start"() <{level = 10 : i32, message = "hqd,hkd->hqk"}> : () -> ()
    %cst_5 = arith.constant dense<0.000000e+00> : vector<4x8x8xf32>
    %19 = tpu.matmul %10, %14, %cst_5 {dimension_numbers = #tpu.dot_dimension_numbers<[2], [2], [1], [1], [0, 0, 0, 1, 1, 1], [0], [0]>} : vector<4x8x8xbf16>, vector<4x8x8xbf16>, vector<4x8x8xf32> -> vector<4x8x8xf32>
    "tpu.trace_stop"() : () -> ()
    %c0_6 = arith.constant 0 : index
    %c0_7 = arith.constant 0 : index
    %c0_8 = arith.constant 0 : index
    %20 = vector.load %arg2[%c0_6, %c0_7, %c0_8] : memref<2x1x8xbf16, #tpu.memory_space<vmem>>, vector<1x1x8xbf16>
    %21 = vector.shape_cast %20 : vector<1x1x8xbf16> to vector<1x8xbf16>
    %22 = vector.shape_cast %21 : vector<1x8xbf16> to vector<1x1x8xbf16>
    %23 = arith.extf %22 : vector<1x1x8xbf16> to vector<1x1x8xf32>
    %24 = vector.broadcast %23 : vector<1x1x8xf32> to vector<4x8x8xf32>
    %25 = arith.addf %19, %24 : vector<4x8x8xf32>
    %cst_9 = arith.constant dense<0xFF800000> : vector<4x8xf32>
    %26 = vector.multi_reduction <maximumf>, %25, %cst_9 [2] : vector<4x8x8xf32> to vector<4x8xf32>
    %27 = vector.shape_cast %26 : vector<4x8xf32> to vector<4x8x1xf32>
    %28 = vector.broadcast %27 : vector<4x8x1xf32> to vector<4x8x8xf32>
    %29 = arith.subf %25, %28 : vector<4x8x8xf32>
    %30 = math.exp %29 : vector<4x8x8xf32>
    %cst_10 = arith.constant dense<0.000000e+00> : vector<4x8xf32>
    %31 = vector.multi_reduction <add>, %30, %cst_10 [2] : vector<4x8x8xf32> to vector<4x8xf32>
    %32 = vector.shape_cast %31 : vector<4x8xf32> to vector<4x8x1xf32>
    %33 = tpu.reciprocal %32 {approx = true} : vector<4x8x1xf32> -> vector<4x8x1xf32>
    %34 = vector.broadcast %33 : vector<4x8x1xf32> to vector<4x8x8xf32>
    %35 = arith.mulf %30, %34 : vector<4x8x8xf32>
    %36 = arith.truncf %35 : vector<4x8x8xf32> to vector<4x8x8xbf16>
    "tpu.trace_start"() <{level = 10 : i32, message = "hqk,hkd->hqd"}> : () -> ()
    %cst_11 = arith.constant dense<0.000000e+00> : vector<4x8x8xf32>
    %37 = tpu.matmul %36, %18, %cst_11 {dimension_numbers = #tpu.dot_dimension_numbers<[2], [1], [1], [2], [0, 0, 0, 1, 1, 2], [0], [0]>} : vector<4x8x8xbf16>, vector<4x8x8xbf16>, vector<4x8x8xf32> -> vector<4x8x8xf32>
    "tpu.trace_stop"() : () -> ()
    %38 = tpu.transpose %37, [1, 0, 2] : vector<4x8x8xf32> -> vector<8x4x8xf32>
    %39 = vector.shape_cast %38 : vector<8x4x8xf32> to vector<8x32xf32>
    %40 = arith.truncf %39 : vector<8x32xf32> to vector<8x32xbf16>
    %c0_12 = arith.constant 0 : index
    %c0_13 = arith.constant 0 : index
    %41 = vector.load %arg16[%c0_12, %c0_13] : memref<16x32xbf16, #tpu.memory_space<vmem>>, vector<8x32xbf16>
    tpu.vector_store %arg16[%c0_12, %c0_13], %40 {strides = array<i32>} : memref<16x32xbf16, #tpu.memory_space<vmem>>, vector<8x32xbf16>,
    %42 = vector.extract_strided_slice %6 {offsets = [8, 0], sizes = [8, 32], strides = [1, 1]} : vector<16x96xf32> to vector<8x32xf32>
    %43 = vector.shape_cast %42 : vector<8x32xf32> to vector<8x4x8xf32>
    %44 = tpu.transpose %43, [1, 0, 2] : vector<8x4x8xf32> -> vector<4x8x8xf32>
    %45 = arith.truncf %44 : vector<4x8x8xf32> to vector<4x8x8xbf16>
    %46 = vector.extract_strided_slice %6 {offsets = [8, 32], sizes = [8, 32], strides = [1, 1]} : vector<16x96xf32> to vector<8x32xf32>
    %47 = vector.shape_cast %46 : vector<8x32xf32> to vector<8x4x8xf32>
    %48 = tpu.transpose %47, [1, 0, 2] : vector<8x4x8xf32> -> vector<4x8x8xf32>
    %49 = arith.truncf %48 : vector<4x8x8xf32> to vector<4x8x8xbf16>
    %50 = vector.extract_strided_slice %6 {offsets = [8, 64], sizes = [8, 32], strides = [1, 1]} : vector<16x96xf32> to vector<8x32xf32>
    %51 = vector.shape_cast %50 : vector<8x32xf32> to vector<8x4x8xf32>
    %52 = tpu.transpose %51, [1, 0, 2] : vector<8x4x8xf32> -> vector<4x8x8xf32>
    %53 = arith.truncf %52 : vector<4x8x8xf32> to vector<4x8x8xbf16>
    "tpu.trace_start"() <{level = 10 : i32, message = "hqd,hkd->hqk"}> : () -> ()
    %cst_14 = arith.constant dense<0.000000e+00> : vector<4x8x8xf32>
    %54 = tpu.matmul %45, %49, %cst_14 {dimension_numbers = #tpu.dot_dimension_numbers<[2], [2], [1], [1], [0, 0, 0, 1, 1, 1], [0], [0]>} : vector<4x8x8xbf16>, vector<4x8x8xbf16>, vector<4x8x8xf32> -> vector<4x8x8xf32>
    "tpu.trace_stop"() : () -> ()
    %c1 = arith.constant 1 : index
    %c0_15 = arith.constant 0 : index
    %c0_16 = arith.constant 0 : index
    %55 = vector.load %arg2[%c1, %c0_15, %c0_16] : memref<2x1x8xbf16, #tpu.memory_space<vmem>>, vector<1x1x8xbf16>
    %56 = vector.shape_cast %55 : vector<1x1x8xbf16> to vector<1x8xbf16>
    %57 = vector.shape_cast %56 : vector<1x8xbf16> to vector<1x1x8xbf16>
    %58 = arith.extf %57 : vector<1x1x8xbf16> to vector<1x1x8xf32>
    %59 = vector.broadcast %58 : vector<1x1x8xf32> to vector<4x8x8xf32>
    %60 = arith.addf %54, %59 : vector<4x8x8xf32>
    %cst_17 = arith.constant dense<0xFF800000> : vector<4x8xf32>
    %61 = vector.multi_reduction <maximumf>, %60, %cst_17 [2] : vector<4x8x8xf32> to vector<4x8xf32>
    %62 = vector.shape_cast %61 : vector<4x8xf32> to vector<4x8x1xf32>
    %63 = vector.broadcast %62 : vector<4x8x1xf32> to vector<4x8x8xf32>
    %64 = arith.subf %60, %63 : vector<4x8x8xf32>
    %65 = math.exp %64 : vector<4x8x8xf32>
    %cst_18 = arith.constant dense<0.000000e+00> : vector<4x8xf32>
    %66 = vector.multi_reduction <add>, %65, %cst_18 [2] : vector<4x8x8xf32> to vector<4x8xf32>
    %67 = vector.shape_cast %66 : vector<4x8xf32> to vector<4x8x1xf32>
    %68 = tpu.reciprocal %67 {approx = true} : vector<4x8x1xf32> -> vector<4x8x1xf32>
    %69 = vector.broadcast %68 : vector<4x8x1xf32> to vector<4x8x8xf32>
    %70 = arith.mulf %65, %69 : vector<4x8x8xf32>
    %71 = arith.truncf %70 : vector<4x8x8xf32> to vector<4x8x8xbf16>
    "tpu.trace_start"() <{level = 10 : i32, message = "hqk,hkd->hqd"}> : () -> ()
    %cst_19 = arith.constant dense<0.000000e+00> : vector<4x8x8xf32>
    %72 = tpu.matmul %71, %53, %cst_19 {dimension_numbers = #tpu.dot_dimension_numbers<[2], [1], [1], [2], [0, 0, 0, 1, 1, 2], [0], [0]>} : vector<4x8x8xbf16>, vector<4x8x8xbf16>, vector<4x8x8xf32> -> vector<4x8x8xf32>
    "tpu.trace_stop"() : () -> ()
    %73 = tpu.transpose %72, [1, 0, 2] : vector<4x8x8xf32> -> vector<8x4x8xf32>
    %74 = vector.shape_cast %73 : vector<8x4x8xf32> to vector<8x32xf32>
    %75 = arith.truncf %74 : vector<8x32xf32> to vector<8x32xbf16>
    %c8 = arith.constant 8 : index
    %c0_20 = arith.constant 0 : index
    %76 = vector.load %arg16[%c8, %c0_20] : memref<16x32xbf16, #tpu.memory_space<vmem>>, vector<8x32xbf16>
    tpu.vector_store %arg16[%c8, %c0_20], %75 {strides = array<i32>} : memref<16x32xbf16, #tpu.memory_space<vmem>>, vector<8x32xbf16>,
    %c0_21 = arith.constant 0 : index
    %c0_22 = arith.constant 0 : index
    %77 = vector.load %arg16[%c0_21, %c0_22] : memref<16x32xbf16, #tpu.memory_space<vmem>>, vector<16x32xbf16>
    %c0_23 = arith.constant 0 : index
    %c0_24 = arith.constant 0 : index
    %78 = vector.load %arg5[%c0_23, %c0_24] : memref<32x32xbf16, #tpu.memory_space<vmem>>, vector<32x32xbf16>
    %cst_25 = arith.constant dense<0.000000e+00> : vector<16x32xf32>
    %79 = tpu.matmul %77, %78, %cst_25 {dimension_numbers = #tpu.dot_dimension_numbers<[1], [0], [0], [1], [0, 0, 1, 1], [], []>} : vector<16x32xbf16>, vector<32x32xbf16>, vector<16x32xf32> -> vector<16x32xf32>
    %c0_26 = arith.constant 0 : index
    %c0_27 = arith.constant 0 : index
    %80 = vector.load %arg6[%c0_26, %c0_27] : memref<1x32xf32, #tpu.memory_space<vmem>>, vector<1x32xf32>
    %81 = vector.broadcast %80 : vector<1x32xf32> to vector<16x32xf32>
    %82 = arith.addf %79, %81 : vector<16x32xf32>
    %83 = arith.addf %0, %82 : vector<16x32xf32>
    %c0_28 = arith.constant 0 : index
    %c0_29 = arith.constant 0 : index
    %84 = vector.load %arg7[%c0_28, %c0_29] : memref<1x32xf32, #tpu.memory_space<vmem>>, vector<1x32xf32>
    %c0_30 = arith.constant 0 : index
    %c0_31 = arith.constant 0 : index
    %85 = vector.load %arg8[%c0_30, %c0_31] : memref<1x32xf32, #tpu.memory_space<vmem>>, vector<1x32xf32>
    %cst_32 = arith.constant dense<0.000000e+00> : vector<16xf32>
    %86 = vector.multi_reduction <add>, %83, %cst_32 [1] : vector<16x32xf32> to vector<16xf32>
    %87 = vector.shape_cast %86 : vector<16xf32> to vector<16x1xf32>
    %cst_33 = arith.constant 3.200000e+01 : f32
    %88 = vector.broadcast %cst_33 : f32 to vector<16x1xf32>
    %89 = arith.divf %87, %88 : vector<16x1xf32>
    %90 = vector.broadcast %89 : vector<16x1xf32> to vector<16x32xf32>
    %91 = arith.subf %83, %90 : vector<16x32xf32>
    %92 = arith.mulf %91, %91 : vector<16x32xf32>
    %cst_34 = arith.constant dense<0.000000e+00> : vector<16xf32>
    %93 = vector.multi_reduction <add>, %92, %cst_34 [1] : vector<16x32xf32> to vector<16xf32>
    %94 = vector.shape_cast %93 : vector<16xf32> to vector<16x1xf32>
    %cst_35 = arith.constant 3.200000e+01 : f32
    %95 = vector.broadcast %cst_35 : f32 to vector<16x1xf32>
    %96 = arith.divf %94, %95 : vector<16x1xf32>
    %97 = vector.broadcast %89 : vector<16x1xf32> to vector<16x32xf32>
    %98 = arith.subf %83, %97 : vector<16x32xf32>
    %cst_36 = arith.constant 9.99999996E-13 : f32
    %99 = vector.broadcast %cst_36 : f32 to vector<16x1xf32>
    %100 = arith.addf %96, %99 : vector<16x1xf32>
    %101 = math.rsqrt %100 : vector<16x1xf32>
    %102 = vector.broadcast %101 : vector<16x1xf32> to vector<16x32xf32>
    %103 = arith.mulf %98, %102 : vector<16x32xf32>
    %104 = vector.broadcast %84 : vector<1x32xf32> to vector<16x32xf32>
    %105 = arith.mulf %104, %103 : vector<16x32xf32>
    %106 = vector.broadcast %85 : vector<1x32xf32> to vector<16x32xf32>
    %107 = arith.addf %105, %106 : vector<16x32xf32>
    %108 = arith.truncf %107 : vector<16x32xf32> to vector<16x32xbf16>
    %c0_37 = arith.constant 0 : index
    %c0_38 = arith.constant 0 : index
    %109 = vector.load %arg9[%c0_37, %c0_38] : memref<32x64xbf16, #tpu.memory_space<vmem>>, vector<32x64xbf16>
    %cst_39 = arith.constant dense<0.000000e+00> : vector<16x64xf32>
    %110 = tpu.matmul %108, %109, %cst_39 {dimension_numbers = #tpu.dot_dimension_numbers<[1], [0], [0], [1], [0, 0, 1, 1], [], []>} : vector<16x32xbf16>, vector<32x64xbf16>, vector<16x64xf32> -> vector<16x64xf32>
    %c0_40 = arith.constant 0 : index
    %c0_41 = arith.constant 0 : index
    %111 = vector.load %arg10[%c0_40, %c0_41] : memref<1x64xf32, #tpu.memory_space<vmem>>, vector<1x64xf32>
    %112 = vector.broadcast %111 : vector<1x64xf32> to vector<16x64xf32>
    %113 = arith.addf %110, %112 : vector<16x64xf32>
    %cst_42 = arith.constant 0.000000e+00 : f32
    %114 = vector.broadcast %cst_42 : f32 to vector<16x64xf32>
    %115 = arith.maximumf %113, %114 : vector<16x64xf32>
    %116 = arith.truncf %115 : vector<16x64xf32> to vector<16x64xbf16>
    %c0_43 = arith.constant 0 : index
    %c0_44 = arith.constant 0 : index
    %117 = vector.load %arg11[%c0_43, %c0_44] : memref<64x32xbf16, #tpu.memory_space<vmem>>, vector<64x32xbf16>
    %cst_45 = arith.constant dense<0.000000e+00> : vector<16x32xf32>
    %118 = tpu.matmul %116, %117, %cst_45 {dimension_numbers = #tpu.dot_dimension_numbers<[1], [0], [0], [1], [0, 0, 1, 1], [], []>} : vector<16x64xbf16>, vector<64x32xbf16>, vector<16x32xf32> -> vector<16x32xf32>
    %c0_46 = arith.constant 0 : index
    %c0_47 = arith.constant 0 : index
    %119 = vector.load %arg12[%c0_46, %c0_47] : memref<1x32xf32, #tpu.memory_space<vmem>>, vector<1x32xf32>
    %120 = vector.broadcast %119 : vector<1x32xf32> to vector<16x32xf32>
    %121 = arith.addf %118, %120 : vector<16x32xf32>
    %122 = arith.addf %121, %107 : vector<16x32xf32>
    %c0_48 = arith.constant 0 : index
    %c0_49 = arith.constant 0 : index
    %123 = vector.load %arg13[%c0_48, %c0_49] : memref<1x32xf32, #tpu.memory_space<vmem>>, vector<1x32xf32>
    %c0_50 = arith.constant 0 : index
    %c0_51 = arith.constant 0 : index
    %124 = vector.load %arg14[%c0_50, %c0_51] : memref<1x32xf32, #tpu.memory_space<vmem>>, vector<1x32xf32>
    %cst_52 = arith.constant dense<0.000000e+00> : vector<16xf32>
    %125 = vector.multi_reduction <add>, %122, %cst_52 [1] : vector<16x32xf32> to vector<16xf32>
    %126 = vector.shape_cast %125 : vector<16xf32> to vector<16x1xf32>
    %cst_53 = arith.constant 3.200000e+01 : f32
    %127 = vector.broadcast %cst_53 : f32 to vector<16x1xf32>
    %128 = arith.divf %126, %127 : vector<16x1xf32>
    %129 = vector.broadcast %128 : vector<16x1xf32> to vector<16x32xf32>
    %130 = arith.subf %122, %129 : vector<16x32xf32>
    %131 = arith.mulf %130, %130 : vector<16x32xf32>
    %cst_54 = arith.constant dense<0.000000e+00> : vector<16xf32>
    %132 = vector.multi_reduction <add>, %131, %cst_54 [1] : vector<16x32xf32> to vector<16xf32>
    %133 = vector.shape_cast %132 : vector<16xf32> to vector<16x1xf32>
    %cst_55 = arith.constant 3.200000e+01 : f32
    %134 = vector.broadcast %cst_55 : f32 to vector<16x1xf32>
    %135 = arith.divf %133, %134 : vector<16x1xf32>
    %136 = vector.broadcast %128 : vector<16x1xf32> to vector<16x32xf32>
    %137 = arith.subf %122, %136 : vector<16x32xf32>
    %cst_56 = arith.constant 9.99999996E-13 : f32
    %138 = vector.broadcast %cst_56 : f32 to vector<16x1xf32>
    %139 = arith.addf %135, %138 : vector<16x1xf32>
    %140 = math.rsqrt %139 : vector<16x1xf32>
    %141 = vector.broadcast %140 : vector<16x1xf32> to vector<16x32xf32>
    %142 = arith.mulf %137, %141 : vector<16x32xf32>
    %143 = vector.broadcast %123 : vector<1x32xf32> to vector<16x32xf32>
    %144 = arith.mulf %143, %142 : vector<16x32xf32>
    %145 = vector.broadcast %124 : vector<1x32xf32> to vector<16x32xf32>
    %146 = arith.addf %144, %145 : vector<16x32xf32>
    %c0_57 = arith.constant 0 : index
    %c0_58 = arith.constant 0 : index
    %147 = vector.load %arg15[%c0_57, %c0_58] : memref<16x32xf32, #tpu.memory_space<vmem>>, vector<16x32xf32>
    tpu.vector_store %arg15[%c0_57, %c0_58], %146 {strides = array<i32>} : memref<16x32xf32, #tpu.memory_space<vmem>>, vector<16x32xf32>,
    return
  }
  func.func @transform_0(%arg0: i32) -> (i32, i32) {
    %c0_i32 = arith.constant 0 : i32
    %c0_i32_0 = arith.constant 0 : i32
    return %arg0, %c0_i32 : i32, i32
  }
  func.func @transform_1(%arg0: i32) -> (i32, i32, i32) {
    %c0_i32 = arith.constant 0 : i32
    %c0_i32_0 = arith.constant 0 : i32
    %c0_i32_1 = arith.constant 0 : i32
    return %arg0, %c0_i32, %c0_i32_0 : i32, i32, i32
  }
  func.func @transform_2(%arg0: i32) -> (i32, i32) {
    %c0_i32 = arith.constant 0 : i32
    %c0_i32_0 = arith.constant 0 : i32
    %c0_i32_1 = arith.constant 0 : i32
    return %c0_i32, %c0_i32_0 : i32, i32
  }
  func.func @transform_3(%arg0: i32) -> (i32, i32) {
    %c0_i32 = arith.constant 0 : i32
    %c0_i32_0 = arith.constant 0 : i32
    %c0_i32_1 = arith.constant 0 : i32
    return %c0_i32, %c0_i32_0 : i32, i32
  }
  func.func @transform_4(%arg0: i32) -> (i32, i32) {
    %c0_i32 = arith.constant 0 : i32
    %c0_i32_0 = arith.constant 0 : i32
    %c0_i32_1 = arith.constant 0 : i32
    return %c0_i32, %c0_i32_0 : i32, i32
  }
  func.func @transform_5(%arg0: i32) -> (i32, i32) {
    %c0_i32 = arith.constant 0 : i32
    %c0_i32_0 = arith.constant 0 : i32
    %c0_i32_1 = arith.constant 0 : i32
    return %c0_i32, %c0_i32_0 : i32, i32
  }
  func.func @transform_6(%arg0: i32) -> (i32, i32) {
    %c0_i32 = arith.constant 0 : i32
    %c0_i32_0 = arith.constant 0 : i32
    %c0_i32_1 = arith.constant 0 : i32
    return %c0_i32, %c0_i32_0 : i32, i32
  }
  func.func @transform_7(%arg0: i32) -> (i32, i32) {
    %c0_i32 = arith.constant 0 : i32
    %c0_i32_0 = arith.constant 0 : i32
    %c0_i32_1 = arith.constant 0 : i32
    return %c0_i32, %c0_i32_0 : i32, i32
  }
  func.func @transform_8(%arg0: i32) -> (i32, i32) {
    %c0_i32 = arith.constant 0 : i32
    %c0_i32_0 = arith.constant 0 : i32
    %c0_i32_1 = arith.constant 0 : i32
    return %c0_i32, %c0_i32_0 : i32, i32
  }
  func.func @transform_9(%arg0: i32) -> (i32, i32) {
    %c0_i32 = arith.constant 0 : i32
    %c0_i32_0 = arith.constant 0 : i32
    %c0_i32_1 = arith.constant 0 : i32
    return %c0_i32, %c0_i32_0 : i32, i32
  }
  func.func @transform_10(%arg0: i32) -> (i32, i32) {
    %c0_i32 = arith.constant 0 : i32
    %c0_i32_0 = arith.constant 0 : i32
    %c0_i32_1 = arith.constant 0 : i32
    return %c0_i32, %c0_i32_0 : i32, i32
  }
  func.func @transform_11(%arg0: i32) -> (i32, i32) {
    %c0_i32 = arith.constant 0 : i32
    %c0_i32_0 = arith.constant 0 : i32
    %c0_i32_1 = arith.constant 0 : i32
    return %c0_i32, %c0_i32_0 : i32, i32
  }
  func.func @transform_12(%arg0: i32) -> (i32, i32) {
    %c0_i32 = arith.constant 0 : i32
    %c0_i32_0 = arith.constant 0 : i32
    %c0_i32_1 = arith.constant 0 : i32
    return %c0_i32, %c0_i32_0 : i32, i32
  }
  func.func @transform_13(%arg0: i32) -> (i32, i32) {
    %c0_i32 = arith.constant 0 : i32
    %c0_i32_0 = arith.constant 0 : i32
    %c0_i32_1 = arith.constant 0 : i32
    return %c0_i32, %c0_i32_0 : i32, i32
  }
  func.func @transform_14(%arg0: i32) -> (i32, i32) {
    %c0_i32 = arith.constant 0 : i32
    %c0_i32_0 = arith.constant 0 : i32
    return %arg0, %c0_i32 : i32, i32
  }
}

module attributes {stable_mosaic.version = 11 : i64} {
  func.func @encoder_layer_kernel(%arg0: i32, %arg1: memref<16x32xf32, #tpu.memory_space<vmem>>, %arg2: memref<2x1x8xbf16, #tpu.memory_space<vmem>>, %arg3: memref<32x96xbf16, #tpu.memory_space<vmem>>, %arg4: memref<1x96xf32, #tpu.memory_space<vmem>>, %arg5: memref<32x32xbf16, #tpu.memory_space<vmem>>, %arg6: memref<1x32xf32, #tpu.memory_space<vmem>>, %arg7: memref<1x32xf32, #tpu.memory_space<vmem>>, %arg8: memref<1x32xf32, #tpu.memory_space<vmem>>, %arg9: memref<32x64xbf16, #tpu.memory_space<vmem>>, %arg10: memref<1x64xf32, #tpu.memory_space<vmem>>, %arg11: memref<64x32xbf16, #tpu.memory_space<vmem>>, %arg12: memref<1x32xf32, #tpu.memory_space<vmem>>, %arg13: memref<1x32xf32, #tpu.memory_space<vmem>>, %arg14: memref<1x32xf32, #tpu.memory_space<vmem>>, %arg15: memref<16x32xf32, #tpu.memory_space<vmem>>, %arg16: memref<16x32xbf16, #tpu.memory_space<vmem>>) attributes {dimension_semantics = [#tpu.dimension_semantics<parallel>], iteration_bounds = array<i64: 2>, scalar_prefetch = 0 : i64, scratch_operands = 1 : i64, tpu.core_type = #tpu.core_type<tc>, window_params = [{transform_indices = @transform_0, window_bounds = array<i64: 16, 32>}, {transform_indices = @transform_1, window_bounds = array<i64: 2, 1, 8>}, {pipeline_mode = #tpu.pipeline_mode<synchronous>, transform_indices = @transform_2, window_bounds = array<i64: 32, 96>}, {pipeline_mode = #tpu.pipeline_mode<synchronous>, transform_indices = @transform_3, window_bounds = array<i64: 1, 96>}, {pipeline_mode = #tpu.pipeline_mode<synchronous>, transform_indices = @transform_4, window_bounds = array<i64: 32, 32>}, {pipeline_mode = #tpu.pipeline_mode<synchronous>, transform_indices = @transform_5, window_bounds = array<i64: 1, 32>}, {pipeline_mode = #tpu.pipeline_mode<synchronous>, transform_indices = @transform_6, window_bounds = array<i64: 1, 32>}, {pipeline_mode = #tpu.pipeline_mode<synchronous>, transform_indices = @transform_7, window_bounds = array<i64: 1, 32>}, {pipeline_mode = #tpu.pipeline_mode<synchronous>, transform_indices = @transform_8, window_bounds = array<i64: 32, 64>}, {pipeline_mode = #tpu.pipeline_mode<synchronous>, transform_indices = @transform_9, window_bounds = array<i64: 1, 64>}, {pipeline_mode = #tpu.pipeline_mode<synchronous>, transform_indices = @transform_10, window_bounds = array<i64: 64, 32>}, {pipeline_mode = #tpu.pipeline_mode<synchronous>, transform_indices = @transform_11, window_bounds = array<i64: 1, 32>}, {pipeline_mode = #tpu.pipeline_mode<synchronous>, transform_indices = @transform_12, window_bounds = array<i64: 1, 32>}, {pipeline_mode = #tpu.pipeline_mode<synchronous>, transform_indices = @transform_13, window_bounds = array<i64: 1, 32>}, {transform_indices = @transform_14, window_bounds = array<i64: 16, 32>}]} {
    %c0 = arith.constant 0 : index
    %c0_0 = arith.constant 0 : index
    %0 = vector.load %arg1[%c0, %c0_0] : memref<16x32xf32, #tpu.memory_space<vmem>>, vector<16x32xf32>
    %1 = arith.truncf %0 : vector<16x32xf32> to vector<16x32xbf16>
    %c0_1 = arith.constant 0 : index
    %c0_2 = arith.constant 0 : index
    %2 = vector.load %arg3[%c0_1, %c0_2] : memref<32x96xbf16, #tpu.memory_space<vmem>>, vector<32x96xbf16>
    %cst = arith.constant dense<0.000000e+00> : vector<16x96xf32>
    %3 = tpu.matmul %1, %2, %cst {dimension_numbers = #tpu.dot_dimension_numbers<[1], [0], [0], [1], [0, 0, 1, 1], [], []>} : vector<16x32xbf16>, vector<32x96xbf16>, vector<16x96xf32> -> vector<16x96xf32>
    %c0_3 = arith.constant 0 : index
    %c0_4 = arith.constant 0 : index
    %4 = vector.load %arg4[%c0_3, %c0_4] : memref<1x96xf32, #tpu.memory_space<vmem>>, vector<1x96xf32>
    %5 = vector.broadcast %4 : vector<1x96xf32> to vector<16x96xf32>
    %6 = arith.addf %3, %5 : vector<16x96xf32>
    %7 = vector.extract_strided_slice %6 {offsets = [0, 0], sizes = [8, 32], strides = [1, 1]} : vector<16x96xf32> to vector<8x32xf32>
    %8 = vector.shape_cast %7 : vector<8x32xf32> to vector<8x4x8xf32>
    %9 = tpu.transpose %8, [1, 0, 2] : vector<8x4x8xf32> -> vector<4x8x8xf32>
    %10 = arith.truncf %9 : vector<4x8x8xf32> to vector<4x8x8xbf16>
    %11 = vector.extract_strided_slice %6 {offsets = [0, 32], sizes = [8, 32], strides = [1, 1]} : vector<16x96xf32> to vector<8x32xf32>
    %12 = vector.shape_cast %11 : vector<8x32xf32> to vector<8x4x8xf32>
    %13 = tpu.transpose %12, [1, 0, 2] : vector<8x4x8xf32> -> vector<4x8x8xf32>
    %14 = arith.truncf %13 : vector<4x8x8xf32> to vector<4x8x8xbf16>
    %15 = vector.extract_strided_slice %6 {offsets = [0, 64], sizes = [8, 32], strides = [1, 1]} : vector<16x96xf32> to vector<8x32xf32>
    %16 = vector.shape_cast %15 : vector<8x32xf32> to vector<8x4x8xf32>
    %17 = tpu.transpose %16, [1, 0, 2] : vector<8x4x8xf32> -> vector<4x8x8xf32>
    %18 = arith.truncf %17 : vector<4x8x8xf32> to vector<4x8x8xbf16>
    "tpu.trace_start"() <{level = 10 : i32, message = "hqd,hkd->hqk"}> : () -> ()
    %cst_5 = arith.constant dense<0.000000e+00> : vector<4x8x8xf32>
    %19 = tpu.matmul %10, %14, %cst_5 {dimension_numbers = #tpu.dot_dimension_numbers<[2], [2], [1], [1], [0, 0, 0, 1, 1, 1], [0], [0]>} : vector<4x8x8xbf16>, vector<4x8x8xbf16>, vector<4x8x8xf32> -> vector<4x8x8xf32>
    "tpu.trace_stop"() : () -> ()
    %c0_6 = arith.constant 0 : index
    %c0_7 = arith.constant 0 : index
    %c0_8 = arith.constant 0 : index
    %20 = vector.load %arg2[%c0_6, %c0_7, %c0_8] : memref<2x1x8xbf16, #tpu.memory_space<vmem>>, vector<1x1x8xbf16>
    %21 = vector.shape_cast %20 : vector<1x1x8xbf16> to vector<1x8xbf16>
    %22 = vector.shape_cast %21 : vector<1x8xbf16> to vector<1x1x8xbf16>
    %23 = arith.extf %22 : vector<1x1x8xbf16> to vector<1x1x8xf32>
    %24 = vector.broadcast %23 : vector<1x1x8xf32> to vector<4x8x8xf32>
    %25 = arith.addf %19, %24 : vector<4x8x8xf32>
    %cst_9 = arith.constant dense<0xFF800000> : vector<4x8xf32>
    %26 = vector.multi_reduction <maximumf>, %25, %cst_9 [2] : vector<4x8x8xf32> to vector<4x8xf32>
    %27 = vector.shape_cast %26 : vector<4x8xf32> to vector<4x8x1xf32>
    %28 = vector.broadcast %27 : vector<4x8x1xf32> to vector<4x8x8xf32>
    %29 = arith.subf %25, %28 : vector<4x8x8xf32>
    %30 = math.exp %29 : vector<4x8x8xf32>
    %cst_10 = arith.constant dense<0.000000e+00> : vector<4x8xf32>
    %31 = vector.multi_reduction <add>, %30, %cst_10 [2] : vector<4x8x8xf32> to vector<4x8xf32>
    %32 = vector.shape_cast %31 : vector<4x8xf32> to vector<4x8x1xf32>
    %33 = tpu.reciprocal %32 {approx = true} : vector<4x8x1xf32> -> vector<4x8x1xf32>
    %34 = vector.broadcast %33 : vector<4x8x1xf32> to vector<4x8x8xf32>
    %35 = arith.mulf %30, %34 : vector<4x8x8xf32>
    %36 = arith.truncf %35 : vector<4x8x8xf32> to vector<4x8x8xbf16>
    "tpu.trace_start"() <{level = 10 : i32, message = "hqk,hkd->hqd"}> : () -> ()
    %cst_11 = arith.constant dense<0.000000e+00> : vector<4x8x8xf32>
    %37 = tpu.matmul %36, %18, %cst_11 {dimension_numbers = #tpu.dot_dimension_numbers<[2], [1], [1], [2], [0, 0, 0, 1, 1, 2], [0], [0]>} : vector<4x8x8xbf16>, vector<4x8x8xbf16>, vector<4x8x8xf32> -> vector<4x8x8xf32>
    "tpu.trace_stop"() : () -> ()
    %38 = tpu.transpose %37, [1, 0, 2] : vector<4x8x8xf32> -> vector<8x4x8xf32>
    %39 = vector.shape_cast %38 : vector<8x4x8xf32> to vector<8x32xf32>
    %40 = arith.truncf %39 : vector<8x32xf32> to vector<8x32xbf16>
    %c0_12 = arith.constant 0 : index
    %c0_13 = arith.constant 0 : index
    %41 = vector.load %arg16[%c0_12, %c0_13] : memref<16x32xbf16, #tpu.memory_space<vmem>>, vector<8x32xbf16>
    tpu.vector_store %arg16[%c0_12, %c0_13], %40 {strides = array<i32>} : memref<16x32xbf16, #tpu.memory_space<vmem>>, vector<8x32xbf16>,
    %42 = vector.extract_strided_slice %6 {offsets = [8, 0], sizes = [8, 32], strides = [1, 1]} : vector<16x96xf32> to vector<8x32xf32>
    %43 = vector.shape_cast %42 : vector<8x32xf32> to vector<8x4x8xf32>
    %44 = tpu.transpose %43, [1, 0, 2] : vector<8x4x8xf32> -> vector<4x8x8xf32>
    %45 = arith.truncf %44 : vector<4x8x8xf32> to vector<4x8x8xbf16>
    %46 = vector.extract_strided_slice %6 {offsets = [8, 32], sizes = [8, 32], strides = [1, 1]} : vector<16x96xf32> to vector<8x32xf32>
    %47 = vector.shape_cast %46 : vector<8x32xf32> to vector<8x4x8xf32>
    %48 = tpu.transpose %47, [1, 0, 2] : vector<8x4x8xf32> -> vector<4x8x8xf32>
    %49 = arith.truncf %48 : vector<4x8x8xf32> to vector<4x8x8xbf16>
    %50 = vector.extract_strided_slice %6 {offsets = [8, 64], sizes = [8, 32], strides = [1, 1]} : vector<16x96xf32> to vector<8x32xf32>
    %51 = vector.shape_cast %50 : vector<8x32xf32> to vector<8x4x8xf32>
    %52 = tpu.transpose %51, [1, 0, 2] : vector<8x4x8xf32> -> vector<4x8x8xf32>
    %53 = arith.truncf %52 : vector<4x8x8xf32> to vector<4x8x8xbf16>
    "tpu.trace_start"() <{level = 10 : i32, message = "hqd,hkd->hqk"}> : () -> ()
    %cst_14 = arith.constant dense<0.000000e+00> : vector<4x8x8xf32>
    %54 = tpu.matmul %45, %49, %cst_14 {dimension_numbers = #tpu.dot_dimension_numbers<[2], [2], [1], [1], [0, 0, 0, 1, 1, 1], [0], [0]>} : vector<4x8x8xbf16>, vector<4x8x8xbf16>, vector<4x8x8xf32> -> vector<4x8x8xf32>
    "tpu.trace_stop"() : () -> ()
    %c1 = arith.constant 1 : index
    %c0_15 = arith.constant 0 : index
    %c0_16 = arith.constant 0 : index
    %55 = vector.load %arg2[%c1, %c0_15, %c0_16] : memref<2x1x8xbf16, #tpu.memory_space<vmem>>, vector<1x1x8xbf16>
    %56 = vector.shape_cast %55 : vector<1x1x8xbf16> to vector<1x8xbf16>
    %57 = vector.shape_cast %56 : vector<1x8xbf16> to vector<1x1x8xbf16>
    %58 = arith.extf %57 : vector<1x1x8xbf16> to vector<1x1x8xf32>
    %59 = vector.broadcast %58 : vector<1x1x8xf32> to vector<4x8x8xf32>
    %60 = arith.addf %54, %59 : vector<4x8x8xf32>
    %cst_17 = arith.constant dense<0xFF800000> : vector<4x8xf32>
    %61 = vector.multi_reduction <maximumf>, %60, %cst_17 [2] : vector<4x8x8xf32> to vector<4x8xf32>
    %62 = vector.shape_cast %61 : vector<4x8xf32> to vector<4x8x1xf32>
    %63 = vector.broadcast %62 : vector<4x8x1xf32> to vector<4x8x8xf32>
    %64 = arith.subf %60, %63 : vector<4x8x8xf32>
    %65 = math.exp %64 : vector<4x8x8xf32>
    %cst_18 = arith.constant dense<0.000000e+00> : vector<4x8xf32>
    %66 = vector.multi_reduction <add>, %65, %cst_18 [2] : vector<4x8x8xf32> to vector<4x8xf32>
    %67 = vector.shape_cast %66 : vector<4x8xf32> to vector<4x8x1xf32>
    %68 = tpu.reciprocal %67 {approx = true} : vector<4x8x1xf32> -> vector<4x8x1xf32>
    %69 = vector.broadcast %68 : vector<4x8x1xf32> to vector<4x8x8xf32>
    %70 = arith.mulf %65, %69 : vector<4x8x8xf32>
    %71 = arith.truncf %70 : vector<4x8x8xf32> to vector<4x8x8xbf16>
    "tpu.trace_start"() <{level = 10 : i32, message = "hqk,hkd->hqd"}> : () -> ()
    %cst_19 = arith.constant dense<0.000000e+00> : vector<4x8x8xf32>
    %72 = tpu.matmul %71, %53, %cst_19 {dimension_numbers = #tpu.dot_dimension_numbers<[2], [1], [1], [2], [0, 0, 0, 1, 1, 2], [0], [0]>} : vector<4x8x8xbf16>, vector<4x8x8xbf16>, vector<4x8x8xf32> -> vector<4x8x8xf32>
    "tpu.trace_stop"() : () -> ()
    %73 = tpu.transpose %72, [1, 0, 2] : vector<4x8x8xf32> -> vector<8x4x8xf32>
    %74 = vector.shape_cast %73 : vector<8x4x8xf32> to vector<8x32xf32>
    %75 = arith.truncf %74 : vector<8x32xf32> to vector<8x32xbf16>
    %c8 = arith.constant 8 : index
    %c0_20 = arith.constant 0 : index
    %76 = vector.load %arg16[%c8, %c0_20] : memref<16x32xbf16, #tpu.memory_space<vmem>>, vector<8x32xbf16>
    tpu.vector_store %arg16[%c8, %c0_20], %75 {strides = array<i32>} : memref<16x32xbf16, #tpu.memory_space<vmem>>, vector<8x32xbf16>,
    %c0_21 = arith.constant 0 : index
    %c0_22 = arith.constant 0 : index
    %77 = vector.load %arg16[%c0_21, %c0_22] : memref<16x32xbf16, #tpu.memory_space<vmem>>, vector<16x32xbf16>
    %c0_23 = arith.constant 0 : index
    %c0_24 = arith.constant 0 : index
    %78 = vector.load %arg5[%c0_23, %c0_24] : memref<32x32xbf16, #tpu.memory_space<vmem>>, vector<32x32xbf16>
    %cst_25 = arith.constant dense<0.000000e+00> : vector<16x32xf32>
    %79 = tpu.matmul %77, %78, %cst_25 {dimension_numbers = #tpu.dot_dimension_numbers<[1], [0], [0], [1], [0, 0, 1, 1], [], []>} : vector<16x32xbf16>, vector<32x32xbf16>, vector<16x32xf32> -> vector<16x32xf32>
    %c0_26 = arith.constant 0 : index
    %c0_27 = arith.constant 0 : index
    %80 = vector.load %arg6[%c0_26, %c0_27] : memref<1x32xf32, #tpu.memory_space<vmem>>, vector<1x32xf32>
    %81 = vector.broadcast %80 : vector<1x32xf32> to vector<16x32xf32>
    %82 = arith.addf %79, %81 : vector<16x32xf32>
    %83 = arith.addf %0, %82 : vector<16x32xf32>
    %c0_28 = arith.constant 0 : index
    %c0_29 = arith.constant 0 : index
    %84 = vector.load %arg7[%c0_28, %c0_29] : memref<1x32xf32, #tpu.memory_space<vmem>>, vector<1x32xf32>
    %c0_30 = arith.constant 0 : index
    %c0_31 = arith.constant 0 : index
    %85 = vector.load %arg8[%c0_30, %c0_31] : memref<1x32xf32, #tpu.memory_space<vmem>>, vector<1x32xf32>
    %cst_32 = arith.constant dense<0.000000e+00> : vector<16xf32>
    %86 = vector.multi_reduction <add>, %83, %cst_32 [1] : vector<16x32xf32> to vector<16xf32>
    %87 = vector.shape_cast %86 : vector<16xf32> to vector<16x1xf32>
    %cst_33 = arith.constant 3.200000e+01 : f32
    %88 = vector.broadcast %cst_33 : f32 to vector<16x1xf32>
    %89 = arith.divf %87, %88 : vector<16x1xf32>
    %90 = vector.broadcast %89 : vector<16x1xf32> to vector<16x32xf32>
    %91 = arith.subf %83, %90 : vector<16x32xf32>
    %92 = arith.mulf %91, %91 : vector<16x32xf32>
    %cst_34 = arith.constant dense<0.000000e+00> : vector<16xf32>
    %93 = vector.multi_reduction <add>, %92, %cst_34 [1] : vector<16x32xf32> to vector<16xf32>
    %94 = vector.shape_cast %93 : vector<16xf32> to vector<16x1xf32>
    %cst_35 = arith.constant 3.200000e+01 : f32
    %95 = vector.broadcast %cst_35 : f32 to vector<16x1xf32>
    %96 = arith.divf %94, %95 : vector<16x1xf32>
    %97 = vector.broadcast %89 : vector<16x1xf32> to vector<16x32xf32>
    %98 = arith.subf %83, %97 : vector<16x32xf32>
    %cst_36 = arith.constant 9.99999996E-13 : f32
    %99 = vector.broadcast %cst_36 : f32 to vector<16x1xf32>
    %100 = arith.addf %96, %99 : vector<16x1xf32>
    %101 = math.rsqrt %100 : vector<16x1xf32>
    %102 = vector.broadcast %101 : vector<16x1xf32> to vector<16x32xf32>
    %103 = arith.mulf %98, %102 : vector<16x32xf32>
    %104 = vector.broadcast %84 : vector<1x32xf32> to vector<16x32xf32>
    %105 = arith.mulf %104, %103 : vector<16x32xf32>
    %106 = vector.broadcast %85 : vector<1x32xf32> to vector<16x32xf32>
    %107 = arith.addf %105, %106 : vector<16x32xf32>
    %108 = arith.truncf %107 : vector<16x32xf32> to vector<16x32xbf16>
    %c0_37 = arith.constant 0 : index
    %c0_38 = arith.constant 0 : index
    %109 = vector.load %arg9[%c0_37, %c0_38] : memref<32x64xbf16, #tpu.memory_space<vmem>>, vector<32x64xbf16>
    %cst_39 = arith.constant dense<0.000000e+00> : vector<16x64xf32>
    %110 = tpu.matmul %108, %109, %cst_39 {dimension_numbers = #tpu.dot_dimension_numbers<[1], [0], [0], [1], [0, 0, 1, 1], [], []>} : vector<16x32xbf16>, vector<32x64xbf16>, vector<16x64xf32> -> vector<16x64xf32>
    %c0_40 = arith.constant 0 : index
    %c0_41 = arith.constant 0 : index
    %111 = vector.load %arg10[%c0_40, %c0_41] : memref<1x64xf32, #tpu.memory_space<vmem>>, vector<1x64xf32>
    %112 = vector.broadcast %111 : vector<1x64xf32> to vector<16x64xf32>
    %113 = arith.addf %110, %112 : vector<16x64xf32>
    %cst_42 = arith.constant 0.000000e+00 : f32
    %114 = vector.broadcast %cst_42 : f32 to vector<16x64xf32>
    %115 = arith.maximumf %113, %114 : vector<16x64xf32>
    %116 = arith.truncf %115 : vector<16x64xf32> to vector<16x64xbf16>
    %c0_43 = arith.constant 0 : index
    %c0_44 = arith.constant 0 : index
    %117 = vector.load %arg11[%c0_43, %c0_44] : memref<64x32xbf16, #tpu.memory_space<vmem>>, vector<64x32xbf16>
    %cst_45 = arith.constant dense<0.000000e+00> : vector<16x32xf32>
    %118 = tpu.matmul %116, %117, %cst_45 {dimension_numbers = #tpu.dot_dimension_numbers<[1], [0], [0], [1], [0, 0, 1, 1], [], []>} : vector<16x64xbf16>, vector<64x32xbf16>, vector<16x32xf32> -> vector<16x32xf32>
    %c0_46 = arith.constant 0 : index
    %c0_47 = arith.constant 0 : index
    %119 = vector.load %arg12[%c0_46, %c0_47] : memref<1x32xf32, #tpu.memory_space<vmem>>, vector<1x32xf32>
    %120 = vector.broadcast %119 : vector<1x32xf32> to vector<16x32xf32>
    %121 = arith.addf %118, %120 : vector<16x32xf32>
    %122 = arith.addf %121, %107 : vector<16x32xf32>
    %c0_48 = arith.constant 0 : index
    %c0_49 = arith.constant 0 : index
    %123 = vector.load %arg13[%c0_48, %c0_49] : memref<1x32xf32, #tpu.memory_space<vmem>>, vector<1x32xf32>
    %c0_50 = arith.constant 0 : index
    %c0_51 = arith.constant 0 : index
    %124 = vector.load %arg14[%c0_50, %c0_51] : memref<1x32xf32, #tpu.memory_space<vmem>>, vector<1x32xf32>
    %cst_52 = arith.constant dense<0.000000e+00> : vector<16xf32>
    %125 = vector.multi_reduction <add>, %122, %cst_52 [1] : vector<16x32xf32> to vector<16xf32>
    %126 = vector.shape_cast %125 : vector<16xf32> to vector<16x1xf32>
    %cst_53 = arith.constant 3.200000e+01 : f32
    %127 = vector.broadcast %cst_53 : f32 to vector<16x1xf32>
    %128 = arith.divf %126, %127 : vector<16x1xf32>
    %129 = vector.broadcast %128 : vector<16x1xf32> to vector<16x32xf32>
    %130 = arith.subf %122, %129 : vector<16x32xf32>
    %131 = arith.mulf %130, %130 : vector<16x32xf32>
    %cst_54 = arith.constant dense<0.000000e+00> : vector<16xf32>
    %132 = vector.multi_reduction <add>, %131, %cst_54 [1] : vector<16x32xf32> to vector<16xf32>
    %133 = vector.shape_cast %132 : vector<16xf32> to vector<16x1xf32>
    %cst_55 = arith.constant 3.200000e+01 : f32
    %134 = vector.broadcast %cst_55 : f32 to vector<16x1xf32>
    %135 = arith.divf %133, %134 : vector<16x1xf32>
    %136 = vector.broadcast %128 : vector<16x1xf32> to vector<16x32xf32>
    %137 = arith.subf %122, %136 : vector<16x32xf32>
    %cst_56 = arith.constant 9.99999996E-13 : f32
    %138 = vector.broadcast %cst_56 : f32 to vector<16x1xf32>
    %139 = arith.addf %135, %138 : vector<16x1xf32>
    %140 = math.rsqrt %139 : vector<16x1xf32>
    %141 = vector.broadcast %140 : vector<16x1xf32> to vector<16x32xf32>
    %142 = arith.mulf %137, %141 : vector<16x32xf32>
    %143 = vector.broadcast %123 : vector<1x32xf32> to vector<16x32xf32>
    %144 = arith.mulf %143, %142 : vector<16x32xf32>
    %145 = vector.broadcast %124 : vector<1x32xf32> to vector<16x32xf32>
    %146 = arith.addf %144, %145 : vector<16x32xf32>
    %c0_57 = arith.constant 0 : index
    %c0_58 = arith.constant 0 : index
    %147 = vector.load %arg15[%c0_57, %c0_58] : memref<16x32xf32, #tpu.memory_space<vmem>>, vector<16x32xf32>
    tpu.vector_store %arg15[%c0_57, %c0_58], %146 {strides = array<i32>} : memref<16x32xf32, #tpu.memory_space<vmem>>, vector<16x32xf32>,
    return
  }
  func.func @transform_0(%arg0: i32) -> (i32, i32) {
    %c0_i32 = arith.constant 0 : i32
    %c0_i32_0 = arith.constant 0 : i32
    return %arg0, %c0_i32 : i32, i32
  }
  func.func @transform_1(%arg0: i32) -> (i32, i32, i32) {
    %c0_i32 = arith.constant 0 : i32
    %c0_i32_0 = arith.constant 0 : i32
    %c0_i32_1 = arith.constant 0 : i32
    return %arg0, %c0_i32, %c0_i32_0 : i32, i32, i32
  }
  func.func @transform_2(%arg0: i32) -> (i32, i32) {
    %c0_i32 = arith.constant 0 : i32
    %c0_i32_0 = arith.constant 0 : i32
    %c0_i32_1 = arith.constant 0 : i32
    return %c0_i32, %c0_i32_0 : i32, i32
  }
  func.func @transform_3(%arg0: i32) -> (i32, i32) {
    %c0_i32 = arith.constant 0 : i32
    %c0_i32_0 = arith.constant 0 : i32
    %c0_i32_1 = arith.constant 0 : i32
    return %c0_i32, %c0_i32_0 : i32, i32
  }
  func.func @transform_4(%arg0: i32) -> (i32, i32) {
    %c0_i32 = arith.constant 0 : i32
    %c0_i32_0 = arith.constant 0 : i32
    %c0_i32_1 = arith.constant 0 : i32
    return %c0_i32, %c0_i32_0 : i32, i32
  }
  func.func @transform_5(%arg0: i32) -> (i32, i32) {
    %c0_i32 = arith.constant 0 : i32
    %c0_i32_0 = arith.constant 0 : i32
    %c0_i32_1 = arith.constant 0 : i32
    return %c0_i32, %c0_i32_0 : i32, i32
  }
  func.func @transform_6(%arg0: i32) -> (i32, i32) {
    %c0_i32 = arith.constant 0 : i32
    %c0_i32_0 = arith.constant 0 : i32
    %c0_i32_1 = arith.constant 0 : i32
    return %c0_i32, %c0_i32_0 : i32, i32
  }
  func.func @transform_7(%arg0: i32) -> (i32, i32) {
    %c0_i32 = arith.constant 0 : i32
    %c0_i32_0 = arith.constant 0 : i32
    %c0_i32_1 = arith.constant 0 : i32
    return %c0_i32, %c0_i32_0 : i32, i32
  }
  func.func @transform_8(%arg0: i32) -> (i32, i32) {
    %c0_i32 = arith.constant 0 : i32
    %c0_i32_0 = arith.constant 0 : i32
    %c0_i32_1 = arith.constant 0 : i32
    return %c0_i32, %c0_i32_0 : i32, i32
  }
  func.func @transform_9(%arg0: i32) -> (i32, i32) {
    %c0_i32 = arith.constant 0 : i32
    %c0_i32_0 = arith.constant 0 : i32
    %c0_i32_1 = arith.constant 0 : i32
    return %c0_i32, %c0_i32_0 : i32, i32
  }
  func.func @transform_10(%arg0: i32) -> (i32, i32) {
    %c0_i32 = arith.constant 0 : i32
    %c0_i32_0 = arith.constant 0 : i32
    %c0_i32_1 = arith.constant 0 : i32
    return %c0_i32, %c0_i32_0 : i32, i32
  }
  func.func @transform_11(%arg0: i32) -> (i32, i32) {
    %c0_i32 = arith.constant 0 : i32
    %c0_i32_0 = arith.constant 0 : i32
    %c0_i32_1 = arith.constant 0 : i32
    return %c0_i32, %c0_i32_0 : i32, i32
  }
  func.func @transform_12(%arg0: i32) -> (i32, i32) {
    %c0_i32 = arith.constant 0 : i32
    %c0_i32_0 = arith.constant 0 : i32
    %c0_i32_1 = arith.constant 0 : i32
    return %c0_i32, %c0_i32_0 : i32, i32
  }
  func.func @transform_13(%arg0: i32) -> (i32, i32) {
    %c0_i32 = arith.constant 0 : i32
    %c0_i32_0 = arith.constant 0 : i32
    %c0_i32_1 = arith.constant 0 : i32
    return %c0_i32, %c0_i32_0 : i32, i32
  }
  func.func @transform_14(%arg0: i32) -> (i32, i32) {
    %c0_i32 = arith.constant 0 : i32
    %c0_i32_0 = arith.constant 0 : i32
    return %arg0, %c0_i32 : i32, i32
  }
}

</mosaic_0001>

<llo_original>
// kernel: tpu_custom_call.1
$region0: #{tpu_custom_call.1}
  #allocation0 [shape = 'u32[]', space=smem, size = 0x4, offset = 0x4, fixed_abs, tag = 'smem constant byte address 0x4 - core index']
  #allocation1 [shape = 'u32[144,128]{1,0:T(1,128)}', space=vmem, size = 0x12000, scoped, tag = 'internal scratch']
  #allocation2 [shape = 'bf16[16,32]{1,0:T(16,128)(2,1)}', space=vmem, size = 0x1000, scoped, tag = 'scratch operand']
  %s0 = inlined_call_operand.vmem [shape: f32[32,32], index: 0, kind: input, shape index: {}]
  %s1 = inlined_call_operand.vmem [shape: bf16[4,1,8], index: 1, kind: input, shape index: {}]
  %s2 = inlined_call_operand.vmem [shape: bf16[32,96], index: 2, kind: input, shape index: {}]
  %s3 = inlined_call_operand.hbm [shape: f32[1,96], index: 3, kind: input, shape index: {}]
  %s4 = inlined_call_operand.vmem [shape: bf16[32,32], index: 4, kind: input, shape index: {}]
  %s5 = inlined_call_operand.hbm [shape: f32[1,32], index: 5, kind: input, shape index: {}]
  %s6 = inlined_call_operand.hbm [shape: f32[1,32], index: 6, kind: input, shape index: {}]
  %s7 = inlined_call_operand.hbm [shape: f32[1,32], index: 7, kind: input, shape index: {}]
  %s8 = inlined_call_operand.hbm [shape: bf16[32,64], index: 8, kind: input, shape index: {}]
  %s9 = inlined_call_operand.vmem [shape: f32[1,64], index: 9, kind: input, shape index: {}]
  %s10 = inlined_call_operand.vmem [shape: bf16[64,32], index: 10, kind: input, shape index: {}]
  %s11 = inlined_call_operand.vmem [shape: f32[1,32], index: 11, kind: input, shape index: {}]
  %s12 = inlined_call_operand.vmem [shape: f32[1,32], index: 12, kind: input, shape index: {}]
  %s13 = inlined_call_operand.vmem [shape: f32[1,32], index: 13, kind: input, shape index: {}]
  %s14 = inlined_call_operand.hbm [shape: f32[32,32], index: 14, kind: output, shape index: {}]
  %s15 = sld [smem:[#allocation0]]
  $region109: #{tpu_custom_call.1} parent=0
    _
  %s17 = ssub.s32 1, %s15
  %s18 = scalar_select 0, %s17, %s15
  $region1: #{tpu_custom_call.1} parent=0
    #allocation3 [shape = 'u8[512]{0}', space=vmem, size = 0x400, scoped, tag = 'input window, operand 3, single buffered']
    #allocation4 [shape = 's32[2]{0}', space=sflag, size = 0x8, scoped, tag = 'scoped memory for tpu_custom_call.1']
    #allocation5 [shape = 's32[2]{0}', space=sflag, size = 0x8, scoped, tag = 'scoped memory for tpu_custom_call.1']
    #allocation6 [shape = 'u8[512]{0}', space=vmem, size = 0x400, scoped, tag = 'input window, operand 5, single buffered']
    #allocation7 [shape = 's32[1]{0}', space=sflag, size = 0x4, scoped, tag = 'scoped memory for tpu_custom_call.1']
    #allocation8 [shape = 'u8[512]{0}', space=vmem, size = 0x400, scoped, tag = 'input window, operand 6, single buffered']
    #allocation9 [shape = 'u8[512]{0}', space=vmem, size = 0x400, scoped, tag = 'input window, operand 7, single buffered']
    #allocation10 [shape = 's32[1]{0}', space=sflag, size = 0x4, scoped, tag = 'scoped memory for tpu_custom_call.1']
    #allocation11 [shape = 'u8[8192]{0}', space=vmem, size = 0x2000, scoped, tag = 'input window, operand 8, single buffered']
    #allocation12 [shape = 'u8[16384]{0}', space=vmem, size = 0x4000, scoped, tag = 'output window, operand 0']
    %19 = vsyncpa [#allocation4], 0
    %20 = vsyncpa [#allocation7], 0
    %21 = vsyncpa [#allocation10], 0
    %22 = vsyncpa [#allocation5], 0
    %s23 = scalar_lea.sflag [#allocation5], 1
    %24 = vsyncpa %s23, 0
    loop: start=0, step=1, limit=4
    $region2: #{tpu_custom_call.1} parent=1 // loop_pre_header
      _
    $region3: #{tpu_custom_call.1} parent=1 // loop_header
      %s26 = sphi 0, %s30
      %p27 = scmp.ge.s32.totalorder %s26, 4
      %s36 = sphi 0, %s38
      %s39 = sphi 0, %s36
      %s40 = sphi 0, %s39
      %s56 = sphi 0, %s40
      %s62 = sphi 0, %s64
      %s65 = sphi 0, %s62
      %s66 = sphi 0, %s65
      %s82 = sphi 0, %s66
      %s86 = sphi 0, %s86
      %s88 = sphi 0, %s86
      %s89 = sphi 0, %s88
      %s103 = sphi 0, %s89
      %s107 = sphi 0, %s107
      %s109 = sphi 0, %s107
      %s110 = sphi 0, %s109
      %s124 = sphi 0, %s110
      %s128 = sphi 0, %s128
      %s130 = sphi 0, %s128
      %s131 = sphi 0, %s130
      %s145 = sphi 0, %s131
      %s149 = sphi 0, %s149
      %s151 = sphi 0, %s149
      %s152 = sphi 0, %s151
      %s166 = sphi 0, %s152
      %s170 = sphi 0, %s170
      %s172 = sphi 0, %s170
      %s173 = sphi 0, %s172
      %s187 = sphi 0, %s173
      %s191 = sphi 0, %s191
      %s193 = sphi 0, %s191
      %s194 = sphi 0, %s193
      %s208 = sphi 0, %s194
      %s212 = sphi 0, %s212
      %s214 = sphi 0, %s212
      %s215 = sphi 0, %s214
      %s229 = sphi 0, %s215
      %s233 = sphi 0, %s233
      %s235 = sphi 0, %s233
      %s236 = sphi 0, %s235
      %s250 = sphi 0, %s236
      %s254 = sphi 0, %s254
      %s256 = sphi 0, %s254
      %s257 = sphi 0, %s256
      %s271 = sphi 0, %s257
      %s275 = sphi 0, %s275
      %s277 = sphi 0, %s275
      %s278 = sphi 0, %s277
      %s292 = sphi 0, %s278
      %s296 = sphi 0, %s296
      %s298 = sphi 0, %s296
      %s299 = sphi 0, %s298
      %s313 = sphi 0, %s299
      %s317 = sphi 0, %s317
      %s319 = sphi 0, %s317
      %s320 = sphi 0, %s319
      %s334 = sphi 0, %s320
      %s340 = sphi 0, %s342
      %s343 = sphi 0, %s340
      %s344 = sphi 0, %s343
      %s360 = sphi 0, %s344
    $region4: #{tpu_custom_call.1} parent=1 // loop_header_branch
      %29 = sbr.rel (%p27) target = $region8
    $region5: #{tpu_custom_call.1} parent=1 // loop_body
      %s31 = ssub.s32 %s26, 1
      %s32 = ssub.s32 %s26, 2
      %s33 = sadd.s32 %s26, 1
      %s34 = ssub.s32 %s26, %s33
      %p35 = scmp.eq.s32.totalorder %s34, 0
      %s37 = sadd.s32 %s36, 1
      %s38 = scalar_select %p35, %s36, %s37
      %p41 = pneg %p35
      %p42 = scmp.eq.s32.totalorder %s26, 1
      %p43 = por %p41, %p42
      %p44 = scmp.ne.s32.totalorder %s36, %s39
      %p45 = scmp.eq.s32.totalorder %s26, 0
      %p46 = por %p44, %p45
      %p47 = scmp.ne.s32.totalorder %s36, %s39
      %p48 = scmp.eq.s32.totalorder %s31, 1
      %p49 = por %p47, %p48
      %p50 = scmp.ne.s32.totalorder %s39, %s40
      %p51 = scmp.eq.s32.totalorder %s31, 0
      %p52 = por %p50, %p51
      %p53 = scmp.ne.s32.totalorder %s39, %s40
      %p54 = scmp.eq.s32.totalorder %s32, 1
      %p55 = por %p53, %p54
      %p57 = scmp.ne.s32.totalorder %s40, %s56
      %p58 = scmp.eq.s32.totalorder %s32, 0
      %p59 = por %p57, %p58
      %s60 = ssub.s32 %s26, %s33
      %p61 = scmp.eq.s32.totalorder %s60, 0
      %s63 = sadd.s32 %s62, 1
      %s64 = scalar_select %p61, %s62, %s63
      %p67 = pneg %p61
      %p68 = scmp.eq.s32.totalorder %s26, 1
      %p69 = por %p67, %p68
      %p70 = scmp.ne.s32.totalorder %s62, %s65
      %p71 = scmp.eq.s32.totalorder %s26, 0
      %p72 = por %p70, %p71
      %p73 = scmp.ne.s32.totalorder %s62, %s65
      %p74 = scmp.eq.s32.totalorder %s31, 1
      %p75 = por %p73, %p74
      %p76 = scmp.ne.s32.totalorder %s65, %s66
      %p77 = scmp.eq.s32.totalorder %s31, 0
      %p78 = por %p76, %p77
      %p79 = scmp.ne.s32.totalorder %s65, %s66
      %p80 = scmp.eq.s32.totalorder %s32, 1
      %p81 = por %p79, %p80
      %p83 = scmp.ne.s32.totalorder %s66, %s82
      %p84 = scmp.eq.s32.totalorder %s32, 0
      %p85 = por %p83, %p84
      %s87 = sadd.s32 %s86, 1
      %p90 = scmp.eq.s32.totalorder %s26, 1
      %p91 = scmp.ne.s32.totalorder %s86, %s88
      %p92 = scmp.eq.s32.totalorder %s26, 0
      %p93 = por %p91, %p92
      %p94 = scmp.ne.s32.totalorder %s86, %s88
      %p95 = scmp.eq.s32.totalorder %s31, 1
      %p96 = por %p94, %p95
      %p97 = scmp.ne.s32.totalorder %s88, %s89
      %p98 = scmp.eq.s32.totalorder %s31, 0
      %p99 = por %p97, %p98
      %p100 = scmp.ne.s32.totalorder %s88, %s89
      %p101 = scmp.eq.s32.totalorder %s32, 1
      %p102 = por %p100, %p101
      %p104 = scmp.ne.s32.totalorder %s89, %s103
      %p105 = scmp.eq.s32.totalorder %s32, 0
      %p106 = por %p104, %p105
      %s108 = sadd.s32 %s107, 1
      %p111 = scmp.eq.s32.totalorder %s26, 1
      %p112 = scmp.ne.s32.totalorder %s107, %s109
      %p113 = scmp.eq.s32.totalorder %s26, 0
      %p114 = por %p112, %p113
      %p115 = scmp.ne.s32.totalorder %s107, %s109
      %p116 = scmp.eq.s32.totalorder %s31, 1
      %p117 = por %p115, %p116
      %p118 = scmp.ne.s32.totalorder %s109, %s110
      %p119 = scmp.eq.s32.totalorder %s31, 0
      %p120 = por %p118, %p119
      %p121 = scmp.ne.s32.totalorder %s109, %s110
      %p122 = scmp.eq.s32.totalorder %s32, 1
      %p123 = por %p121, %p122
      %p125 = scmp.ne.s32.totalorder %s110, %s124
      %p126 = scmp.eq.s32.totalorder %s32, 0
      %p127 = por %p125, %p126
      %s129 = sadd.s32 %s128, 1
      %p132 = scmp.eq.s32.totalorder %s26, 1
      %p133 = scmp.ne.s32.totalorder %s128, %s130
      %p134 = scmp.eq.s32.totalorder %s26, 0
      %p135 = por %p133, %p134
      %p136 = scmp.ne.s32.totalorder %s128, %s130
      %p137 = scmp.eq.s32.totalorder %s31, 1
      %p138 = por %p136, %p137
      %p139 = scmp.ne.s32.totalorder %s130, %s131
      %p140 = scmp.eq.s32.totalorder %s31, 0
      %p141 = por %p139, %p140
      %p142 = scmp.ne.s32.totalorder %s130, %s131
      %p143 = scmp.eq.s32.totalorder %s32, 1
      %p144 = por %p142, %p143
      %p146 = scmp.ne.s32.totalorder %s131, %s145
      %p147 = scmp.eq.s32.totalorder %s32, 0
      %p148 = por %p146, %p147
      %s150 = sadd.s32 %s149, 1
      %p153 = scmp.eq.s32.totalorder %s26, 1
      %p154 = scmp.ne.s32.totalorder %s149, %s151
      %p155 = scmp.eq.s32.totalorder %s26, 0
      %p156 = por %p154, %p155
      %p157 = scmp.ne.s32.totalorder %s149, %s151
      %p158 = scmp.eq.s32.totalorder %s31, 1
      %p159 = por %p157, %p158
      %p160 = scmp.ne.s32.totalorder %s151, %s152
      %p161 = scmp.eq.s32.totalorder %s31, 0
      %p162 = por %p160, %p161
      %p163 = scmp.ne.s32.totalorder %s151, %s152
      %p164 = scmp.eq.s32.totalorder %s32, 1
      %p165 = por %p163, %p164
      %p167 = scmp.ne.s32.totalorder %s152, %s166
      %p168 = scmp.eq.s32.totalorder %s32, 0
      %p169 = por %p167, %p168
      %s171 = sadd.s32 %s170, 1
      %p174 = scmp.eq.s32.totalorder %s26, 1
      %p175 = scmp.ne.s32.totalorder %s170, %s172
      %p176 = scmp.eq.s32.totalorder %s26, 0
      %p177 = por %p175, %p176
      %p178 = scmp.ne.s32.totalorder %s170, %s172
      %p179 = scmp.eq.s32.totalorder %s31, 1
      %p180 = por %p178, %p179
      %p181 = scmp.ne.s32.totalorder %s172, %s173
      %p182 = scmp.eq.s32.totalorder %s31, 0
      %p183 = por %p181, %p182
      %p184 = scmp.ne.s32.totalorder %s172, %s173
      %p185 = scmp.eq.s32.totalorder %s32, 1
      %p186 = por %p184, %p185
      %p188 = scmp.ne.s32.totalorder %s173, %s187
      %p189 = scmp.eq.s32.totalorder %s32, 0
      %p190 = por %p188, %p189
      %s192 = sadd.s32 %s191, 1
      %p195 = scmp.eq.s32.totalorder %s26, 1
      %p196 = scmp.ne.s32.totalorder %s191, %s193
      %p197 = scmp.eq.s32.totalorder %s26, 0
      %p198 = por %p196, %p197
      %p199 = scmp.ne.s32.totalorder %s191, %s193
      %p200 = scmp.eq.s32.totalorder %s31, 1
      %p201 = por %p199, %p200
      %p202 = scmp.ne.s32.totalorder %s193, %s194
      %p203 = scmp.eq.s32.totalorder %s31, 0
      %p204 = por %p202, %p203
      %p205 = scmp.ne.s32.totalorder %s193, %s194
      %p206 = scmp.eq.s32.totalorder %s32, 1
      %p207 = por %p205, %p206
      %p209 = scmp.ne.s32.totalorder %s194, %s208
      %p210 = scmp.eq.s32.totalorder %s32, 0
      %p211 = por %p209, %p210
      %s213 = sadd.s32 %s212, 1
      %p216 = scmp.eq.s32.totalorder %s26, 1
      %p217 = scmp.ne.s32.totalorder %s212, %s214
      %p218 = scmp.eq.s32.totalorder %s26, 0
      %p219 = por %p217, %p218
      %p220 = scmp.ne.s32.totalorder %s212, %s214
      %p221 = scmp.eq.s32.totalorder %s31, 1
      %p222 = por %p220, %p221
      %p223 = scmp.ne.s32.totalorder %s214, %s215
      %p224 = scmp.eq.s32.totalorder %s31, 0
      %p225 = por %p223, %p224
      %p226 = scmp.ne.s32.totalorder %s214, %s215
      %p227 = scmp.eq.s32.totalorder %s32, 1
      %p228 = por %p226, %p227
      %p230 = scmp.ne.s32.totalorder %s215, %s229
      %p231 = scmp.eq.s32.totalorder %s32, 0
      %p232 = por %p230, %p231
      %s234 = sadd.s32 %s233, 1
      %p237 = scmp.eq.s32.totalorder %s26, 1
      %p238 = scmp.ne.s32.totalorder %s233, %s235
      %p239 = scmp.eq.s32.totalorder %s26, 0
      %p240 = por %p238, %p239
      %p241 = scmp.ne.s32.totalorder %s233, %s235
      %p242 = scmp.eq.s32.totalorder %s31, 1
      %p243 = por %p241, %p242
      %p244 = scmp.ne.s32.totalorder %s235, %s236
      %p245 = scmp.eq.s32.totalorder %s31, 0
      %p246 = por %p244, %p245
      %p247 = scmp.ne.s32.totalorder %s235, %s236
      %p248 = scmp.eq.s32.totalorder %s32, 1
      %p249 = por %p247, %p248
      %p251 = scmp.ne.s32.totalorder %s236, %s250
      %p252 = scmp.eq.s32.totalorder %s32, 0
      %p253 = por %p251, %p252
      %s255 = sadd.s32 %s254, 1
      %p258 = scmp.eq.s32.totalorder %s26, 1
      %p259 = scmp.ne.s32.totalorder %s254, %s256
      %p260 = scmp.eq.s32.totalorder %s26, 0
      %p261 = por %p259, %p260
      %p262 = scmp.ne.s32.totalorder %s254, %s256
      %p263 = scmp.eq.s32.totalorder %s31, 1
      %p264 = por %p262, %p263
      %p265 = scmp.ne.s32.totalorder %s256, %s257
      %p266 = scmp.eq.s32.totalorder %s31, 0
      %p267 = por %p265, %p266
      %p268 = scmp.ne.s32.totalorder %s256, %s257
      %p269 = scmp.eq.s32.totalorder %s32, 1
      %p270 = por %p268, %p269
      %p272 = scmp.ne.s32.totalorder %s257, %s271
      %p273 = scmp.eq.s32.totalorder %s32, 0
      %p274 = por %p272, %p273
      %s276 = sadd.s32 %s275, 1
      %p279 = scmp.eq.s32.totalorder %s26, 1
      %p280 = scmp.ne.s32.totalorder %s275, %s277
      %p281 = scmp.eq.s32.totalorder %s26, 0
      %p282 = por %p280, %p281
      %p283 = scmp.ne.s32.totalorder %s275, %s277
      %p284 = scmp.eq.s32.totalorder %s31, 1
      %p285 = por %p283, %p284
      %p286 = scmp.ne.s32.totalorder %s277, %s278
      %p287 = scmp.eq.s32.totalorder %s31, 0
      %p288 = por %p286, %p287
      %p289 = scmp.ne.s32.totalorder %s277, %s278
      %p290 = scmp.eq.s32.totalorder %s32, 1
      %p291 = por %p289, %p290
      %p293 = scmp.ne.s32.totalorder %s278, %s292
      %p294 = scmp.eq.s32.totalorder %s32, 0
      %p295 = por %p293, %p294
      %s297 = sadd.s32 %s296, 1
      %p300 = scmp.eq.s32.totalorder %s26, 1
      %p301 = scmp.ne.s32.totalorder %s296, %s298
      %p302 = scmp.eq.s32.totalorder %s26, 0
      %p303 = por %p301, %p302
      %p304 = scmp.ne.s32.totalorder %s296, %s298
      %p305 = scmp.eq.s32.totalorder %s31, 1
      %p306 = por %p304, %p305
      %p307 = scmp.ne.s32.totalorder %s298, %s299
      %p308 = scmp.eq.s32.totalorder %s31, 0
      %p309 = por %p307, %p308
      %p310 = scmp.ne.s32.totalorder %s298, %s299
      %p311 = scmp.eq.s32.totalorder %s32, 1
      %p312 = por %p310, %p311
      %p314 = scmp.ne.s32.totalorder %s299, %s313
      %p315 = scmp.eq.s32.totalorder %s32, 0
      %p316 = por %p314, %p315
      %s318 = sadd.s32 %s317, 1
      %p321 = scmp.eq.s32.totalorder %s26, 1
      %p322 = scmp.ne.s32.totalorder %s317, %s319
      %p323 = scmp.eq.s32.totalorder %s26, 0
      %p324 = por %p322, %p323
      %p325 = scmp.ne.s32.totalorder %s317, %s319
      %p326 = scmp.eq.s32.totalorder %s31, 1
      %p327 = por %p325, %p326
      %p328 = scmp.ne.s32.totalorder %s319, %s320
      %p329 = scmp.eq.s32.totalorder %s31, 0
      %p330 = por %p328, %p329
      %p331 = scmp.ne.s32.totalorder %s319, %s320
      %p332 = scmp.eq.s32.totalorder %s32, 1
      %p333 = por %p331, %p332
      %p335 = scmp.ne.s32.totalorder %s320, %s334
      %p336 = scmp.eq.s32.totalorder %s32, 0
      %p337 = por %p335, %p336
      %s338 = ssub.s32 %s26, %s33
      %p339 = scmp.eq.s32.totalorder %s338, 0
      %s341 = sadd.s32 %s340, 1
      %s342 = scalar_select %p339, %s340, %s341
      %p345 = pneg %p339
      %p346 = scmp.eq.s32.totalorder %s26, 1
      %p347 = por %p345, %p346
      %p348 = scmp.ne.s32.totalorder %s340, %s343
      %p349 = scmp.eq.s32.totalorder %s26, 0
      %p350 = por %p348, %p349
      %p351 = scmp.ne.s32.totalorder %s340, %s343
      %p352 = scmp.eq.s32.totalorder %s31, 1
      %p353 = por %p351, %p352
      %p354 = scmp.ne.s32.totalorder %s343, %s344
      %p355 = scmp.eq.s32.totalorder %s31, 0
      %p356 = por %p354, %p355
      %p357 = scmp.ne.s32.totalorder %s343, %s344
      %p358 = scmp.eq.s32.totalorder %s32, 1
      %p359 = por %p357, %p358
      %p361 = scmp.ne.s32.totalorder %s344, %s360
      %p362 = scmp.eq.s32.totalorder %s32, 0
      %p363 = por %p361, %p362
      %p364 = scmp.le.s32.totalorder 1, %s26
      %p365 = scmp.lt.s32.totalorder %s26, 3
      %p366 = pnand %p364, %p365
      %p367 = pneg %p366
      // Predicated region
      $region9: #{tpu_custom_call.1} parent=5 // pred_check
        _
      $region10: #{tpu_custom_call.1} parent=5 // pred_check_branch
        %369 = sbr.rel (%p366) target = $region12
      $region11: #{tpu_custom_call.1} parent=5 // pred_region
        %s370 = ssub.s32 %s26, 1
        // Predicated region
        $region13: #{tpu_custom_call.1} parent=11 // pred_check
          %p371 = pneg %p99
        $region14: #{tpu_custom_call.1} parent=11 // pred_check_branch
          %373 = sbr.rel (%p371) target = $region16
        $region15: #{tpu_custom_call.1} parent=11 // pred_region
          _
        $region16: #{tpu_custom_call.1} parent=11 // pred_fallthru
          _
        // Predicated region
        $region17: #{tpu_custom_call.1} parent=11 // pred_check
          %p374 = pneg %p120
        $region18: #{tpu_custom_call.1} parent=11 // pred_check_branch
          %376 = sbr.rel (%p374) target = $region20
        $region19: #{tpu_custom_call.1} parent=11 // pred_region
          %s378 = ssub.s32 16, 16
          %379 = vsyncadd [#allocation4], %s378
          %s381 = sshll.u32 [#allocation3], 4
          %s382 = int_to_ptr.vmem [resolvable:$true] %s381
          %384 = dma.hbm_to_vmem [thread:$0]  %s3, 16, %s382, [#allocation4]
        $region20: #{tpu_custom_call.1} parent=11 // pred_fallthru
          _
        // Predicated region
        $region21: #{tpu_custom_call.1} parent=11 // pred_check
          %p385 = pneg %p141
        $region22: #{tpu_custom_call.1} parent=11 // pred_check_branch
          %387 = sbr.rel (%p385) target = $region24
        $region23: #{tpu_custom_call.1} parent=11 // pred_region
          _
        $region24: #{tpu_custom_call.1} parent=11 // pred_fallthru
          _
        // Predicated region
        $region25: #{tpu_custom_call.1} parent=11 // pred_check
          %p388 = pneg %p162
        $region26: #{tpu_custom_call.1} parent=11 // pred_check_branch
          %390 = sbr.rel (%p388) target = $region28
        $region27: #{tpu_custom_call.1} parent=11 // pred_region
          %s392 = ssub.s32 16, 16
          %393 = vsyncadd [#allocation7], %s392
          %s395 = sshll.u32 [#allocation6], 4
          %s396 = int_to_ptr.vmem [resolvable:$true] %s395
          %398 = dma.hbm_to_vmem [thread:$0]  %s5, 16, %s396, [#allocation7]
        $region28: #{tpu_custom_call.1} parent=11 // pred_fallthru
          _
        // Predicated region
        $region29: #{tpu_custom_call.1} parent=11 // pred_check
          %p399 = pneg %p183
        $region30: #{tpu_custom_call.1} parent=11 // pred_check_branch
          %401 = sbr.rel (%p399) target = $region32
        $region31: #{tpu_custom_call.1} parent=11 // pred_region
          %s403 = ssub.s32 16, 16
          %404 = vsyncadd [#allocation7], %s403
          %s406 = sshll.u32 [#allocation8], 4
          %s407 = int_to_ptr.vmem [resolvable:$true] %s406
          %409 = dma.hbm_to_vmem [thread:$0]  %s6, 16, %s407, [#allocation7]
        $region32: #{tpu_custom_call.1} parent=11 // pred_fallthru
          _
        // Predicated region
        $region33: #{tpu_custom_call.1} parent=11 // pred_check
          %p410 = pneg %p204
        $region34: #{tpu_custom_call.1} parent=11 // pred_check_branch
          %412 = sbr.rel (%p410) target = $region36
        $region35: #{tpu_custom_call.1} parent=11 // pred_region
          %s414 = ssub.s32 16, 16
          %415 = vsyncadd [#allocation10], %s414
          %s417 = sshll.u32 [#allocation9], 4
          %s418 = int_to_ptr.vmem [resolvable:$true] %s417
          %420 = dma.hbm_to_vmem [thread:$0]  %s7, 16, %s418, [#allocation10]
        $region36: #{tpu_custom_call.1} parent=11 // pred_fallthru
          _
        // Predicated region
        $region37: #{tpu_custom_call.1} parent=11 // pred_check
          %p421 = pneg %p225
        $region38: #{tpu_custom_call.1} parent=11 // pred_check_branch
          %423 = sbr.rel (%p421) target = $region40
        $region39: #{tpu_custom_call.1} parent=11 // pred_region
          %s425 = ssub.s32 256, 256
          %426 = vsyncadd [#allocation10], %s425
          %s427 = sshll.u32 [#allocation11], 4
          %s428 = int_to_ptr.vmem [resolvable:$true] %s427
          %433 = dma.hbm_to_vmem [thread:$0]  %s8, 256, %s428, [#allocation10], 64, 64, 4
        $region40: #{tpu_custom_call.1} parent=11 // pred_fallthru
          _
        // Predicated region
        $region41: #{tpu_custom_call.1} parent=11 // pred_check
          %p434 = pneg %p246
        $region42: #{tpu_custom_call.1} parent=11 // pred_check_branch
          %436 = sbr.rel (%p434) target = $region44
        $region43: #{tpu_custom_call.1} parent=11 // pred_region
          _
        $region44: #{tpu_custom_call.1} parent=11 // pred_fallthru
          _
        // Predicated region
        $region45: #{tpu_custom_call.1} parent=11 // pred_check
          %p437 = pneg %p267
        $region46: #{tpu_custom_call.1} parent=11 // pred_check_branch
          %439 = sbr.rel (%p437) target = $region48
        $region47: #{tpu_custom_call.1} parent=11 // pred_region
          _
        $region48: #{tpu_custom_call.1} parent=11 // pred_fallthru
          _
        // Predicated region
        $region49: #{tpu_custom_call.1} parent=11 // pred_check
          %p440 = pneg %p288
        $region50: #{tpu_custom_call.1} parent=11 // pred_check_branch
          %442 = sbr.rel (%p440) target = $region52
        $region51: #{tpu_custom_call.1} parent=11 // pred_region
          _
        $region52: #{tpu_custom_call.1} parent=11 // pred_fallthru
          _
        // Predicated region
        $region53: #{tpu_custom_call.1} parent=11 // pred_check
          %p443 = pneg %p309
        $region54: #{tpu_custom_call.1} parent=11 // pred_check_branch
          %445 = sbr.rel (%p443) target = $region56
        $region55: #{tpu_custom_call.1} parent=11 // pred_region
          _
        $region56: #{tpu_custom_call.1} parent=11 // pred_fallthru
          _
        // Predicated region
        $region57: #{tpu_custom_call.1} parent=11 // pred_check
          %p446 = pneg %p330
        $region58: #{tpu_custom_call.1} parent=11 // pred_check_branch
          %448 = sbr.rel (%p446) target = $region60
        $region59: #{tpu_custom_call.1} parent=11 // pred_region
          _
        $region60: #{tpu_custom_call.1} parent=11 // pred_fallthru
          _
      $region12: #{tpu_custom_call.1} parent=5 // pred_fallthru
        _
      %p449 = scmp.lt.s32.totalorder %s26, 2
      // Predicated region
      $region61: #{tpu_custom_call.1} parent=5 // pred_check
        %p450 = pneg %p449
      $region62: #{tpu_custom_call.1} parent=5 // pred_check_branch
        %452 = sbr.rel (%p450) target = $region64
      $region63: #{tpu_custom_call.1} parent=5 // pred_region
        // Predicated region
        $region65: #{tpu_custom_call.1} parent=63 // pred_check
          %p453 = pneg %p46
        $region66: #{tpu_custom_call.1} parent=63 // pred_check_branch
          %455 = sbr.rel (%p453) target = $region68
        $region67: #{tpu_custom_call.1} parent=63 // pred_region
          %s456 = smul.u32 2, %s26
          %p457 = scmp.lt.s32.totalorder %s456, 3
          %s458 = scalar_select %p457, %s456, 3
          %s459 = smul.addr %s458, 8
          %s460 = scalar_lea.vmem %s0, %s459
          %s461 = smul.u32 2, %s26
        $region68: #{tpu_custom_call.1} parent=63 // pred_fallthru
          _
        // Predicated region
        $region69: #{tpu_custom_call.1} parent=63 // pred_check
          %p462 = pneg %p72
        $region70: #{tpu_custom_call.1} parent=63 // pred_check_branch
          %464 = sbr.rel (%p462) target = $region72
        $region71: #{tpu_custom_call.1} parent=63 // pred_region
          %s465 = smul.u32 2, %s26
          %p466 = scmp.lt.s32.totalorder %s465, 3
          %s467 = scalar_select %p466, %s465, 3
          %s468 = scalar_lea.vmem %s1, %s467
          %s469 = smul.u32 2, %s26
        $region72: #{tpu_custom_call.1} parent=63 // pred_fallthru
          _
      $region64: #{tpu_custom_call.1} parent=5 // pred_fallthru
        _
      %p470 = scmp.le.s32.totalorder 1, %s26
      %p471 = scmp.lt.s32.totalorder %s26, 3
      %p472 = pnand %p470, %p471
      %p473 = pneg %p472
      // Predicated region
      $region73: #{tpu_custom_call.1} parent=5 // pred_check
        _
      $region74: #{tpu_custom_call.1} parent=5 // pred_check_branch
        %475 = sbr.rel (%p472) target = $region76
      $region75: #{tpu_custom_call.1} parent=5 // pred_region
        %s476 = ssub.s32 %s26, 1
        // Predicated region
        $region77: #{tpu_custom_call.1} parent=75 // pred_check
          %p477 = pneg %p120
        $region78: #{tpu_custom_call.1} parent=75 // pred_check_branch
          %479 = sbr.rel (%p477) target = $region80
        $region79: #{tpu_custom_call.1} parent=75 // pred_region
          %480 = dma.done [#allocation4], 16
        $region80: #{tpu_custom_call.1} parent=75 // pred_fallthru
          _
        // Predicated region
        $region81: #{tpu_custom_call.1} parent=75 // pred_check
          %p481 = pneg %p162
        $region82: #{tpu_custom_call.1} parent=75 // pred_check_branch
          %483 = sbr.rel (%p481) target = $region84
        $region83: #{tpu_custom_call.1} parent=75 // pred_region
          %484 = dma.done [#allocation7], 16
        $region84: #{tpu_custom_call.1} parent=75 // pred_fallthru
          _
        // Predicated region
        $region85: #{tpu_custom_call.1} parent=75 // pred_check
          %p485 = pneg %p183
        $region86: #{tpu_custom_call.1} parent=75 // pred_check_branch
          %487 = sbr.rel (%p485) target = $region88
        $region87: #{tpu_custom_call.1} parent=75 // pred_region
          %488 = dma.done [#allocation7], 16
        $region88: #{tpu_custom_call.1} parent=75 // pred_fallthru
          _
        // Predicated region
        $region89: #{tpu_custom_call.1} parent=75 // pred_check
          %p489 = pneg %p204
        $region90: #{tpu_custom_call.1} parent=75 // pred_check_branch
          %491 = sbr.rel (%p489) target = $region92
        $region91: #{tpu_custom_call.1} parent=75 // pred_region
          %492 = dma.done [#allocation10], 16
        $region92: #{tpu_custom_call.1} parent=75 // pred_fallthru
          _
        // Predicated region
        $region93: #{tpu_custom_call.1} parent=75 // pred_check
          %p493 = pneg %p225
        $region94: #{tpu_custom_call.1} parent=75 // pred_check_branch
          %495 = sbr.rel (%p493) target = $region96
        $region95: #{tpu_custom_call.1} parent=75 // pred_region
          %496 = dma.done [#allocation10], 256
        $region96: #{tpu_custom_call.1} parent=75 // pred_fallthru
          _
        %s497 = smul.u32 2, %s31
        %p498 = scmp.lt.s32.totalorder %s497, 3
        %s499 = scalar_select %p498, %s497, 3
        %s500 = smul.addr %s499, 8
        %s501 = scalar_lea.vmem %s0, %s500
        %p502 = pneg %p52
        %p503 = pneg %p49
        %s504 = smul.u32 2, %s31
        %p505 = scmp.lt.s32.totalorder %s504, 3
        %s506 = scalar_select %p505, %s504, 3
        %s507 = scalar_lea.vmem %s1, %s506
        %p508 = pneg %p78
        %p509 = pneg %p75
        %p510 = pneg %p99
        %p511 = pneg %p96
        %p512 = pneg %p120
        %p513 = pneg %p117
        %p514 = pneg %p141
        %p515 = pneg %p138
        %p516 = pneg %p162
        %p517 = pneg %p159
        %p518 = pneg %p183
        %p519 = pneg %p180
        %p520 = pneg %p204
        %p521 = pneg %p201
        %p522 = pneg %p225
        %p523 = pneg %p222
        %p524 = pneg %p246
        %p525 = pneg %p243
        %p526 = pneg %p267
        %p527 = pneg %p264
        %p528 = pneg %p288
        %p529 = pneg %p285
        %p530 = pneg %p309
        %p531 = pneg %p306
        %p532 = pneg %p330
        %p533 = pneg %p327
        %p534 = pneg %p356
        %p535 = pneg %p353
        %s536 = sand.u32 %s343, 1
        %s537 = scalar_lea.sflag [#allocation5], %s536
        %s538 = sand.u32 %s343, 1
        %s539 = smul.addr %s538, 16
        %s540 = scalar_lea.vmem [#allocation12], %s539
        %s541 = smul.u32 2, %s31
        %p542 = scmp.lt.s32.totalorder %s541, 3
        %s543 = scalar_select %p542, %s541, 3
        %s544 = smul.addr %s543, 8
        %s545 = scalar_lea.vmem %s0, %s544
        %s546 = smul.u32 2, %s31
        %s547 = smul.u32 2, %s31
        %p548 = scmp.lt.s32.totalorder %s547, 3
        %s549 = scalar_select %p548, %s547, 3
        %s550 = scalar_lea.vmem %s1, %s549
        %s551 = smul.u32 2, %s31
        %s552 = smul.u32 2, %s31
        %v554 = vld [vmem:[%s545] sm:$0xff]
        %v555 = vld [vmem:[%s545 + $0x8] sm:$0xff]
        %v556 = vpack.c.bf16 %v555, %v554
        %v557 = vld [vmem:[%s2] sm:$0xf]
        %v558 = vld [vmem:[%s2 + $0x4] sm:$0xf]
        %v559 = vld [vmem:[%s2 + $0x8] sm:$0xf]
        %v560 = vld [vmem:[%s2 + $0xc] sm:$0xf]
        %v561 = vld [vmem:[#allocation3] sm:$0x1]
        %v563 = vlaneseq
        %v564 = vshrl.u32 %v563, 7
        %v565 = vsub.s32 0, %v564
        %v566 = vrot.slane %v561, %v565
        %v572 = vunpack.c.l.b16 %v557
        %v573 = vunpack.c.l.b16 %v558
        %v574 = vunpack.c.l.b16 %v559
        %v575 = vunpack.c.l.b16 %v560
        %v576 = vpack.c.b16 %v573, %v572
        %v577 = vpack.c.b16 %v575, %v574
        %vm580 = vcmask 261120
        %v582 = vsel %vm580, %v556, 0
        %584 = vmatprep.subr.bf16.mxu0 0
        %585 = vmatpush1.bf16.msra.mxu0 %v576
        %586 = vmatprep.subr.bf16.mxu0 0
        %587 = vmatpush1.bf16.msra.mxu0 %v577
        %588 = vmatprep.subr.bf16.mxu0 0
        %589 = vmatpush1.bf16.msra.mxu0 0
        %590 = vmatprep.subr.bf16.mxu0 0
        %591 = vmatpush1.bf16.msra.mxu0 0
        %592 = vmatprep.subr.bf16.mxu0 0
        %593 = vmatpush1.bf16.msra.mxu0 0
        %594 = vmatprep.subr.bf16.mxu0 0
        %595 = vmatpush1.bf16.msra.mxu0 0
        %596 = vmatprep.subr.bf16.mxu0 0
        %597 = vmatpush1.bf16.msra.mxu0 0
        %598 = vmatprep.subr.bf16.mxu0 0
        %599 = vmatpush1.bf16.msra.mxu0 0
        %600 = vmatprep.subr.bf16.mxu0 0
        %601 = vmatpush1.bf16.msra.mxu0 0
        %602 = vmatprep.subr.bf16.mxu0 0
        %603 = vmatpush1.bf16.msra.mxu0 0
        %604 = vmatprep.subr.bf16.mxu0 0
        %605 = vmatpush1.bf16.msra.mxu0 0
        %606 = vmatprep.subr.bf16.mxu0 0
        %607 = vmatpush1.bf16.msra.mxu0 0
        %608 = vmatprep.subr.bf16.mxu0 0
        %609 = vmatpush1.bf16.msra.mxu0 0
        %610 = vmatprep.subr.bf16.mxu0 0
        %611 = vmatpush1.bf16.msra.mxu0 0
        %612 = vmatprep.subr.bf16.mxu0 0
        %613 = vmatpush1.bf16.msra.mxu0 0
        %614 = vmatprep.subr.bf16.mxu0 0
        %615 = vmatpush1.bf16.msra.mxu0 0
        %616 = vmatprep.mubr.bf16.mxu0 0
        %617 = vmatmul.mubr.bf16.gmra.mrb[0].mxu0 %v582
        %v618 = vpop.f32.mrb[0].mxu0
        %v619 = vadd.f32 %v566, %v618
        %v620 = vpop.f32.mrb[0].mxu0
        %v621 = vpop.f32.mrb[0].mxu0
        %v622 = vadd.f32 %v566, %v621
        %v623 = vpop.f32.mrb[0].mxu0
        %624 = vdwg.mxu0
        %626 = vrot.lane.b32.xlu0 %v619, 120
        %v627 = vpop.permute.xlu0 %626
        %629 = vrot.lane.b32.xlu0 %v619, 112
        %v630 = vpop.permute.xlu0 %629
        %632 = vrot.lane.b32.xlu0 %v619, 104
        %v633 = vpop.permute.xlu0 %632
        %v635 = vcombine.low %v619, %v630
        %v636 = vcombine.high %v619, %v630
        %v638 = vunpack.c.l.s4 1983009808
        %v639 = vunpack.c.0.s8 %v638
        %v640 = vlaneseq
        %v641 = vshrl.u32 %v640, 7
        %v642 = vsub.s32 %v639, %v641
        %v643 = vrot.slane %v635, %v642
        %v645 = vunpack.c.l.s4 1983009808
        %v646 = vunpack.c.0.s8 %v645
        %v647 = vlaneseq
        %v648 = vshrl.u32 %v647, 7
        %v649 = vsub.s32 %v646, %v648
        %v650 = vrot.slane %v636, %v649
        %v651 = vcombine.low %v627, %v633
        %v652 = vcombine.high %v627, %v633
        %v654 = vunpack.c.l.s4 1983009808
        %v655 = vunpack.c.0.s8 %v654
        %v656 = vlaneseq
        %v657 = vshrl.u32 %v656, 7
        %v658 = vsub.s32 %v655, %v657
        %v659 = vrot.slane %v651, %v658
        %v661 = vunpack.c.l.s4 1983009808
        %v662 = vunpack.c.0.s8 %v661
        %v663 = vlaneseq
        %v664 = vshrl.u32 %v663, 7
        %v665 = vsub.s32 %v662, %v664
        %v666 = vrot.slane %v652, %v665
        %v667 = vcombine.low %v643, %v659
        %v668 = vcombine.high %v643, %v659
        %v670 = vunpack.c.l.s4 1934713408
        %v671 = vunpack.c.0.s8 %v670
        %v672 = vlaneseq
        %v673 = vshrl.u32 %v672, 7
        %v674 = vsub.s32 %v671, %v673
        %v675 = vrot.slane %v667, %v674
        %v677 = vunpack.c.l.s4 1934713408
        %v678 = vunpack.c.0.s8 %v677
        %v679 = vlaneseq
        %v680 = vshrl.u32 %v679, 7
        %v681 = vsub.s32 %v678, %v680
        %v682 = vrot.slane %v668, %v681
        %v683 = vcombine.low %v650, %v666
        %v684 = vcombine.high %v650, %v666
        %v686 = vunpack.c.l.s4 1934713408
        %v687 = vunpack.c.0.s8 %v686
        %v688 = vlaneseq
        %v689 = vshrl.u32 %v688, 7
        %v690 = vsub.s32 %v687, %v689
        %v691 = vrot.slane %v683, %v690
        %v693 = vunpack.c.l.s4 1934713408
        %v694 = vunpack.c.0.s8 %v693
        %v695 = vlaneseq
        %v696 = vshrl.u32 %v695, 7
        %v697 = vsub.s32 %v694, %v696
        %v698 = vrot.slane %v684, %v697
        %v699 = vcombine.high %v675, 0.0
        %v700 = vcombine.high %v682, 0.0
        %v701 = vcombine.high %v691, 0.0
        %v702 = vcombine.high %v698, 0.0
        %v703 = vcombine.low %v675, %v682
        %v705 = vunpack.c.l.s4 1983009808
        %v706 = vunpack.c.0.s8 %v705
        %v707 = vlaneseq
        %v708 = vshrl.u32 %v707, 7
        %v709 = vsub.s32 %v706, %v708
        %v710 = vrot.slane %v703, %v709
        %v711 = vcombine.low %v699, %v700
        %v713 = vunpack.c.l.s4 1983009808
        %v714 = vunpack.c.0.s8 %v713
        %v715 = vlaneseq
        %v716 = vshrl.u32 %v715, 7
        %v717 = vsub.s32 %v714, %v716
        %v718 = vrot.slane %v711, %v717
        %v719 = vcombine.low %v691, %v698
        %v721 = vunpack.c.l.s4 1983009808
        %v722 = vunpack.c.0.s8 %v721
        %v723 = vlaneseq
        %v724 = vshrl.u32 %v723, 7
        %v725 = vsub.s32 %v722, %v724
        %v726 = vrot.slane %v719, %v725
        %v727 = vcombine.low %v701, %v702
        %v729 = vunpack.c.l.s4 1983009808
        %v730 = vunpack.c.0.s8 %v729
        %v731 = vlaneseq
        %v732 = vshrl.u32 %v731, 7
        %v733 = vsub.s32 %v730, %v732
        %v734 = vrot.slane %v727, %v733
        %v735 = vcombine.low %v710, %v718
        %v736 = vcombine.high %v710, %v718
        %v738 = vunpack.c.l.s4 1934713408
        %v739 = vunpack.c.0.s8 %v738
        %v740 = vlaneseq
        %v741 = vshrl.u32 %v740, 7
        %v742 = vsub.s32 %v739, %v741
        %v743 = vrot.slane %v735, %v742
        %v745 = vunpack.c.l.s4 1934713408
        %v746 = vunpack.c.0.s8 %v745
        %v747 = vlaneseq
        %v748 = vshrl.u32 %v747, 7
        %v749 = vsub.s32 %v746, %v748
        %v750 = vrot.slane %v736, %v749
        %v751 = vcombine.low %v726, %v734
        %v752 = vcombine.high %v726, %v734
        %v754 = vunpack.c.l.s4 1934713408
        %v755 = vunpack.c.0.s8 %v754
        %v756 = vlaneseq
        %v757 = vshrl.u32 %v756, 7
        %v758 = vsub.s32 %v755, %v757
        %v759 = vrot.slane %v751, %v758
        %v761 = vunpack.c.l.s4 1934713408
        %v762 = vunpack.c.0.s8 %v761
        %v763 = vlaneseq
        %v764 = vshrl.u32 %v763, 7
        %v765 = vsub.s32 %v762, %v764
        %v766 = vrot.slane %v752, %v765
        %v767 = vcombine.low %v743, %v759
        %v768 = vcombine.high %v743, %v759
        %v769 = vcombine.low %v750, %v766
        %v770 = vcombine.high %v750, %v766
        %v771 = vpack.c.bf16 %v767, %v767
        %v772 = vpack.c.bf16 %v768, %v768
        %v773 = vpack.c.bf16 %v769, %v769
        %v774 = vpack.c.bf16 %v770, %v770
        %775 = vrot.lane.b32.xlu0 %v619, 96
        %v776 = vpop.permute.xlu0 %775
        %777 = vrot.lane.b32.xlu0 %v627, 96
        %v778 = vpop.permute.xlu0 %777
        %779 = vrot.lane.b32.xlu0 %v630, 96
        %v780 = vpop.permute.xlu0 %779
        %781 = vrot.lane.b32.xlu0 %v633, 96
        %v782 = vpop.permute.xlu0 %781
        %v787 = vcombine.low %v776, %v780
        %v788 = vcombine.high %v776, %v780
        %v790 = vunpack.c.l.s4 1983009808
        %v791 = vunpack.c.0.s8 %v790
        %v792 = vlaneseq
        %v793 = vshrl.u32 %v792, 7
        %v794 = vsub.s32 %v791, %v793
        %v795 = vrot.slane %v787, %v794
        %v797 = vunpack.c.l.s4 1983009808
        %v798 = vunpack.c.0.s8 %v797
        %v799 = vlaneseq
        %v800 = vshrl.u32 %v799, 7
        %v801 = vsub.s32 %v798, %v800
        %v802 = vrot.slane %v788, %v801
        %v803 = vcombine.low %v778, %v782
        %v804 = vcombine.high %v778, %v782
        %v806 = vunpack.c.l.s4 1983009808
        %v807 = vunpack.c.0.s8 %v806
        %v808 = vlaneseq
        %v809 = vshrl.u32 %v808, 7
        %v810 = vsub.s32 %v807, %v809
        %v811 = vrot.slane %v803, %v810
        %v813 = vunpack.c.l.s4 1983009808
        %v814 = vunpack.c.0.s8 %v813
        %v815 = vlaneseq
        %v816 = vshrl.u32 %v815, 7
        %v817 = vsub.s32 %v814, %v816
        %v818 = vrot.slane %v804, %v817
        %v819 = vcombine.low %v795, %v811
        %v820 = vcombine.high %v795, %v811
        %v822 = vunpack.c.l.s4 1934713408
        %v823 = vunpack.c.0.s8 %v822
        %v824 = vlaneseq
        %v825 = vshrl.u32 %v824, 7
        %v826 = vsub.s32 %v823, %v825
        %v827 = vrot.slane %v819, %v826
        %v829 = vunpack.c.l.s4 1934713408
        %v830 = vunpack.c.0.s8 %v829
        %v831 = vlaneseq
        %v832 = vshrl.u32 %v831, 7
        %v833 = vsub.s32 %v830, %v832
        %v834 = vrot.slane %v820, %v833
        %v835 = vcombine.low %v802, %v818
        %v836 = vcombine.high %v802, %v818
        %v838 = vunpack.c.l.s4 1934713408
        %v839 = vunpack.c.0.s8 %v838
        %v840 = vlaneseq
        %v841 = vshrl.u32 %v840, 7
        %v842 = vsub.s32 %v839, %v841
        %v843 = vrot.slane %v835, %v842
        %v845 = vunpack.c.l.s4 1934713408
        %v846 = vunpack.c.0.s8 %v845
        %v847 = vlaneseq
        %v848 = vshrl.u32 %v847, 7
        %v849 = vsub.s32 %v846, %v848
        %v850 = vrot.slane %v836, %v849
        %v851 = vcombine.high %v827, 0.0
        %v852 = vcombine.high %v834, 0.0
        %v853 = vcombine.high %v843, 0.0
        %v854 = vcombine.high %v850, 0.0
        %v855 = vcombine.low %v827, %v834
        %v857 = vunpack.c.l.s4 1983009808
        %v858 = vunpack.c.0.s8 %v857
        %v859 = vlaneseq
        %v860 = vshrl.u32 %v859, 7
        %v861 = vsub.s32 %v858, %v860
        %v862 = vrot.slane %v855, %v861
        %v863 = vcombine.low %v851, %v852
        %v865 = vunpack.c.l.s4 1983009808
        %v866 = vunpack.c.0.s8 %v865
        %v867 = vlaneseq
        %v868 = vshrl.u32 %v867, 7
        %v869 = vsub.s32 %v866, %v868
        %v870 = vrot.slane %v863, %v869
        %v871 = vcombine.low %v843, %v850
        %v873 = vunpack.c.l.s4 1983009808
        %v874 = vunpack.c.0.s8 %v873
        %v875 = vlaneseq
        %v876 = vshrl.u32 %v875, 7
        %v877 = vsub.s32 %v874, %v876
        %v878 = vrot.slane %v871, %v877
        %v879 = vcombine.low %v853, %v854
        %v881 = vunpack.c.l.s4 1983009808
        %v882 = vunpack.c.0.s8 %v881
        %v883 = vlaneseq
        %v884 = vshrl.u32 %v883, 7
        %v885 = vsub.s32 %v882, %v884
        %v886 = vrot.slane %v879, %v885
        %v887 = vcombine.low %v862, %v870
        %v888 = vcombine.high %v862, %v870
        %v890 = vunpack.c.l.s4 1934713408
        %v891 = vunpack.c.0.s8 %v890
        %v892 = vlaneseq
        %v893 = vshrl.u32 %v892, 7
        %v894 = vsub.s32 %v891, %v893
        %v895 = vrot.slane %v887, %v894
        %v897 = vunpack.c.l.s4 1934713408
        %v898 = vunpack.c.0.s8 %v897
        %v899 = vlaneseq
        %v900 = vshrl.u32 %v899, 7
        %v901 = vsub.s32 %v898, %v900
        %v902 = vrot.slane %v888, %v901
        %v903 = vcombine.low %v878, %v886
        %v904 = vcombine.high %v878, %v886
        %v906 = vunpack.c.l.s4 1934713408
        %v907 = vunpack.c.0.s8 %v906
        %v908 = vlaneseq
        %v909 = vshrl.u32 %v908, 7
        %v910 = vsub.s32 %v907, %v909
        %v911 = vrot.slane %v903, %v910
        %v913 = vunpack.c.l.s4 1934713408
        %v914 = vunpack.c.0.s8 %v913
        %v915 = vlaneseq
        %v916 = vshrl.u32 %v915, 7
        %v917 = vsub.s32 %v914, %v916
        %v918 = vrot.slane %v904, %v917
        %v919 = vcombine.low %v895, %v911
        %v920 = vcombine.high %v895, %v911
        %v921 = vcombine.low %v902, %v918
        %v922 = vcombine.high %v902, %v918
        %v923 = vpack.c.bf16 %v919, %v919
        %v924 = vpack.c.bf16 %v920, %v920
        %v925 = vpack.c.bf16 %v921, %v921
        %v926 = vpack.c.bf16 %v922, %v922
        %927 = vrot.lane.b32.xlu0 %v619, 64
        %v928 = vpop.permute.xlu0 %927
        %929 = vrot.lane.b32.xlu0 %v627, 64
        %v930 = vpop.permute.xlu0 %929
        %931 = vrot.lane.b32.xlu0 %v630, 64
        %v932 = vpop.permute.xlu0 %931
        %933 = vrot.lane.b32.xlu0 %v633, 64
        %v934 = vpop.permute.xlu0 %933
        %v939 = vcombine.low %v928, %v932
        %v940 = vcombine.high %v928, %v932
        %v942 = vunpack.c.l.s4 1983009808
        %v943 = vunpack.c.0.s8 %v942
        %v944 = vlaneseq
        %v945 = vshrl.u32 %v944, 7
        %v946 = vsub.s32 %v943, %v945
        %v947 = vrot.slane %v939, %v946
        %v949 = vunpack.c.l.s4 1983009808
        %v950 = vunpack.c.0.s8 %v949
        %v951 = vlaneseq
        %v952 = vshrl.u32 %v951, 7
        %v953 = vsub.s32 %v950, %v952
        %v954 = vrot.slane %v940, %v953
        %v955 = vcombine.low %v930, %v934
        %v956 = vcombine.high %v930, %v934
        %v958 = vunpack.c.l.s4 1983009808
        %v959 = vunpack.c.0.s8 %v958
        %v960 = vlaneseq
        %v961 = vshrl.u32 %v960, 7
        %v962 = vsub.s32 %v959, %v961
        %v963 = vrot.slane %v955, %v962
        %v965 = vunpack.c.l.s4 1983009808
        %v966 = vunpack.c.0.s8 %v965
        %v967 = vlaneseq
        %v968 = vshrl.u32 %v967, 7
        %v969 = vsub.s32 %v966, %v968
        %v970 = vrot.slane %v956, %v969
        %v971 = vcombine.low %v947, %v963
        %v972 = vcombine.high %v947, %v963
        %v974 = vunpack.c.l.s4 1934713408
        %v975 = vunpack.c.0.s8 %v974
        %v976 = vlaneseq
        %v977 = vshrl.u32 %v976, 7
        %v978 = vsub.s32 %v975, %v977
        %v979 = vrot.slane %v971, %v978
        %v981 = vunpack.c.l.s4 1934713408
        %v982 = vunpack.c.0.s8 %v981
        %v983 = vlaneseq
        %v984 = vshrl.u32 %v983, 7
        %v985 = vsub.s32 %v982, %v984
        %v986 = vrot.slane %v972, %v985
        %v987 = vcombine.low %v954, %v970
        %v988 = vcombine.high %v954, %v970
        %v990 = vunpack.c.l.s4 1934713408
        %v991 = vunpack.c.0.s8 %v990
        %v992 = vlaneseq
        %v993 = vshrl.u32 %v992, 7
        %v994 = vsub.s32 %v991, %v993
        %v995 = vrot.slane %v987, %v994
        %v997 = vunpack.c.l.s4 1934713408
        %v998 = vunpack.c.0.s8 %v997
        %v999 = vlaneseq
        %v1000 = vshrl.u32 %v999, 7
        %v1001 = vsub.s32 %v998, %v1000
        %v1002 = vrot.slane %v988, %v1001
        %v1003 = vcombine.high %v979, 0.0
        %v1004 = vcombine.high %v986, 0.0
        %v1005 = vcombine.high %v995, 0.0
        %v1006 = vcombine.high %v1002, 0.0
        %v1007 = vcombine.low %v979, %v986
        %v1009 = vunpack.c.l.s4 1983009808
        %v1010 = vunpack.c.0.s8 %v1009
        %v1011 = vlaneseq
        %v1012 = vshrl.u32 %v1011, 7
        %v1013 = vsub.s32 %v1010, %v1012
        %v1014 = vrot.slane %v1007, %v1013
        %v1015 = vcombine.low %v1003, %v1004
        %v1017 = vunpack.c.l.s4 1983009808
        %v1018 = vunpack.c.0.s8 %v1017
        %v1019 = vlaneseq
        %v1020 = vshrl.u32 %v1019, 7
        %v1021 = vsub.s32 %v1018, %v1020
        %v1022 = vrot.slane %v1015, %v1021
        %v1023 = vcombine.low %v995, %v1002
        %v1025 = vunpack.c.l.s4 1983009808
        %v1026 = vunpack.c.0.s8 %v1025
        %v1027 = vlaneseq
        %v1028 = vshrl.u32 %v1027, 7
        %v1029 = vsub.s32 %v1026, %v1028
        %v1030 = vrot.slane %v1023, %v1029
        %v1031 = vcombine.low %v1005, %v1006
        %v1033 = vunpack.c.l.s4 1983009808
        %v1034 = vunpack.c.0.s8 %v1033
        %v1035 = vlaneseq
        %v1036 = vshrl.u32 %v1035, 7
        %v1037 = vsub.s32 %v1034, %v1036
        %v1038 = vrot.slane %v1031, %v1037
        %v1039 = vcombine.low %v1014, %v1022
        %v1040 = vcombine.high %v1014, %v1022
        %v1042 = vunpack.c.l.s4 1934713408
        %v1043 = vunpack.c.0.s8 %v1042
        %v1044 = vlaneseq
        %v1045 = vshrl.u32 %v1044, 7
        %v1046 = vsub.s32 %v1043, %v1045
        %v1047 = vrot.slane %v1039, %v1046
        %v1049 = vunpack.c.l.s4 1934713408
        %v1050 = vunpack.c.0.s8 %v1049
        %v1051 = vlaneseq
        %v1052 = vshrl.u32 %v1051, 7
        %v1053 = vsub.s32 %v1050, %v1052
        %v1054 = vrot.slane %v1040, %v1053
        %v1055 = vcombine.low %v1030, %v1038
        %v1056 = vcombine.high %v1030, %v1038
        %v1058 = vunpack.c.l.s4 1934713408
        %v1059 = vunpack.c.0.s8 %v1058
        %v1060 = vlaneseq
        %v1061 = vshrl.u32 %v1060, 7
        %v1062 = vsub.s32 %v1059, %v1061
        %v1063 = vrot.slane %v1055, %v1062
        %v1065 = vunpack.c.l.s4 1934713408
        %v1066 = vunpack.c.0.s8 %v1065
        %v1067 = vlaneseq
        %v1068 = vshrl.u32 %v1067, 7
        %v1069 = vsub.s32 %v1066, %v1068
        %v1070 = vrot.slane %v1056, %v1069
        %v1071 = vcombine.low %v1047, %v1063
        %v1072 = vcombine.high %v1047, %v1063
        %v1073 = vcombine.low %v1054, %v1070
        %v1074 = vcombine.high %v1054, %v1070
        %v1075 = vpack.c.bf16 %v1071, %v1071
        %v1076 = vpack.c.bf16 %v1072, %v1072
        %v1077 = vpack.c.bf16 %v1073, %v1073
        %v1078 = vpack.c.bf16 %v1074, %v1074
        %v1079 = vld [vmem:[%s550] sm:$0x1]
        %v1080 = vunpack.c.l.bf16 %v1079
        %v1081 = vlaneseq
        %v1082 = vshrl.u32 %v1081, 7
        %v1083 = vsub.s32 0, %v1082
        %v1084 = vrot.slane %v1080, %v1083
        %vm1085 = vcmask 64512
        %v1087 = vsel %vm1085, %v771, 0
        %v1090 = vsel %vm1085, %v923, 0
        %1092 = vmatprep.subr.bf16.mxu0 0
        %1093 = vmatpush1.bf16.xpose.msra.mxu0 %v1090
        %1094 = vmatprep.subr.bf16.mxu0 0
        %1095 = vmatpush1.bf16.xpose.msra.mxu0 0
        %1096 = vmatprep.subr.bf16.mxu0 0
        %1097 = vmatpush1.bf16.xpose.msra.mxu0 0
        %1098 = vmatprep.subr.bf16.mxu0 0
        %1099 = vmatpush1.bf16.xpose.msra.mxu0 0
        %1100 = vmatprep.subr.bf16.mxu0 0
        %1101 = vmatpush1.bf16.xpose.msra.mxu0 0
        %1102 = vmatprep.subr.bf16.mxu0 0
        %1103 = vmatpush1.bf16.xpose.msra.mxu0 0
        %1104 = vmatprep.subr.bf16.mxu0 0
        %1105 = vmatpush1.bf16.xpose.msra.mxu0 0
        %1106 = vmatprep.subr.bf16.mxu0 0
        %1107 = vmatpush1.bf16.xpose.msra.mxu0 0
        %1108 = vmatprep.subr.bf16.mxu0 0
        %1109 = vmatpush1.bf16.xpose.msra.mxu0 0
        %1110 = vmatprep.subr.bf16.mxu0 0
        %1111 = vmatpush1.bf16.xpose.msra.mxu0 0
        %1112 = vmatprep.subr.bf16.mxu0 0
        %1113 = vmatpush1.bf16.xpose.msra.mxu0 0
        %1114 = vmatprep.subr.bf16.mxu0 0
        %1115 = vmatpush1.bf16.xpose.msra.mxu0 0
        %1116 = vmatprep.subr.bf16.mxu0 0
        %1117 = vmatpush1.bf16.xpose.msra.mxu0 0
        %1118 = vmatprep.subr.bf16.mxu0 0
        %1119 = vmatpush1.bf16.xpose.msra.mxu0 0
        %1120 = vmatprep.subr.bf16.mxu0 0
        %1121 = vmatpush1.bf16.xpose.msra.mxu0 0
        %1122 = vmatprep.subr.bf16.mxu0 0
        %1123 = vmatpush1.bf16.xpose.msra.mxu0 0
        %1124 = vmatprep.mubr.bf16.mxu0 0
        %1125 = vmatmul.mubr.bf16.gmra.mrb[0].mxu0 %v1087
        %v1126 = vpop.f32.mrb[0].mxu0
        %v1127 = vadd.f32 %v1084, %v1126
        %v1128 = vpop.f32.mrb[0].mxu0
        %v1129 = vpop.f32.mrb[0].mxu0
        %v1130 = vpop.f32.mrb[0].mxu0
        %1131 = vdwg.mxu0
        %v1133 = vsel %vm1085, %v772, 0
        %v1136 = vsel %vm1085, %v924, 0
        %1138 = vmatprep.subr.bf16.mxu0 0
        %1139 = vmatpush1.bf16.xpose.msra.mxu0 %v1136
        %1140 = vmatprep.subr.bf16.mxu0 0
        %1141 = vmatpush1.bf16.xpose.msra.mxu0 0
        %1142 = vmatprep.subr.bf16.mxu0 0
        %1143 = vmatpush1.bf16.xpose.msra.mxu0 0
        %1144 = vmatprep.subr.bf16.mxu0 0
        %1145 = vmatpush1.bf16.xpose.msra.mxu0 0
        %1146 = vmatprep.subr.bf16.mxu0 0
        %1147 = vmatpush1.bf16.xpose.msra.mxu0 0
        %1148 = vmatprep.subr.bf16.mxu0 0
        %1149 = vmatpush1.bf16.xpose.msra.mxu0 0
        %1150 = vmatprep.subr.bf16.mxu0 0
        %1151 = vmatpush1.bf16.xpose.msra.mxu0 0
        %1152 = vmatprep.subr.bf16.mxu0 0
        %1153 = vmatpush1.bf16.xpose.msra.mxu0 0
        %1154 = vmatprep.subr.bf16.mxu0 0
        %1155 = vmatpush1.bf16.xpose.msra.mxu0 0
        %1156 = vmatprep.subr.bf16.mxu0 0
        %1157 = vmatpush1.bf16.xpose.msra.mxu0 0
        %1158 = vmatprep.subr.bf16.mxu0 0
        %1159 = vmatpush1.bf16.xpose.msra.mxu0 0
        %1160 = vmatprep.subr.bf16.mxu0 0
        %1161 = vmatpush1.bf16.xpose.msra.mxu0 0
        %1162 = vmatprep.subr.bf16.mxu0 0
        %1163 = vmatpush1.bf16.xpose.msra.mxu0 0
        %1164 = vmatprep.subr.bf16.mxu0 0
        %1165 = vmatpush1.bf16.xpose.msra.mxu0 0
        %1166 = vmatprep.subr.bf16.mxu0 0
        %1167 = vmatpush1.bf16.xpose.msra.mxu0 0
        %1168 = vmatprep.subr.bf16.mxu0 0
        %1169 = vmatpush1.bf16.xpose.msra.mxu0 0
        %1170 = vmatprep.mubr.bf16.mxu0 0
        %1171 = vmatmul.mubr.bf16.gmra.mrb[0].mxu0 %v1133
        %v1172 = vpop.f32.mrb[0].mxu0
        %v1173 = vadd.f32 %v1084, %v1172
        %v1174 = vpop.f32.mrb[0].mxu0
        %v1175 = vpop.f32.mrb[0].mxu0
        %v1176 = vpop.f32.mrb[0].mxu0
        %1177 = vdwg.mxu0
        %v1179 = vsel %vm1085, %v773, 0
        %v1182 = vsel %vm1085, %v925, 0
        %1184 = vmatprep.subr.bf16.mxu0 0
        %1185 = vmatpush1.bf16.xpose.msra.mxu0 %v1182
        %1186 = vmatprep.subr.bf16.mxu0 0
        %1187 = vmatpush1.bf16.xpose.msra.mxu0 0
        %1188 = vmatprep.subr.bf16.mxu0 0
        %1189 = vmatpush1.bf16.xpose.msra.mxu0 0
        %1190 = vmatprep.subr.bf16.mxu0 0
        %1191 = vmatpush1.bf16.xpose.msra.mxu0 0
        %1192 = vmatprep.subr.bf16.mxu0 0
        %1193 = vmatpush1.bf16.xpose.msra.mxu0 0
        %1194 = vmatprep.subr.bf16.mxu0 0
        %1195 = vmatpush1.bf16.xpose.msra.mxu0 0
        %1196 = vmatprep.subr.bf16.mxu0 0
        %1197 = vmatpush1.bf16.xpose.msra.mxu0 0
        %1198 = vmatprep.subr.bf16.mxu0 0
        %1199 = vmatpush1.bf16.xpose.msra.mxu0 0
        %1200 = vmatprep.subr.bf16.mxu0 0
        %1201 = vmatpush1.bf16.xpose.msra.mxu0 0
        %1202 = vmatprep.subr.bf16.mxu0 0
        %1203 = vmatpush1.bf16.xpose.msra.mxu0 0
        %1204 = vmatprep.subr.bf16.mxu0 0
        %1205 = vmatpush1.bf16.xpose.msra.mxu0 0
        %1206 = vmatprep.subr.bf16.mxu0 0
        %1207 = vmatpush1.bf16.xpose.msra.mxu0 0
        %1208 = vmatprep.subr.bf16.mxu0 0
        %1209 = vmatpush1.bf16.xpose.msra.mxu0 0
        %1210 = vmatprep.subr.bf16.mxu0 0
        %1211 = vmatpush1.bf16.xpose.msra.mxu0 0
        %1212 = vmatprep.subr.bf16.mxu0 0
        %1213 = vmatpush1.bf16.xpose.msra.mxu0 0
        %1214 = vmatprep.subr.bf16.mxu0 0
        %1215 = vmatpush1.bf16.xpose.msra.mxu0 0
        %1216 = vmatprep.mubr.bf16.mxu0 0
        %1217 = vmatmul.mubr.bf16.gmra.mrb[0].mxu0 %v1179
        %v1218 = vpop.f32.mrb[0].mxu0
        %v1219 = vadd.f32 %v1084, %v1218
        %v1220 = vpop.f32.mrb[0].mxu0
        %v1221 = vpop.f32.mrb[0].mxu0
        %v1222 = vpop.f32.mrb[0].mxu0
        %1223 = vdwg.mxu0
        %v1225 = vsel %vm1085, %v774, 0
        %v1228 = vsel %vm1085, %v926, 0
        %1230 = vmatprep.subr.bf16.mxu0 0
        %1231 = vmatpush1.bf16.xpose.msra.mxu0 %v1228
        %1232 = vmatprep.subr.bf16.mxu0 0
        %1233 = vmatpush1.bf16.xpose.msra.mxu0 0
        %1234 = vmatprep.subr.bf16.mxu0 0
        %1235 = vmatpush1.bf16.xpose.msra.mxu0 0
        %1236 = vmatprep.subr.bf16.mxu0 0
        %1237 = vmatpush1.bf16.xpose.msra.mxu0 0
        %1238 = vmatprep.subr.bf16.mxu0 0
        %1239 = vmatpush1.bf16.xpose.msra.mxu0 0
        %1240 = vmatprep.subr.bf16.mxu0 0
        %1241 = vmatpush1.bf16.xpose.msra.mxu0 0
        %1242 = vmatprep.subr.bf16.mxu0 0
        %1243 = vmatpush1.bf16.xpose.msra.mxu0 0
        %1244 = vmatprep.subr.bf16.mxu0 0
        %1245 = vmatpush1.bf16.xpose.msra.mxu0 0
        %1246 = vmatprep.subr.bf16.mxu0 0
        %1247 = vmatpush1.bf16.xpose.msra.mxu0 0
        %1248 = vmatprep.subr.bf16.mxu0 0
        %1249 = vmatpush1.bf16.xpose.msra.mxu0 0
        %1250 = vmatprep.subr.bf16.mxu0 0
        %1251 = vmatpush1.bf16.xpose.msra.mxu0 0
        %1252 = vmatprep.subr.bf16.mxu0 0
        %1253 = vmatpush1.bf16.xpose.msra.mxu0 0
        %1254 = vmatprep.subr.bf16.mxu0 0
        %1255 = vmatpush1.bf16.xpose.msra.mxu0 0
        %1256 = vmatprep.subr.bf16.mxu0 0
        %1257 = vmatpush1.bf16.xpose.msra.mxu0 0
        %1258 = vmatprep.subr.bf16.mxu0 0
        %1259 = vmatpush1.bf16.xpose.msra.mxu0 0
        %1260 = vmatprep.subr.bf16.mxu0 0
        %1261 = vmatpush1.bf16.xpose.msra.mxu0 0
        %1262 = vmatprep.mubr.bf16.mxu0 0
        %1263 = vmatmul.mubr.bf16.gmra.mrb[0].mxu0 %v1225
        %v1264 = vpop.f32.mrb[0].mxu0
        %v1265 = vadd.f32 %v1084, %v1264
        %v1266 = vpop.f32.mrb[0].mxu0
        %v1267 = vpop.f32.mrb[0].mxu0
        %v1268 = vpop.f32.mrb[0].mxu0
        %1269 = vdwg.mxu0
        %v1270 = vsel %vm1085, %v1127, -inf
        %1271 = vmax.xlane.f32.xlu0 %v1270
        %v1272 = vpop.xlane.xlu0 %1271
        %v1273 = vsel %vm1085, %v1173, -inf
        %1274 = vmax.xlane.f32.xlu0 %v1273
        %v1275 = vpop.xlane.xlu0 %1274
        %v1276 = vsel %vm1085, %v1219, -inf
        %1277 = vmax.xlane.f32.xlu0 %v1276
        %v1278 = vpop.xlane.xlu0 %1277
        %v1279 = vsel %vm1085, %v1265, -inf
        %1280 = vmax.xlane.f32.xlu0 %v1279
        %v1281 = vpop.xlane.xlu0 %1280
        %v1282 = vsub.f32 %v1127, %v1272
        %v1283 = vsub.f32 %v1173, %v1275
        %v1284 = vsub.f32 %v1219, %v1278
        %v1285 = vsub.f32 %v1265, %v1281
        %v1286 = vmul.f32 %v1282, 1.442695
        %v1287 = vpow.pop %v1286
        %v1288 = vmul.f32 %v1283, 1.442695
        %v1289 = vpow.pop %v1288
        %v1290 = vmul.f32 %v1284, 1.442695
        %v1291 = vpow.pop %v1290
        %v1292 = vmul.f32 %v1285, 1.442695
        %v1293 = vpow.pop %v1292
        %v1294 = vsel %vm1085, %v1287, 0.0
        %1295 = vadd.xlane.f32.xlu0 %v1294
        %v1296 = vpop.xlane.xlu0 %1295
        %v1297 = vsel %vm1085, %v1289, 0.0
        %1298 = vadd.xlane.f32.xlu0 %v1297
        %v1299 = vpop.xlane.xlu0 %1298
        %v1300 = vsel %vm1085, %v1291, 0.0
        %1301 = vadd.xlane.f32.xlu0 %v1300
        %v1302 = vpop.xlane.xlu0 %1301
        %v1303 = vsel %vm1085, %v1293, 0.0
        %1304 = vadd.xlane.f32.xlu0 %v1303
        %v1305 = vpop.xlane.xlu0 %1304
        %v1306 = vrcp.pop %v1296
        %v1307 = vrcp.pop %v1299
        %v1308 = vrcp.pop %v1302
        %v1309 = vrcp.pop %v1305
        %v1310 = vmul.f32 %v1287, %v1306
        %v1311 = vmul.f32 %v1289, %v1307
        %v1312 = vmul.f32 %v1291, %v1308
        %v1313 = vmul.f32 %v1293, %v1309
        %v1314 = vpack.c.bf16 %v1310, %v1310
        %v1315 = vpack.c.bf16 %v1311, %v1311
        %v1316 = vpack.c.bf16 %v1312, %v1312
        %v1317 = vpack.c.bf16 %v1313, %v1313
        %v1319 = vsel %vm1085, %v1314, 0
        %vm1321 = vcmask 1043456
        %v1323 = vsel %vm1321, %v1075, 0
        %1325 = vmatprep.subr.bf16.mxu0 0
        %1326 = vmatpush1.bf16.msra.mxu0 %v1323
        %1327 = vmatprep.subr.bf16.mxu0 0
        %1328 = vmatpush1.bf16.msra.mxu0 0
        %1329 = vmatprep.subr.bf16.mxu0 0
        %1330 = vmatpush1.bf16.msra.mxu0 0
        %1331 = vmatprep.subr.bf16.mxu0 0
        %1332 = vmatpush1.bf16.msra.mxu0 0
        %1333 = vmatprep.subr.bf16.mxu0 0
        %1334 = vmatpush1.bf16.msra.mxu0 0
        %1335 = vmatprep.subr.bf16.mxu0 0
        %1336 = vmatpush1.bf16.msra.mxu0 0
        %1337 = vmatprep.subr.bf16.mxu0 0
        %1338 = vmatpush1.bf16.msra.mxu0 0
        %1339 = vmatprep.subr.bf16.mxu0 0
        %1340 = vmatpush1.bf16.msra.mxu0 0
        %1341 = vmatprep.subr.bf16.mxu0 0
        %1342 = vmatpush1.bf16.msra.mxu0 0
        %1343 = vmatprep.subr.bf16.mxu0 0
        %1344 = vmatpush1.bf16.msra.mxu0 0
        %1345 = vmatprep.subr.bf16.mxu0 0
        %1346 = vmatpush1.bf16.msra.mxu0 0
        %1347 = vmatprep.subr.bf16.mxu0 0
        %1348 = vmatpush1.bf16.msra.mxu0 0
        %1349 = vmatprep.subr.bf16.mxu0 0
        %1350 = vmatpush1.bf16.msra.mxu0 0
        %1351 = vmatprep.subr.bf16.mxu0 0
        %1352 = vmatpush1.bf16.msra.mxu0 0
        %1353 = vmatprep.subr.bf16.mxu0 0
        %1354 = vmatpush1.bf16.msra.mxu0 0
        %1355 = vmatprep.subr.bf16.mxu0 0
        %1356 = vmatpush1.bf16.msra.mxu0 0
        %1357 = vmatprep.mubr.bf16.mxu0 0
        %1358 = vmatmul.mubr.bf16.gmra.mrb[0].mxu0 %v1319
        %v1359 = vpop.f32.mrb[0].mxu0
        %v1360 = vadd.f32 0.0, %v1359
        %v1361 = vpop.f32.mrb[0].mxu0
        %v1362 = vpop.f32.mrb[0].mxu0
        %v1363 = vpop.f32.mrb[0].mxu0
        %1364 = vdwg.mxu0
        %v1366 = vsel %vm1085, %v1315, 0
        %v1369 = vsel %vm1321, %v1076, 0
        %1371 = vmatprep.subr.bf16.mxu0 0
        %1372 = vmatpush1.bf16.msra.mxu0 %v1369
        %1373 = vmatprep.subr.bf16.mxu0 0
        %1374 = vmatpush1.bf16.msra.mxu0 0
        %1375 = vmatprep.subr.bf16.mxu0 0
        %1376 = vmatpush1.bf16.msra.mxu0 0
        %1377 = vmatprep.subr.bf16.mxu0 0
        %1378 = vmatpush1.bf16.msra.mxu0 0
        %1379 = vmatprep.subr.bf16.mxu0 0
        %1380 = vmatpush1.bf16.msra.mxu0 0
        %1381 = vmatprep.subr.bf16.mxu0 0
        %1382 = vmatpush1.bf16.msra.mxu0 0
        %1383 = vmatprep.subr.bf16.mxu0 0
        %1384 = vmatpush1.bf16.msra.mxu0 0
        %1385 = vmatprep.subr.bf16.mxu0 0
        %1386 = vmatpush1.bf16.msra.mxu0 0
        %1387 = vmatprep.subr.bf16.mxu0 0
        %1388 = vmatpush1.bf16.msra.mxu0 0
        %1389 = vmatprep.subr.bf16.mxu0 0
        %1390 = vmatpush1.bf16.msra.mxu0 0
        %1391 = vmatprep.subr.bf16.mxu0 0
        %1392 = vmatpush1.bf16.msra.mxu0 0
        %1393 = vmatprep.subr.bf16.mxu0 0
        %1394 = vmatpush1.bf16.msra.mxu0 0
        %1395 = vmatprep.subr.bf16.mxu0 0
        %1396 = vmatpush1.bf16.msra.mxu0 0
        %1397 = vmatprep.subr.bf16.mxu0 0
        %1398 = vmatpush1.bf16.msra.mxu0 0
        %1399 = vmatprep.subr.bf16.mxu0 0
        %1400 = vmatpush1.bf16.msra.mxu0 0
        %1401 = vmatprep.subr.bf16.mxu0 0
        %1402 = vmatpush1.bf16.msra.mxu0 0
        %1403 = vmatprep.mubr.bf16.mxu0 0
        %1404 = vmatmul.mubr.bf16.gmra.mrb[0].mxu0 %v1366
        %v1405 = vpop.f32.mrb[0].mxu0
        %v1406 = vadd.f32 0.0, %v1405
        %v1407 = vpop.f32.mrb[0].mxu0
        %v1408 = vpop.f32.mrb[0].mxu0
        %v1409 = vpop.f32.mrb[0].mxu0
        %1410 = vdwg.mxu0
        %v1412 = vsel %vm1085, %v1316, 0
        %v1415 = vsel %vm1321, %v1077, 0
        %1417 = vmatprep.subr.bf16.mxu0 0
        %1418 = vmatpush1.bf16.msra.mxu0 %v1415
        %1419 = vmatprep.subr.bf16.mxu0 0
        %1420 = vmatpush1.bf16.msra.mxu0 0
        %1421 = vmatprep.subr.bf16.mxu0 0
        %1422 = vmatpush1.bf16.msra.mxu0 0
        %1423 = vmatprep.subr.bf16.mxu0 0
        %1424 = vmatpush1.bf16.msra.mxu0 0
        %1425 = vmatprep.subr.bf16.mxu0 0
        %1426 = vmatpush1.bf16.msra.mxu0 0
        %1427 = vmatprep.subr.bf16.mxu0 0
        %1428 = vmatpush1.bf16.msra.mxu0 0
        %1429 = vmatprep.subr.bf16.mxu0 0
        %1430 = vmatpush1.bf16.msra.mxu0 0
        %1431 = vmatprep.subr.bf16.mxu0 0
        %1432 = vmatpush1.bf16.msra.mxu0 0
        %1433 = vmatprep.subr.bf16.mxu0 0
        %1434 = vmatpush1.bf16.msra.mxu0 0
        %1435 = vmatprep.subr.bf16.mxu0 0
        %1436 = vmatpush1.bf16.msra.mxu0 0
        %1437 = vmatprep.subr.bf16.mxu0 0
        %1438 = vmatpush1.bf16.msra.mxu0 0
        %1439 = vmatprep.subr.bf16.mxu0 0
        %1440 = vmatpush1.bf16.msra.mxu0 0
        %1441 = vmatprep.subr.bf16.mxu0 0
        %1442 = vmatpush1.bf16.msra.mxu0 0
        %1443 = vmatprep.subr.bf16.mxu0 0
        %1444 = vmatpush1.bf16.msra.mxu0 0
        %1445 = vmatprep.subr.bf16.mxu0 0
        %1446 = vmatpush1.bf16.msra.mxu0 0
        %1447 = vmatprep.subr.bf16.mxu0 0
        %1448 = vmatpush1.bf16.msra.mxu0 0
        %1449 = vmatprep.mubr.bf16.mxu0 0
        %1450 = vmatmul.mubr.bf16.gmra.mrb[0].mxu0 %v1412
        %v1451 = vpop.f32.mrb[0].mxu0
        %v1452 = vadd.f32 0.0, %v1451
        %v1453 = vpop.f32.mrb[0].mxu0
        %v1454 = vpop.f32.mrb[0].mxu0
        %v1455 = vpop.f32.mrb[0].mxu0
        %1456 = vdwg.mxu0
        %v1458 = vsel %vm1085, %v1317, 0
        %v1461 = vsel %vm1321, %v1078, 0
        %1463 = vmatprep.subr.bf16.mxu0 0
        %1464 = vmatpush1.bf16.msra.mxu0 %v1461
        %1465 = vmatprep.subr.bf16.mxu0 0
        %1466 = vmatpush1.bf16.msra.mxu0 0
        %1467 = vmatprep.subr.bf16.mxu0 0
        %1468 = vmatpush1.bf16.msra.mxu0 0
        %1469 = vmatprep.subr.bf16.mxu0 0
        %1470 = vmatpush1.bf16.msra.mxu0 0
        %1471 = vmatprep.subr.bf16.mxu0 0
        %1472 = vmatpush1.bf16.msra.mxu0 0
        %1473 = vmatprep.subr.bf16.mxu0 0
        %1474 = vmatpush1.bf16.msra.mxu0 0
        %1475 = vmatprep.subr.bf16.mxu0 0
        %1476 = vmatpush1.bf16.msra.mxu0 0
        %1477 = vmatprep.subr.bf16.mxu0 0
        %1478 = vmatpush1.bf16.msra.mxu0 0
        %1479 = vmatprep.subr.bf16.mxu0 0
        %1480 = vmatpush1.bf16.msra.mxu0 0
        %1481 = vmatprep.subr.bf16.mxu0 0
        %1482 = vmatpush1.bf16.msra.mxu0 0
        %1483 = vmatprep.subr.bf16.mxu0 0
        %1484 = vmatpush1.bf16.msra.mxu0 0
        %1485 = vmatprep.subr.bf16.mxu0 0
        %1486 = vmatpush1.bf16.msra.mxu0 0
        %1487 = vmatprep.subr.bf16.mxu0 0
        %1488 = vmatpush1.bf16.msra.mxu0 0
        %1489 = vmatprep.subr.bf16.mxu0 0
        %1490 = vmatpush1.bf16.msra.mxu0 0
        %1491 = vmatprep.subr.bf16.mxu0 0
        %1492 = vmatpush1.bf16.msra.mxu0 0
        %1493 = vmatprep.subr.bf16.mxu0 0
        %1494 = vmatpush1.bf16.msra.mxu0 0
        %1495 = vmatprep.mubr.bf16.mxu0 0
        %1496 = vmatmul.mubr.bf16.gmra.mrb[0].mxu0 %v1458
        %v1497 = vpop.f32.mrb[0].mxu0
        %v1498 = vadd.f32 0.0, %v1497
        %v1499 = vpop.f32.mrb[0].mxu0
        %v1500 = vpop.f32.mrb[0].mxu0
        %v1501 = vpop.f32.mrb[0].mxu0
        %1502 = vdwg.mxu0
        %v1503 = vcombine.low %v1360, %v1452
        %v1504 = vcombine.high %v1360, %v1452
        %v1506 = vunpack.c.l.s4 1983009808
        %v1507 = vunpack.c.0.s8 %v1506
        %v1508 = vlaneseq
        %v1509 = vshrl.u32 %v1508, 7
        %v1510 = vsub.s32 %v1507, %v1509
        %v1511 = vrot.slane %v1503, %v1510
        %v1513 = vunpack.c.l.s4 1983009808
        %v1514 = vunpack.c.0.s8 %v1513
        %v1515 = vlaneseq
        %v1516 = vshrl.u32 %v1515, 7
        %v1517 = vsub.s32 %v1514, %v1516
        %v1518 = vrot.slane %v1504, %v1517
        %v1519 = vcombine.low %v1406, %v1498
        %v1520 = vcombine.high %v1406, %v1498
        %v1522 = vunpack.c.l.s4 1983009808
        %v1523 = vunpack.c.0.s8 %v1522
        %v1524 = vlaneseq
        %v1525 = vshrl.u32 %v1524, 7
        %v1526 = vsub.s32 %v1523, %v1525
        %v1527 = vrot.slane %v1519, %v1526
        %v1529 = vunpack.c.l.s4 1983009808
        %v1530 = vunpack.c.0.s8 %v1529
        %v1531 = vlaneseq
        %v1532 = vshrl.u32 %v1531, 7
        %v1533 = vsub.s32 %v1530, %v1532
        %v1534 = vrot.slane %v1520, %v1533
        %v1535 = vcombine.low %v1511, %v1527
        %v1536 = vcombine.high %v1511, %v1527
        %v1538 = vunpack.c.l.s4 1934713408
        %v1539 = vunpack.c.0.s8 %v1538
        %v1540 = vlaneseq
        %v1541 = vshrl.u32 %v1540, 7
        %v1542 = vsub.s32 %v1539, %v1541
        %v1543 = vrot.slane %v1535, %v1542
        %v1545 = vunpack.c.l.s4 1934713408
        %v1546 = vunpack.c.0.s8 %v1545
        %v1547 = vlaneseq
        %v1548 = vshrl.u32 %v1547, 7
        %v1549 = vsub.s32 %v1546, %v1548
        %v1550 = vrot.slane %v1536, %v1549
        %v1551 = vcombine.low %v1518, %v1534
        %v1552 = vcombine.high %v1518, %v1534
        %v1554 = vunpack.c.l.s4 1934713408
        %v1555 = vunpack.c.0.s8 %v1554
        %v1556 = vlaneseq
        %v1557 = vshrl.u32 %v1556, 7
        %v1558 = vsub.s32 %v1555, %v1557
        %v1559 = vrot.slane %v1551, %v1558
        %v1561 = vunpack.c.l.s4 1934713408
        %v1562 = vunpack.c.0.s8 %v1561
        %v1563 = vlaneseq
        %v1564 = vshrl.u32 %v1563, 7
        %v1565 = vsub.s32 %v1562, %v1564
        %v1566 = vrot.slane %v1552, %v1565
        %v1567 = vcombine.high %v1543, 0.0
        %v1568 = vcombine.high %v1550, 0.0
        %v1569 = vcombine.high %v1559, 0.0
        %v1570 = vcombine.high %v1566, 0.0
        %v1571 = vcombine.low %v1543, %v1550
        %v1573 = vunpack.c.l.s4 1983009808
        %v1574 = vunpack.c.0.s8 %v1573
        %v1575 = vlaneseq
        %v1576 = vshrl.u32 %v1575, 7
        %v1577 = vsub.s32 %v1574, %v1576
        %v1578 = vrot.slane %v1571, %v1577
        %v1579 = vcombine.low %v1567, %v1568
        %v1581 = vunpack.c.l.s4 1983009808
        %v1582 = vunpack.c.0.s8 %v1581
        %v1583 = vlaneseq
        %v1584 = vshrl.u32 %v1583, 7
        %v1585 = vsub.s32 %v1582, %v1584
        %v1586 = vrot.slane %v1579, %v1585
        %v1587 = vcombine.low %v1559, %v1566
        %v1589 = vunpack.c.l.s4 1983009808
        %v1590 = vunpack.c.0.s8 %v1589
        %v1591 = vlaneseq
        %v1592 = vshrl.u32 %v1591, 7
        %v1593 = vsub.s32 %v1590, %v1592
        %v1594 = vrot.slane %v1587, %v1593
        %v1595 = vcombine.low %v1569, %v1570
        %v1597 = vunpack.c.l.s4 1983009808
        %v1598 = vunpack.c.0.s8 %v1597
        %v1599 = vlaneseq
        %v1600 = vshrl.u32 %v1599, 7
        %v1601 = vsub.s32 %v1598, %v1600
        %v1602 = vrot.slane %v1595, %v1601
        %v1603 = vcombine.low %v1578, %v1586
        %v1604 = vcombine.high %v1578, %v1586
        %v1606 = vunpack.c.l.s4 1934713408
        %v1607 = vunpack.c.0.s8 %v1606
        %v1608 = vlaneseq
        %v1609 = vshrl.u32 %v1608, 7
        %v1610 = vsub.s32 %v1607, %v1609
        %v1611 = vrot.slane %v1603, %v1610
        %v1613 = vunpack.c.l.s4 1934713408
        %v1614 = vunpack.c.0.s8 %v1613
        %v1615 = vlaneseq
        %v1616 = vshrl.u32 %v1615, 7
        %v1617 = vsub.s32 %v1614, %v1616
        %v1618 = vrot.slane %v1604, %v1617
        %v1619 = vcombine.low %v1594, %v1602
        %v1620 = vcombine.high %v1594, %v1602
        %v1622 = vunpack.c.l.s4 1934713408
        %v1623 = vunpack.c.0.s8 %v1622
        %v1624 = vlaneseq
        %v1625 = vshrl.u32 %v1624, 7
        %v1626 = vsub.s32 %v1623, %v1625
        %v1627 = vrot.slane %v1619, %v1626
        %v1629 = vunpack.c.l.s4 1934713408
        %v1630 = vunpack.c.0.s8 %v1629
        %v1631 = vlaneseq
        %v1632 = vshrl.u32 %v1631, 7
        %v1633 = vsub.s32 %v1630, %v1632
        %v1634 = vrot.slane %v1620, %v1633
        %v1635 = vcombine.low %v1611, %v1627
        %v1636 = vcombine.high %v1611, %v1627
        %v1637 = vcombine.low %v1618, %v1634
        %v1638 = vcombine.high %v1618, %v1634
        %1640 = vrot.lane.b32.xlu0 %v1636, 8
        %v1641 = vpop.permute.xlu0 %1640
        %1644 = vrot.lane.b32.xlu0 %v1637, 16
        %v1645 = vpop.permute.xlu0 %1644
        %1648 = vrot.lane.b32.xlu0 %v1638, 24
        %v1649 = vpop.permute.xlu0 %1648
        %v1651 = vsel %vm1085, %v1635, %v1641
        %vm1652 = vcmask 130048
        %v1653 = vsel %vm1652, %v1651, %v1645
        %vm1654 = vcmask 195584
        %v1655 = vsel %vm1654, %v1653, %v1649
        %v1656 = vpack.c.bf16 %v1655, %v1655
        %vm1657 = vcmask 257024
        %1658 = vst.msk [vmem:[#allocation2] sm:$0xf] %vm1657, %v1656
        %1660 = vrot.lane.b32.xlu0 %v622, 120
        %v1661 = vpop.permute.xlu0 %1660
        %1663 = vrot.lane.b32.xlu0 %v622, 112
        %v1664 = vpop.permute.xlu0 %1663
        %1666 = vrot.lane.b32.xlu0 %v622, 104
        %v1667 = vpop.permute.xlu0 %1666
        %v1669 = vcombine.low %v622, %v1664
        %v1670 = vcombine.high %v622, %v1664
        %v1672 = vunpack.c.l.s4 1983009808
        %v1673 = vunpack.c.0.s8 %v1672
        %v1674 = vlaneseq
        %v1675 = vshrl.u32 %v1674, 7
        %v1676 = vsub.s32 %v1673, %v1675
        %v1677 = vrot.slane %v1669, %v1676
        %v1679 = vunpack.c.l.s4 1983009808
        %v1680 = vunpack.c.0.s8 %v1679
        %v1681 = vlaneseq
        %v1682 = vshrl.u32 %v1681, 7
        %v1683 = vsub.s32 %v1680, %v1682
        %v1684 = vrot.slane %v1670, %v1683
        %v1685 = vcombine.low %v1661, %v1667
        %v1686 = vcombine.high %v1661, %v1667
        %v1688 = vunpack.c.l.s4 1983009808
        %v1689 = vunpack.c.0.s8 %v1688
        %v1690 = vlaneseq
        %v1691 = vshrl.u32 %v1690, 7
        %v1692 = vsub.s32 %v1689, %v1691
        %v1693 = vrot.slane %v1685, %v1692
        %v1695 = vunpack.c.l.s4 1983009808
        %v1696 = vunpack.c.0.s8 %v1695
        %v1697 = vlaneseq
        %v1698 = vshrl.u32 %v1697, 7
        %v1699 = vsub.s32 %v1696, %v1698
        %v1700 = vrot.slane %v1686, %v1699
        %v1701 = vcombine.low %v1677, %v1693
        %v1702 = vcombine.high %v1677, %v1693
        %v1704 = vunpack.c.l.s4 1934713408
        %v1705 = vunpack.c.0.s8 %v1704
        %v1706 = vlaneseq
        %v1707 = vshrl.u32 %v1706, 7
        %v1708 = vsub.s32 %v1705, %v1707
        %v1709 = vrot.slane %v1701, %v1708
        %v1711 = vunpack.c.l.s4 1934713408
        %v1712 = vunpack.c.0.s8 %v1711
        %v1713 = vlaneseq
        %v1714 = vshrl.u32 %v1713, 7
        %v1715 = vsub.s32 %v1712, %v1714
        %v1716 = vrot.slane %v1702, %v1715
        %v1717 = vcombine.low %v1684, %v1700
        %v1718 = vcombine.high %v1684, %v1700
        %v1720 = vunpack.c.l.s4 1934713408
        %v1721 = vunpack.c.0.s8 %v1720
        %v1722 = vlaneseq
        %v1723 = vshrl.u32 %v1722, 7
        %v1724 = vsub.s32 %v1721, %v1723
        %v1725 = vrot.slane %v1717, %v1724
        %v1727 = vunpack.c.l.s4 1934713408
        %v1728 = vunpack.c.0.s8 %v1727
        %v1729 = vlaneseq
        %v1730 = vshrl.u32 %v1729, 7
        %v1731 = vsub.s32 %v1728, %v1730
        %v1732 = vrot.slane %v1718, %v1731
        %v1733 = vcombine.high %v1709, 0.0
        %v1734 = vcombine.high %v1716, 0.0
        %v1735 = vcombine.high %v1725, 0.0
        %v1736 = vcombine.high %v1732, 0.0
        %v1737 = vcombine.low %v1709, %v1716
        %v1739 = vunpack.c.l.s4 1983009808
        %v1740 = vunpack.c.0.s8 %v1739
        %v1741 = vlaneseq
        %v1742 = vshrl.u32 %v1741, 7
        %v1743 = vsub.s32 %v1740, %v1742
        %v1744 = vrot.slane %v1737, %v1743
        %v1745 = vcombine.low %v1733, %v1734
        %v1747 = vunpack.c.l.s4 1983009808
        %v1748 = vunpack.c.0.s8 %v1747
        %v1749 = vlaneseq
        %v1750 = vshrl.u32 %v1749, 7
        %v1751 = vsub.s32 %v1748, %v1750
        %v1752 = vrot.slane %v1745, %v1751
        %v1753 = vcombine.low %v1725, %v1732
        %v1755 = vunpack.c.l.s4 1983009808
        %v1756 = vunpack.c.0.s8 %v1755
        %v1757 = vlaneseq
        %v1758 = vshrl.u32 %v1757, 7
        %v1759 = vsub.s32 %v1756, %v1758
        %v1760 = vrot.slane %v1753, %v1759
        %v1761 = vcombine.low %v1735, %v1736
        %v1763 = vunpack.c.l.s4 1983009808
        %v1764 = vunpack.c.0.s8 %v1763
        %v1765 = vlaneseq
        %v1766 = vshrl.u32 %v1765, 7
        %v1767 = vsub.s32 %v1764, %v1766
        %v1768 = vrot.slane %v1761, %v1767
        %v1769 = vcombine.low %v1744, %v1752
        %v1770 = vcombine.high %v1744, %v1752
        %v1772 = vunpack.c.l.s4 1934713408
        %v1773 = vunpack.c.0.s8 %v1772
        %v1774 = vlaneseq
        %v1775 = vshrl.u32 %v1774, 7
        %v1776 = vsub.s32 %v1773, %v1775
        %v1777 = vrot.slane %v1769, %v1776
        %v1779 = vunpack.c.l.s4 1934713408
        %v1780 = vunpack.c.0.s8 %v1779
        %v1781 = vlaneseq
        %v1782 = vshrl.u32 %v1781, 7
        %v1783 = vsub.s32 %v1780, %v1782
        %v1784 = vrot.slane %v1770, %v1783
        %v1785 = vcombine.low %v1760, %v1768
        %v1786 = vcombine.high %v1760, %v1768
        %v1788 = vunpack.c.l.s4 1934713408
        %v1789 = vunpack.c.0.s8 %v1788
        %v1790 = vlaneseq
        %v1791 = vshrl.u32 %v1790, 7
        %v1792 = vsub.s32 %v1789, %v1791
        %v1793 = vrot.slane %v1785, %v1792
        %v1795 = vunpack.c.l.s4 1934713408
        %v1796 = vunpack.c.0.s8 %v1795
        %v1797 = vlaneseq
        %v1798 = vshrl.u32 %v1797, 7
        %v1799 = vsub.s32 %v1796, %v1798
        %v1800 = vrot.slane %v1786, %v1799
        %v1801 = vcombine.low %v1777, %v1793
        %v1802 = vcombine.high %v1777, %v1793
        %v1803 = vcombine.low %v1784, %v1800
        %v1804 = vcombine.high %v1784, %v1800
        %v1805 = vpack.c.bf16 %v1801, %v1801
        %v1806 = vpack.c.bf16 %v1802, %v1802
        %v1807 = vpack.c.bf16 %v1803, %v1803
        %v1808 = vpack.c.bf16 %v1804, %v1804
        %1809 = vrot.lane.b32.xlu0 %v622, 96
        %v1810 = vpop.permute.xlu0 %1809
        %1811 = vrot.lane.b32.xlu0 %v1661, 96
        %v1812 = vpop.permute.xlu0 %1811
        %1813 = vrot.lane.b32.xlu0 %v1664, 96
        %v1814 = vpop.permute.xlu0 %1813
        %1815 = vrot.lane.b32.xlu0 %v1667, 96
        %v1816 = vpop.permute.xlu0 %1815
        %v1821 = vcombine.low %v1810, %v1814
        %v1822 = vcombine.high %v1810, %v1814
        %v1824 = vunpack.c.l.s4 1983009808
        %v1825 = vunpack.c.0.s8 %v1824
        %v1826 = vlaneseq
        %v1827 = vshrl.u32 %v1826, 7
        %v1828 = vsub.s32 %v1825, %v1827
        %v1829 = vrot.slane %v1821, %v1828
        %v1831 = vunpack.c.l.s4 1983009808
        %v1832 = vunpack.c.0.s8 %v1831
        %v1833 = vlaneseq
        %v1834 = vshrl.u32 %v1833, 7
        %v1835 = vsub.s32 %v1832, %v1834
        %v1836 = vrot.slane %v1822, %v1835
        %v1837 = vcombine.low %v1812, %v1816
        %v1838 = vcombine.high %v1812, %v1816
        %v1840 = vunpack.c.l.s4 1983009808
        %v1841 = vunpack.c.0.s8 %v1840
        %v1842 = vlaneseq
        %v1843 = vshrl.u32 %v1842, 7
        %v1844 = vsub.s32 %v1841, %v1843
        %v1845 = vrot.slane %v1837, %v1844
        %v1847 = vunpack.c.l.s4 1983009808
        %v1848 = vunpack.c.0.s8 %v1847
        %v1849 = vlaneseq
        %v1850 = vshrl.u32 %v1849, 7
        %v1851 = vsub.s32 %v1848, %v1850
        %v1852 = vrot.slane %v1838, %v1851
        %v1853 = vcombine.low %v1829, %v1845
        %v1854 = vcombine.high %v1829, %v1845
        %v1856 = vunpack.c.l.s4 1934713408
        %v1857 = vunpack.c.0.s8 %v1856
        %v1858 = vlaneseq
        %v1859 = vshrl.u32 %v1858, 7
        %v1860 = vsub.s32 %v1857, %v1859
        %v1861 = vrot.slane %v1853, %v1860
        %v1863 = vunpack.c.l.s4 1934713408
        %v1864 = vunpack.c.0.s8 %v1863
        %v1865 = vlaneseq
        %v1866 = vshrl.u32 %v1865, 7
        %v1867 = vsub.s32 %v1864, %v1866
        %v1868 = vrot.slane %v1854, %v1867
        %v1869 = vcombine.low %v1836, %v1852
        %v1870 = vcombine.high %v1836, %v1852
        %v1872 = vunpack.c.l.s4 1934713408
        %v1873 = vunpack.c.0.s8 %v1872
        %v1874 = vlaneseq
        %v1875 = vshrl.u32 %v1874, 7
        %v1876 = vsub.s32 %v1873, %v1875
        %v1877 = vrot.slane %v1869, %v1876
        %v1879 = vunpack.c.l.s4 1934713408
        %v1880 = vunpack.c.0.s8 %v1879
        %v1881 = vlaneseq
        %v1882 = vshrl.u32 %v1881, 7
        %v1883 = vsub.s32 %v1880, %v1882
        %v1884 = vrot.slane %v1870, %v1883
        %v1885 = vcombine.high %v1861, 0.0
        %v1886 = vcombine.high %v1868, 0.0
        %v1887 = vcombine.high %v1877, 0.0
        %v1888 = vcombine.high %v1884, 0.0
        %v1889 = vcombine.low %v1861, %v1868
        %v1891 = vunpack.c.l.s4 1983009808
        %v1892 = vunpack.c.0.s8 %v1891
        %v1893 = vlaneseq
        %v1894 = vshrl.u32 %v1893, 7
        %v1895 = vsub.s32 %v1892, %v1894
        %v1896 = vrot.slane %v1889, %v1895
        %v1897 = vcombine.low %v1885, %v1886
        %v1899 = vunpack.c.l.s4 1983009808
        %v1900 = vunpack.c.0.s8 %v1899
        %v1901 = vlaneseq
        %v1902 = vshrl.u32 %v1901, 7
        %v1903 = vsub.s32 %v1900, %v1902
        %v1904 = vrot.slane %v1897, %v1903
        %v1905 = vcombine.low %v1877, %v1884
        %v1907 = vunpack.c.l.s4 1983009808
        %v1908 = vunpack.c.0.s8 %v1907
        %v1909 = vlaneseq
        %v1910 = vshrl.u32 %v1909, 7
        %v1911 = vsub.s32 %v1908, %v1910
        %v1912 = vrot.slane %v1905, %v1911
        %v1913 = vcombine.low %v1887, %v1888
        %v1915 = vunpack.c.l.s4 1983009808
        %v1916 = vunpack.c.0.s8 %v1915
        %v1917 = vlaneseq
        %v1918 = vshrl.u32 %v1917, 7
        %v1919 = vsub.s32 %v1916, %v1918
        %v1920 = vrot.slane %v1913, %v1919
        %v1921 = vcombine.low %v1896, %v1904
        %v1922 = vcombine.high %v1896, %v1904
        %v1924 = vunpack.c.l.s4 1934713408
        %v1925 = vunpack.c.0.s8 %v1924
        %v1926 = vlaneseq
        %v1927 = vshrl.u32 %v1926, 7
        %v1928 = vsub.s32 %v1925, %v1927
        %v1929 = vrot.slane %v1921, %v1928
        %v1931 = vunpack.c.l.s4 1934713408
        %v1932 = vunpack.c.0.s8 %v1931
        %v1933 = vlaneseq
        %v1934 = vshrl.u32 %v1933, 7
        %v1935 = vsub.s32 %v1932, %v1934
        %v1936 = vrot.slane %v1922, %v1935
        %v1937 = vcombine.low %v1912, %v1920
        %v1938 = vcombine.high %v1912, %v1920
        %v1940 = vunpack.c.l.s4 1934713408
        %v1941 = vunpack.c.0.s8 %v1940
        %v1942 = vlaneseq
        %v1943 = vshrl.u32 %v1942, 7
        %v1944 = vsub.s32 %v1941, %v1943
        %v1945 = vrot.slane %v1937, %v1944
        %v1947 = vunpack.c.l.s4 1934713408
        %v1948 = vunpack.c.0.s8 %v1947
        %v1949 = vlaneseq
        %v1950 = vshrl.u32 %v1949, 7
        %v1951 = vsub.s32 %v1948, %v1950
        %v1952 = vrot.slane %v1938, %v1951
        %v1953 = vcombine.low %v1929, %v1945
        %v1954 = vcombine.high %v1929, %v1945
        %v1955 = vcombine.low %v1936, %v1952
        %v1956 = vcombine.high %v1936, %v1952
        %v1957 = vpack.c.bf16 %v1953, %v1953
        %v1958 = vpack.c.bf16 %v1954, %v1954
        %v1959 = vpack.c.bf16 %v1955, %v1955
        %v1960 = vpack.c.bf16 %v1956, %v1956
        %1961 = vrot.lane.b32.xlu0 %v622, 64
        %v1962 = vpop.permute.xlu0 %1961
        %1963 = vrot.lane.b32.xlu0 %v1661, 64
        %v1964 = vpop.permute.xlu0 %1963
        %1965 = vrot.lane.b32.xlu0 %v1664, 64
        %v1966 = vpop.permute.xlu0 %1965
        %1967 = vrot.lane.b32.xlu0 %v1667, 64
        %v1968 = vpop.permute.xlu0 %1967
        %v1973 = vcombine.low %v1962, %v1966
        %v1974 = vcombine.high %v1962, %v1966
        %v1976 = vunpack.c.l.s4 1983009808
        %v1977 = vunpack.c.0.s8 %v1976
        %v1978 = vlaneseq
        %v1979 = vshrl.u32 %v1978, 7
        %v1980 = vsub.s32 %v1977, %v1979
        %v1981 = vrot.slane %v1973, %v1980
        %v1983 = vunpack.c.l.s4 1983009808
        %v1984 = vunpack.c.0.s8 %v1983
        %v1985 = vlaneseq
        %v1986 = vshrl.u32 %v1985, 7
        %v1987 = vsub.s32 %v1984, %v1986
        %v1988 = vrot.slane %v1974, %v1987
        %v1989 = vcombine.low %v1964, %v1968
        %v1990 = vcombine.high %v1964, %v1968
        %v1992 = vunpack.c.l.s4 1983009808
        %v1993 = vunpack.c.0.s8 %v1992
        %v1994 = vlaneseq
        %v1995 = vshrl.u32 %v1994, 7
        %v1996 = vsub.s32 %v1993, %v1995
        %v1997 = vrot.slane %v1989, %v1996
        %v1999 = vunpack.c.l.s4 1983009808
        %v2000 = vunpack.c.0.s8 %v1999
        %v2001 = vlaneseq
        %v2002 = vshrl.u32 %v2001, 7
        %v2003 = vsub.s32 %v2000, %v2002
        %v2004 = vrot.slane %v1990, %v2003
        %v2005 = vcombine.low %v1981, %v1997
        %v2006 = vcombine.high %v1981, %v1997
        %v2008 = vunpack.c.l.s4 1934713408
        %v2009 = vunpack.c.0.s8 %v2008
        %v2010 = vlaneseq
        %v2011 = vshrl.u32 %v2010, 7
        %v2012 = vsub.s32 %v2009, %v2011
        %v2013 = vrot.slane %v2005, %v2012
        %v2015 = vunpack.c.l.s4 1934713408
        %v2016 = vunpack.c.0.s8 %v2015
        %v2017 = vlaneseq
        %v2018 = vshrl.u32 %v2017, 7
        %v2019 = vsub.s32 %v2016, %v2018
        %v2020 = vrot.slane %v2006, %v2019
        %v2021 = vcombine.low %v1988, %v2004
        %v2022 = vcombine.high %v1988, %v2004
        %v2024 = vunpack.c.l.s4 1934713408
        %v2025 = vunpack.c.0.s8 %v2024
        %v2026 = vlaneseq
        %v2027 = vshrl.u32 %v2026, 7
        %v2028 = vsub.s32 %v2025, %v2027
        %v2029 = vrot.slane %v2021, %v2028
        %v2031 = vunpack.c.l.s4 1934713408
        %v2032 = vunpack.c.0.s8 %v2031
        %v2033 = vlaneseq
        %v2034 = vshrl.u32 %v2033, 7
        %v2035 = vsub.s32 %v2032, %v2034
        %v2036 = vrot.slane %v2022, %v2035
        %v2037 = vcombine.high %v2013, 0.0
        %v2038 = vcombine.high %v2020, 0.0
        %v2039 = vcombine.high %v2029, 0.0
        %v2040 = vcombine.high %v2036, 0.0
        %v2041 = vcombine.low %v2013, %v2020
        %v2043 = vunpack.c.l.s4 1983009808
        %v2044 = vunpack.c.0.s8 %v2043
        %v2045 = vlaneseq
        %v2046 = vshrl.u32 %v2045, 7
        %v2047 = vsub.s32 %v2044, %v2046
        %v2048 = vrot.slane %v2041, %v2047
        %v2049 = vcombine.low %v2037, %v2038
        %v2051 = vunpack.c.l.s4 1983009808
        %v2052 = vunpack.c.0.s8 %v2051
        %v2053 = vlaneseq
        %v2054 = vshrl.u32 %v2053, 7
        %v2055 = vsub.s32 %v2052, %v2054
        %v2056 = vrot.slane %v2049, %v2055
        %v2057 = vcombine.low %v2029, %v2036
        %v2059 = vunpack.c.l.s4 1983009808
        %v2060 = vunpack.c.0.s8 %v2059
        %v2061 = vlaneseq
        %v2062 = vshrl.u32 %v2061, 7
        %v2063 = vsub.s32 %v2060, %v2062
        %v2064 = vrot.slane %v2057, %v2063
        %v2065 = vcombine.low %v2039, %v2040
        %v2067 = vunpack.c.l.s4 1983009808
        %v2068 = vunpack.c.0.s8 %v2067
        %v2069 = vlaneseq
        %v2070 = vshrl.u32 %v2069, 7
        %v2071 = vsub.s32 %v2068, %v2070
        %v2072 = vrot.slane %v2065, %v2071
        %v2073 = vcombine.low %v2048, %v2056
        %v2074 = vcombine.high %v2048, %v2056
        %v2076 = vunpack.c.l.s4 1934713408
        %v2077 = vunpack.c.0.s8 %v2076
        %v2078 = vlaneseq
        %v2079 = vshrl.u32 %v2078, 7
        %v2080 = vsub.s32 %v2077, %v2079
        %v2081 = vrot.slane %v2073, %v2080
        %v2083 = vunpack.c.l.s4 1934713408
        %v2084 = vunpack.c.0.s8 %v2083
        %v2085 = vlaneseq
        %v2086 = vshrl.u32 %v2085, 7
        %v2087 = vsub.s32 %v2084, %v2086
        %v2088 = vrot.slane %v2074, %v2087
        %v2089 = vcombine.low %v2064, %v2072
        %v2090 = vcombine.high %v2064, %v2072
        %v2092 = vunpack.c.l.s4 1934713408
        %v2093 = vunpack.c.0.s8 %v2092
        %v2094 = vlaneseq
        %v2095 = vshrl.u32 %v2094, 7
        %v2096 = vsub.s32 %v2093, %v2095
        %v2097 = vrot.slane %v2089, %v2096
        %v2099 = vunpack.c.l.s4 1934713408
        %v2100 = vunpack.c.0.s8 %v2099
        %v2101 = vlaneseq
        %v2102 = vshrl.u32 %v2101, 7
        %v2103 = vsub.s32 %v2100, %v2102
        %v2104 = vrot.slane %v2090, %v2103
        %v2105 = vcombine.low %v2081, %v2097
        %v2106 = vcombine.high %v2081, %v2097
        %v2107 = vcombine.low %v2088, %v2104
        %v2108 = vcombine.high %v2088, %v2104
        %v2109 = vpack.c.bf16 %v2105, %v2105
        %v2110 = vpack.c.bf16 %v2106, %v2106
        %v2111 = vpack.c.bf16 %v2107, %v2107
        %v2112 = vpack.c.bf16 %v2108, %v2108
        %s2113 = scalar_lea.vmem %s550, 1
        %v2114 = vld [vmem:[%s2113] sm:$0x1]
        %v2115 = vunpack.c.l.bf16 %v2114
        %v2116 = vlaneseq
        %v2117 = vshrl.u32 %v2116, 7
        %v2118 = vsub.s32 0, %v2117
        %v2119 = vrot.slane %v2115, %v2118
        %v2121 = vsel %vm1085, %v1805, 0
        %v2124 = vsel %vm1085, %v1957, 0
        %2126 = vmatprep.subr.bf16.mxu0 0
        %2127 = vmatpush1.bf16.xpose.msra.mxu0 %v2124
        %2128 = vmatprep.subr.bf16.mxu0 0
        %2129 = vmatpush1.bf16.xpose.msra.mxu0 0
        %2130 = vmatprep.subr.bf16.mxu0 0
        %2131 = vmatpush1.bf16.xpose.msra.mxu0 0
        %2132 = vmatprep.subr.bf16.mxu0 0
        %2133 = vmatpush1.bf16.xpose.msra.mxu0 0
        %2134 = vmatprep.subr.bf16.mxu0 0
        %2135 = vmatpush1.bf16.xpose.msra.mxu0 0
        %2136 = vmatprep.subr.bf16.mxu0 0
        %2137 = vmatpush1.bf16.xpose.msra.mxu0 0
        %2138 = vmatprep.subr.bf16.mxu0 0
        %2139 = vmatpush1.bf16.xpose.msra.mxu0 0
        %2140 = vmatprep.subr.bf16.mxu0 0
        %2141 = vmatpush1.bf16.xpose.msra.mxu0 0
        %2142 = vmatprep.subr.bf16.mxu0 0
        %2143 = vmatpush1.bf16.xpose.msra.mxu0 0
        %2144 = vmatprep.subr.bf16.mxu0 0
        %2145 = vmatpush1.bf16.xpose.msra.mxu0 0
        %2146 = vmatprep.subr.bf16.mxu0 0
        %2147 = vmatpush1.bf16.xpose.msra.mxu0 0
        %2148 = vmatprep.subr.bf16.mxu0 0
        %2149 = vmatpush1.bf16.xpose.msra.mxu0 0
        %2150 = vmatprep.subr.bf16.mxu0 0
        %2151 = vmatpush1.bf16.xpose.msra.mxu0 0
        %2152 = vmatprep.subr.bf16.mxu0 0
        %2153 = vmatpush1.bf16.xpose.msra.mxu0 0
        %2154 = vmatprep.subr.bf16.mxu0 0
        %2155 = vmatpush1.bf16.xpose.msra.mxu0 0
        %2156 = vmatprep.subr.bf16.mxu0 0
        %2157 = vmatpush1.bf16.xpose.msra.mxu0 0
        %2158 = vmatprep.mubr.bf16.mxu0 0
        %2159 = vmatmul.mubr.bf16.gmra.mrb[0].mxu0 %v2121
        %v2160 = vpop.f32.mrb[0].mxu0
        %v2161 = vadd.f32 %v2119, %v2160
        %v2162 = vpop.f32.mrb[0].mxu0
        %v2163 = vpop.f32.mrb[0].mxu0
        %v2164 = vpop.f32.mrb[0].mxu0
        %2165 = vdwg.mxu0
        %v2167 = vsel %vm1085, %v1806, 0
        %v2170 = vsel %vm1085, %v1958, 0
        %2172 = vmatprep.subr.bf16.mxu0 0
        %2173 = vmatpush1.bf16.xpose.msra.mxu0 %v2170
        %2174 = vmatprep.subr.bf16.mxu0 0
        %2175 = vmatpush1.bf16.xpose.msra.mxu0 0
        %2176 = vmatprep.subr.bf16.mxu0 0
        %2177 = vmatpush1.bf16.xpose.msra.mxu0 0
        %2178 = vmatprep.subr.bf16.mxu0 0
        %2179 = vmatpush1.bf16.xpose.msra.mxu0 0
        %2180 = vmatprep.subr.bf16.mxu0 0
        %2181 = vmatpush1.bf16.xpose.msra.mxu0 0
        %2182 = vmatprep.subr.bf16.mxu0 0
        %2183 = vmatpush1.bf16.xpose.msra.mxu0 0
        %2184 = vmatprep.subr.bf16.mxu0 0
        %2185 = vmatpush1.bf16.xpose.msra.mxu0 0
        %2186 = vmatprep.subr.bf16.mxu0 0
        %2187 = vmatpush1.bf16.xpose.msra.mxu0 0
        %2188 = vmatprep.subr.bf16.mxu0 0
        %2189 = vmatpush1.bf16.xpose.msra.mxu0 0
        %2190 = vmatprep.subr.bf16.mxu0 0
        %2191 = vmatpush1.bf16.xpose.msra.mxu0 0
        %2192 = vmatprep.subr.bf16.mxu0 0
        %2193 = vmatpush1.bf16.xpose.msra.mxu0 0
        %2194 = vmatprep.subr.bf16.mxu0 0
        %2195 = vmatpush1.bf16.xpose.msra.mxu0 0
        %2196 = vmatprep.subr.bf16.mxu0 0
        %2197 = vmatpush1.bf16.xpose.msra.mxu0 0
        %2198 = vmatprep.subr.bf16.mxu0 0
        %2199 = vmatpush1.bf16.xpose.msra.mxu0 0
        %2200 = vmatprep.subr.bf16.mxu0 0
        %2201 = vmatpush1.bf16.xpose.msra.mxu0 0
        %2202 = vmatprep.subr.bf16.mxu0 0
        %2203 = vmatpush1.bf16.xpose.msra.mxu0 0
        %2204 = vmatprep.mubr.bf16.mxu0 0
        %2205 = vmatmul.mubr.bf16.gmra.mrb[0].mxu0 %v2167
        %v2206 = vpop.f32.mrb[0].mxu0
        %v2207 = vadd.f32 %v2119, %v2206
        %v2208 = vpop.f32.mrb[0].mxu0
        %v2209 = vpop.f32.mrb[0].mxu0
        %v2210 = vpop.f32.mrb[0].mxu0
        %2211 = vdwg.mxu0
        %v2213 = vsel %vm1085, %v1807, 0
        %v2216 = vsel %vm1085, %v1959, 0
        %2218 = vmatprep.subr.bf16.mxu0 0
        %2219 = vmatpush1.bf16.xpose.msra.mxu0 %v2216
        %2220 = vmatprep.subr.bf16.mxu0 0
        %2221 = vmatpush1.bf16.xpose.msra.mxu0 0
        %2222 = vmatprep.subr.bf16.mxu0 0
        %2223 = vmatpush1.bf16.xpose.msra.mxu0 0
        %2224 = vmatprep.subr.bf16.mxu0 0
        %2225 = vmatpush1.bf16.xpose.msra.mxu0 0
        %2226 = vmatprep.subr.bf16.mxu0 0
        %2227 = vmatpush1.bf16.xpose.msra.mxu0 0
        %2228 = vmatprep.subr.bf16.mxu0 0
        %2229 = vmatpush1.bf16.xpose.msra.mxu0 0
        %2230 = vmatprep.subr.bf16.mxu0 0
        %2231 = vmatpush1.bf16.xpose.msra.mxu0 0
        %2232 = vmatprep.subr.bf16.mxu0 0
        %2233 = vmatpush1.bf16.xpose.msra.mxu0 0
        %2234 = vmatprep.subr.bf16.mxu0 0
        %2235 = vmatpush1.bf16.xpose.msra.mxu0 0
        %2236 = vmatprep.subr.bf16.mxu0 0
        %2237 = vmatpush1.bf16.xpose.msra.mxu0 0
        %2238 = vmatprep.subr.bf16.mxu0 0
        %2239 = vmatpush1.bf16.xpose.msra.mxu0 0
        %2240 = vmatprep.subr.bf16.mxu0 0
        %2241 = vmatpush1.bf16.xpose.msra.mxu0 0
        %2242 = vmatprep.subr.bf16.mxu0 0
        %2243 = vmatpush1.bf16.xpose.msra.mxu0 0
        %2244 = vmatprep.subr.bf16.mxu0 0
        %2245 = vmatpush1.bf16.xpose.msra.mxu0 0
        %2246 = vmatprep.subr.bf16.mxu0 0
        %2247 = vmatpush1.bf16.xpose.msra.mxu0 0
        %2248 = vmatprep.subr.bf16.mxu0 0
        %2249 = vmatpush1.bf16.xpose.msra.mxu0 0
        %2250 = vmatprep.mubr.bf16.mxu0 0
        %2251 = vmatmul.mubr.bf16.gmra.mrb[0].mxu0 %v2213
        %v2252 = vpop.f32.mrb[0].mxu0
        %v2253 = vadd.f32 %v2119, %v2252
        %v2254 = vpop.f32.mrb[0].mxu0
        %v2255 = vpop.f32.mrb[0].mxu0
        %v2256 = vpop.f32.mrb[0].mxu0
        %2257 = vdwg.mxu0
        %v2259 = vsel %vm1085, %v1808, 0
        %v2262 = vsel %vm1085, %v1960, 0
        %2264 = vmatprep.subr.bf16.mxu0 0
        %2265 = vmatpush1.bf16.xpose.msra.mxu0 %v2262
        %2266 = vmatprep.subr.bf16.mxu0 0
        %2267 = vmatpush1.bf16.xpose.msra.mxu0 0
        %2268 = vmatprep.subr.bf16.mxu0 0
        %2269 = vmatpush1.bf16.xpose.msra.mxu0 0
        %2270 = vmatprep.subr.bf16.mxu0 0
        %2271 = vmatpush1.bf16.xpose.msra.mxu0 0
        %2272 = vmatprep.subr.bf16.mxu0 0
        %2273 = vmatpush1.bf16.xpose.msra.mxu0 0
        %2274 = vmatprep.subr.bf16.mxu0 0
        %2275 = vmatpush1.bf16.xpose.msra.mxu0 0
        %2276 = vmatprep.subr.bf16.mxu0 0
        %2277 = vmatpush1.bf16.xpose.msra.mxu0 0
        %2278 = vmatprep.subr.bf16.mxu0 0
        %2279 = vmatpush1.bf16.xpose.msra.mxu0 0
        %2280 = vmatprep.subr.bf16.mxu0 0
        %2281 = vmatpush1.bf16.xpose.msra.mxu0 0
        %2282 = vmatprep.subr.bf16.mxu0 0
        %2283 = vmatpush1.bf16.xpose.msra.mxu0 0
        %2284 = vmatprep.subr.bf16.mxu0 0
        %2285 = vmatpush1.bf16.xpose.msra.mxu0 0
        %2286 = vmatprep.subr.bf16.mxu0 0
        %2287 = vmatpush1.bf16.xpose.msra.mxu0 0
        %2288 = vmatprep.subr.bf16.mxu0 0
        %2289 = vmatpush1.bf16.xpose.msra.mxu0 0
        %2290 = vmatprep.subr.bf16.mxu0 0
        %2291 = vmatpush1.bf16.xpose.msra.mxu0 0
        %2292 = vmatprep.subr.bf16.mxu0 0
        %2293 = vmatpush1.bf16.xpose.msra.mxu0 0
        %2294 = vmatprep.subr.bf16.mxu0 0
        %2295 = vmatpush1.bf16.xpose.msra.mxu0 0
        %2296 = vmatprep.mubr.bf16.mxu0 0
        %2297 = vmatmul.mubr.bf16.gmra.mrb[0].mxu0 %v2259
        %v2298 = vpop.f32.mrb[0].mxu0
        %v2299 = vadd.f32 %v2119, %v2298
        %v2300 = vpop.f32.mrb[0].mxu0
        %v2301 = vpop.f32.mrb[0].mxu0
        %v2302 = vpop.f32.mrb[0].mxu0
        %2303 = vdwg.mxu0
        %v2304 = vsel %vm1085, %v2161, -inf
        %2305 = vmax.xlane.f32.xlu0 %v2304
        %v2306 = vpop.xlane.xlu0 %2305
        %v2307 = vsel %vm1085, %v2207, -inf
        %2308 = vmax.xlane.f32.xlu0 %v2307
        %v2309 = vpop.xlane.xlu0 %2308
        %v2310 = vsel %vm1085, %v2253, -inf
        %2311 = vmax.xlane.f32.xlu0 %v2310
        %v2312 = vpop.xlane.xlu0 %2311
        %v2313 = vsel %vm1085, %v2299, -inf
        %2314 = vmax.xlane.f32.xlu0 %v2313
        %v2315 = vpop.xlane.xlu0 %2314
        %v2316 = vsub.f32 %v2161, %v2306
        %v2317 = vsub.f32 %v2207, %v2309
        %v2318 = vsub.f32 %v2253, %v2312
        %v2319 = vsub.f32 %v2299, %v2315
        %v2320 = vmul.f32 %v2316, 1.442695
        %v2321 = vpow.pop %v2320
        %v2322 = vmul.f32 %v2317, 1.442695
        %v2323 = vpow.pop %v2322
        %v2324 = vmul.f32 %v2318, 1.442695
        %v2325 = vpow.pop %v2324
        %v2326 = vmul.f32 %v2319, 1.442695
        %v2327 = vpow.pop %v2326
        %v2328 = vsel %vm1085, %v2321, 0.0
        %2329 = vadd.xlane.f32.xlu0 %v2328
        %v2330 = vpop.xlane.xlu0 %2329
        %v2331 = vsel %vm1085, %v2323, 0.0
        %2332 = vadd.xlane.f32.xlu0 %v2331
        %v2333 = vpop.xlane.xlu0 %2332
        %v2334 = vsel %vm1085, %v2325, 0.0
        %2335 = vadd.xlane.f32.xlu0 %v2334
        %v2336 = vpop.xlane.xlu0 %2335
        %v2337 = vsel %vm1085, %v2327, 0.0
        %2338 = vadd.xlane.f32.xlu0 %v2337
        %v2339 = vpop.xlane.xlu0 %2338
        %v2340 = vrcp.pop %v2330
        %v2341 = vrcp.pop %v2333
        %v2342 = vrcp.pop %v2336
        %v2343 = vrcp.pop %v2339
        %v2344 = vmul.f32 %v2321, %v2340
        %v2345 = vmul.f32 %v2323, %v2341
        %v2346 = vmul.f32 %v2325, %v2342
        %v2347 = vmul.f32 %v2327, %v2343
        %v2348 = vpack.c.bf16 %v2344, %v2344
        %v2349 = vpack.c.bf16 %v2345, %v2345
        %v2350 = vpack.c.bf16 %v2346, %v2346
        %v2351 = vpack.c.bf16 %v2347, %v2347
        %v2353 = vsel %vm1085, %v2348, 0
        %v2356 = vsel %vm1321, %v2109, 0
        %2358 = vmatprep.subr.bf16.mxu0 0
        %2359 = vmatpush1.bf16.msra.mxu0 %v2356
        %2360 = vmatprep.subr.bf16.mxu0 0
        %2361 = vmatpush1.bf16.msra.mxu0 0
        %2362 = vmatprep.subr.bf16.mxu0 0
        %2363 = vmatpush1.bf16.msra.mxu0 0
        %2364 = vmatprep.subr.bf16.mxu0 0
        %2365 = vmatpush1.bf16.msra.mxu0 0
        %2366 = vmatprep.subr.bf16.mxu0 0
        %2367 = vmatpush1.bf16.msra.mxu0 0
        %2368 = vmatprep.subr.bf16.mxu0 0
        %2369 = vmatpush1.bf16.msra.mxu0 0
        %2370 = vmatprep.subr.bf16.mxu0 0
        %2371 = vmatpush1.bf16.msra.mxu0 0
        %2372 = vmatprep.subr.bf16.mxu0 0
        %2373 = vmatpush1.bf16.msra.mxu0 0
        %2374 = vmatprep.subr.bf16.mxu0 0
        %2375 = vmatpush1.bf16.msra.mxu0 0
        %2376 = vmatprep.subr.bf16.mxu0 0
        %2377 = vmatpush1.bf16.msra.mxu0 0
        %2378 = vmatprep.subr.bf16.mxu0 0
        %2379 = vmatpush1.bf16.msra.mxu0 0
        %2380 = vmatprep.subr.bf16.mxu0 0
        %2381 = vmatpush1.bf16.msra.mxu0 0
        %2382 = vmatprep.subr.bf16.mxu0 0
        %2383 = vmatpush1.bf16.msra.mxu0 0
        %2384 = vmatprep.subr.bf16.mxu0 0
        %2385 = vmatpush1.bf16.msra.mxu0 0
        %2386 = vmatprep.subr.bf16.mxu0 0
        %2387 = vmatpush1.bf16.msra.mxu0 0
        %2388 = vmatprep.subr.bf16.mxu0 0
        %2389 = vmatpush1.bf16.msra.mxu0 0
        %2390 = vmatprep.mubr.bf16.mxu0 0
        %2391 = vmatmul.mubr.bf16.gmra.mrb[0].mxu0 %v2353
        %v2392 = vpop.f32.mrb[0].mxu0
        %v2393 = vadd.f32 0.0, %v2392
        %v2394 = vpop.f32.mrb[0].mxu0
        %v2395 = vpop.f32.mrb[0].mxu0
        %v2396 = vpop.f32.mrb[0].mxu0
        %2397 = vdwg.mxu0
        %v2399 = vsel %vm1085, %v2349, 0
        %v2402 = vsel %vm1321, %v2110, 0
        %2404 = vmatprep.subr.bf16.mxu0 0
        %2405 = vmatpush1.bf16.msra.mxu0 %v2402
        %2406 = vmatprep.subr.bf16.mxu0 0
        %2407 = vmatpush1.bf16.msra.mxu0 0
        %2408 = vmatprep.subr.bf16.mxu0 0
        %2409 = vmatpush1.bf16.msra.mxu0 0
        %2410 = vmatprep.subr.bf16.mxu0 0
        %2411 = vmatpush1.bf16.msra.mxu0 0
        %2412 = vmatprep.subr.bf16.mxu0 0
        %2413 = vmatpush1.bf16.msra.mxu0 0
        %2414 = vmatprep.subr.bf16.mxu0 0
        %2415 = vmatpush1.bf16.msra.mxu0 0
        %2416 = vmatprep.subr.bf16.mxu0 0
        %2417 = vmatpush1.bf16.msra.mxu0 0
        %2418 = vmatprep.subr.bf16.mxu0 0
        %2419 = vmatpush1.bf16.msra.mxu0 0
        %2420 = vmatprep.subr.bf16.mxu0 0
        %2421 = vmatpush1.bf16.msra.mxu0 0
        %2422 = vmatprep.subr.bf16.mxu0 0
        %2423 = vmatpush1.bf16.msra.mxu0 0
        %2424 = vmatprep.subr.bf16.mxu0 0
        %2425 = vmatpush1.bf16.msra.mxu0 0
        %2426 = vmatprep.subr.bf16.mxu0 0
        %2427 = vmatpush1.bf16.msra.mxu0 0
        %2428 = vmatprep.subr.bf16.mxu0 0
        %2429 = vmatpush1.bf16.msra.mxu0 0
        %2430 = vmatprep.subr.bf16.mxu0 0
        %2431 = vmatpush1.bf16.msra.mxu0 0
        %2432 = vmatprep.subr.bf16.mxu0 0
        %2433 = vmatpush1.bf16.msra.mxu0 0
        %2434 = vmatprep.subr.bf16.mxu0 0
        %2435 = vmatpush1.bf16.msra.mxu0 0
        %2436 = vmatprep.mubr.bf16.mxu0 0
        %2437 = vmatmul.mubr.bf16.gmra.mrb[0].mxu0 %v2399
        %v2438 = vpop.f32.mrb[0].mxu0
        %v2439 = vadd.f32 0.0, %v2438
        %v2440 = vpop.f32.mrb[0].mxu0
        %v2441 = vpop.f32.mrb[0].mxu0
        %v2442 = vpop.f32.mrb[0].mxu0
        %2443 = vdwg.mxu0
        %v2445 = vsel %vm1085, %v2350, 0
        %v2448 = vsel %vm1321, %v2111, 0
        %2450 = vmatprep.subr.bf16.mxu0 0
        %2451 = vmatpush1.bf16.msra.mxu0 %v2448
        %2452 = vmatprep.subr.bf16.mxu0 0
        %2453 = vmatpush1.bf16.msra.mxu0 0
        %2454 = vmatprep.subr.bf16.mxu0 0
        %2455 = vmatpush1.bf16.msra.mxu0 0
        %2456 = vmatprep.subr.bf16.mxu0 0
        %2457 = vmatpush1.bf16.msra.mxu0 0
        %2458 = vmatprep.subr.bf16.mxu0 0
        %2459 = vmatpush1.bf16.msra.mxu0 0
        %2460 = vmatprep.subr.bf16.mxu0 0
        %2461 = vmatpush1.bf16.msra.mxu0 0
        %2462 = vmatprep.subr.bf16.mxu0 0
        %2463 = vmatpush1.bf16.msra.mxu0 0
        %2464 = vmatprep.subr.bf16.mxu0 0
        %2465 = vmatpush1.bf16.msra.mxu0 0
        %2466 = vmatprep.subr.bf16.mxu0 0
        %2467 = vmatpush1.bf16.msra.mxu0 0
        %2468 = vmatprep.subr.bf16.mxu0 0
        %2469 = vmatpush1.bf16.msra.mxu0 0
        %2470 = vmatprep.subr.bf16.mxu0 0
        %2471 = vmatpush1.bf16.msra.mxu0 0
        %2472 = vmatprep.subr.bf16.mxu0 0
        %2473 = vmatpush1.bf16.msra.mxu0 0
        %2474 = vmatprep.subr.bf16.mxu0 0
        %2475 = vmatpush1.bf16.msra.mxu0 0
        %2476 = vmatprep.subr.bf16.mxu0 0
        %2477 = vmatpush1.bf16.msra.mxu0 0
        %2478 = vmatprep.subr.bf16.mxu0 0
        %2479 = vmatpush1.bf16.msra.mxu0 0
        %2480 = vmatprep.subr.bf16.mxu0 0
        %2481 = vmatpush1.bf16.msra.mxu0 0
        %2482 = vmatprep.mubr.bf16.mxu0 0
        %2483 = vmatmul.mubr.bf16.gmra.mrb[0].mxu0 %v2445
        %v2484 = vpop.f32.mrb[0].mxu0
        %v2485 = vadd.f32 0.0, %v2484
        %v2486 = vpop.f32.mrb[0].mxu0
        %v2487 = vpop.f32.mrb[0].mxu0
        %v2488 = vpop.f32.mrb[0].mxu0
        %2489 = vdwg.mxu0
        %v2491 = vsel %vm1085, %v2351, 0
        %v2494 = vsel %vm1321, %v2112, 0
        %2496 = vmatprep.subr.bf16.mxu0 0
        %2497 = vmatpush1.bf16.msra.mxu0 %v2494
        %2498 = vmatprep.subr.bf16.mxu0 0
        %2499 = vmatpush1.bf16.msra.mxu0 0
        %2500 = vmatprep.subr.bf16.mxu0 0
        %2501 = vmatpush1.bf16.msra.mxu0 0
        %2502 = vmatprep.subr.bf16.mxu0 0
        %2503 = vmatpush1.bf16.msra.mxu0 0
        %2504 = vmatprep.subr.bf16.mxu0 0
        %2505 = vmatpush1.bf16.msra.mxu0 0
        %2506 = vmatprep.subr.bf16.mxu0 0
        %2507 = vmatpush1.bf16.msra.mxu0 0
        %2508 = vmatprep.subr.bf16.mxu0 0
        %2509 = vmatpush1.bf16.msra.mxu0 0
        %2510 = vmatprep.subr.bf16.mxu0 0
        %2511 = vmatpush1.bf16.msra.mxu0 0
        %2512 = vmatprep.subr.bf16.mxu0 0
        %2513 = vmatpush1.bf16.msra.mxu0 0
        %2514 = vmatprep.subr.bf16.mxu0 0
        %2515 = vmatpush1.bf16.msra.mxu0 0
        %2516 = vmatprep.subr.bf16.mxu0 0
        %2517 = vmatpush1.bf16.msra.mxu0 0
        %2518 = vmatprep.subr.bf16.mxu0 0
        %2519 = vmatpush1.bf16.msra.mxu0 0
        %2520 = vmatprep.subr.bf16.mxu0 0
        %2521 = vmatpush1.bf16.msra.mxu0 0
        %2522 = vmatprep.subr.bf16.mxu0 0
        %2523 = vmatpush1.bf16.msra.mxu0 0
        %2524 = vmatprep.subr.bf16.mxu0 0
        %2525 = vmatpush1.bf16.msra.mxu0 0
        %2526 = vmatprep.subr.bf16.mxu0 0
        %2527 = vmatpush1.bf16.msra.mxu0 0
        %2528 = vmatprep.mubr.bf16.mxu0 0
        %2529 = vmatmul.mubr.bf16.gmra.mrb[0].mxu0 %v2491
        %v2530 = vpop.f32.mrb[0].mxu0
        %v2531 = vadd.f32 0.0, %v2530
        %v2532 = vpop.f32.mrb[0].mxu0
        %v2533 = vpop.f32.mrb[0].mxu0
        %v2534 = vpop.f32.mrb[0].mxu0
        %2535 = vdwg.mxu0
        %v2536 = vcombine.low %v2393, %v2485
        %v2537 = vcombine.high %v2393, %v2485
        %v2539 = vunpack.c.l.s4 1983009808
        %v2540 = vunpack.c.0.s8 %v2539
        %v2541 = vlaneseq
        %v2542 = vshrl.u32 %v2541, 7
        %v2543 = vsub.s32 %v2540, %v2542
        %v2544 = vrot.slane %v2536, %v2543
        %v2546 = vunpack.c.l.s4 1983009808
        %v2547 = vunpack.c.0.s8 %v2546
        %v2548 = vlaneseq
        %v2549 = vshrl.u32 %v2548, 7
        %v2550 = vsub.s32 %v2547, %v2549
        %v2551 = vrot.slane %v2537, %v2550
        %v2552 = vcombine.low %v2439, %v2531
        %v2553 = vcombine.high %v2439, %v2531
        %v2555 = vunpack.c.l.s4 1983009808
        %v2556 = vunpack.c.0.s8 %v2555
        %v2557 = vlaneseq
        %v2558 = vshrl.u32 %v2557, 7
        %v2559 = vsub.s32 %v2556, %v2558
        %v2560 = vrot.slane %v2552, %v2559
        %v2562 = vunpack.c.l.s4 1983009808
        %v2563 = vunpack.c.0.s8 %v2562
        %v2564 = vlaneseq
        %v2565 = vshrl.u32 %v2564, 7
        %v2566 = vsub.s32 %v2563, %v2565
        %v2567 = vrot.slane %v2553, %v2566
        %v2568 = vcombine.low %v2544, %v2560
        %v2569 = vcombine.high %v2544, %v2560
        %v2571 = vunpack.c.l.s4 1934713408
        %v2572 = vunpack.c.0.s8 %v2571
        %v2573 = vlaneseq
        %v2574 = vshrl.u32 %v2573, 7
        %v2575 = vsub.s32 %v2572, %v2574
        %v2576 = vrot.slane %v2568, %v2575
        %v2578 = vunpack.c.l.s4 1934713408
        %v2579 = vunpack.c.0.s8 %v2578
        %v2580 = vlaneseq
        %v2581 = vshrl.u32 %v2580, 7
        %v2582 = vsub.s32 %v2579, %v2581
        %v2583 = vrot.slane %v2569, %v2582
        %v2584 = vcombine.low %v2551, %v2567
        %v2585 = vcombine.high %v2551, %v2567
        %v2587 = vunpack.c.l.s4 1934713408
        %v2588 = vunpack.c.0.s8 %v2587
        %v2589 = vlaneseq
        %v2590 = vshrl.u32 %v2589, 7
        %v2591 = vsub.s32 %v2588, %v2590
        %v2592 = vrot.slane %v2584, %v2591
        %v2594 = vunpack.c.l.s4 1934713408
        %v2595 = vunpack.c.0.s8 %v2594
        %v2596 = vlaneseq
        %v2597 = vshrl.u32 %v2596, 7
        %v2598 = vsub.s32 %v2595, %v2597
        %v2599 = vrot.slane %v2585, %v2598
        %v2600 = vcombine.high %v2576, 0.0
        %v2601 = vcombine.high %v2583, 0.0
        %v2602 = vcombine.high %v2592, 0.0
        %v2603 = vcombine.high %v2599, 0.0
        %v2604 = vcombine.low %v2576, %v2583
        %v2606 = vunpack.c.l.s4 1983009808
        %v2607 = vunpack.c.0.s8 %v2606
        %v2608 = vlaneseq
        %v2609 = vshrl.u32 %v2608, 7
        %v2610 = vsub.s32 %v2607, %v2609
        %v2611 = vrot.slane %v2604, %v2610
        %v2612 = vcombine.low %v2600, %v2601
        %v2614 = vunpack.c.l.s4 1983009808
        %v2615 = vunpack.c.0.s8 %v2614
        %v2616 = vlaneseq
        %v2617 = vshrl.u32 %v2616, 7
        %v2618 = vsub.s32 %v2615, %v2617
        %v2619 = vrot.slane %v2612, %v2618
        %v2620 = vcombine.low %v2592, %v2599
        %v2622 = vunpack.c.l.s4 1983009808
        %v2623 = vunpack.c.0.s8 %v2622
        %v2624 = vlaneseq
        %v2625 = vshrl.u32 %v2624, 7
        %v2626 = vsub.s32 %v2623, %v2625
        %v2627 = vrot.slane %v2620, %v2626
        %v2628 = vcombine.low %v2602, %v2603
        %v2630 = vunpack.c.l.s4 1983009808
        %v2631 = vunpack.c.0.s8 %v2630
        %v2632 = vlaneseq
        %v2633 = vshrl.u32 %v2632, 7
        %v2634 = vsub.s32 %v2631, %v2633
        %v2635 = vrot.slane %v2628, %v2634
        %v2636 = vcombine.low %v2611, %v2619
        %v2637 = vcombine.high %v2611, %v2619
        %v2639 = vunpack.c.l.s4 1934713408
        %v2640 = vunpack.c.0.s8 %v2639
        %v2641 = vlaneseq
        %v2642 = vshrl.u32 %v2641, 7
        %v2643 = vsub.s32 %v2640, %v2642
        %v2644 = vrot.slane %v2636, %v2643
        %v2646 = vunpack.c.l.s4 1934713408
        %v2647 = vunpack.c.0.s8 %v2646
        %v2648 = vlaneseq
        %v2649 = vshrl.u32 %v2648, 7
        %v2650 = vsub.s32 %v2647, %v2649
        %v2651 = vrot.slane %v2637, %v2650
        %v2652 = vcombine.low %v2627, %v2635
        %v2653 = vcombine.high %v2627, %v2635
        %v2655 = vunpack.c.l.s4 1934713408
        %v2656 = vunpack.c.0.s8 %v2655
        %v2657 = vlaneseq
        %v2658 = vshrl.u32 %v2657, 7
        %v2659 = vsub.s32 %v2656, %v2658
        %v2660 = vrot.slane %v2652, %v2659
        %v2662 = vunpack.c.l.s4 1934713408
        %v2663 = vunpack.c.0.s8 %v2662
        %v2664 = vlaneseq
        %v2665 = vshrl.u32 %v2664, 7
        %v2666 = vsub.s32 %v2663, %v2665
        %v2667 = vrot.slane %v2653, %v2666
        %v2668 = vcombine.low %v2644, %v2660
        %v2669 = vcombine.high %v2644, %v2660
        %v2670 = vcombine.low %v2651, %v2667
        %v2671 = vcombine.high %v2651, %v2667
        %2673 = vrot.lane.b32.xlu0 %v2669, 8
        %v2674 = vpop.permute.xlu0 %2673
        %2677 = vrot.lane.b32.xlu0 %v2670, 16
        %v2678 = vpop.permute.xlu0 %2677
        %2681 = vrot.lane.b32.xlu0 %v2671, 24
        %v2682 = vpop.permute.xlu0 %2681
        %v2684 = vsel %vm1085, %v2668, %v2674
        %v2685 = vsel %vm1652, %v2684, %v2678
        %v2686 = vsel %vm1654, %v2685, %v2682
        %v2687 = vpack.c.bf16 %v2686, %v2686
        %v2689 = vrot.slane %v2687, 4
        %vm2691 = vcmask 261124
        %2692 = vst.msk [vmem:[#allocation2] sm:$0xf0] %vm2691, %v2689
        %v2693 = vld [vmem:[#allocation2] sm:$0xff]
        %v2694 = vld [vmem:[%s4] sm:$0xf]
        %v2695 = vld [vmem:[%s4 + $0x4] sm:$0xf]
        %v2696 = vld [vmem:[%s4 + $0x8] sm:$0xf]
        %v2697 = vld [vmem:[%s4 + $0xc] sm:$0xf]
        %v2698 = vld [vmem:[#allocation6] sm:$0x1]
        %v2700 = vlaneseq
        %v2701 = vshrl.u32 %v2700, 7
        %v2702 = vsub.s32 0, %v2701
        %v2703 = vrot.slane %v2698, %v2702
        %v2709 = vunpack.c.l.b16 %v2694
        %v2710 = vunpack.c.l.b16 %v2695
        %v2711 = vunpack.c.l.b16 %v2696
        %v2712 = vunpack.c.l.b16 %v2697
        %v2713 = vpack.c.b16 %v2710, %v2709
        %v2714 = vpack.c.b16 %v2712, %v2711
        %v2718 = vsel %vm580, %v2693, 0
        %2720 = vmatprep.subr.bf16.mxu0 0
        %2721 = vmatpush1.bf16.msra.mxu0 %v2713
        %2722 = vmatprep.subr.bf16.mxu0 0
        %2723 = vmatpush1.bf16.msra.mxu0 %v2714
        %2724 = vmatprep.subr.bf16.mxu0 0
        %2725 = vmatpush1.bf16.msra.mxu0 0
        %2726 = vmatprep.subr.bf16.mxu0 0
        %2727 = vmatpush1.bf16.msra.mxu0 0
        %2728 = vmatprep.subr.bf16.mxu0 0
        %2729 = vmatpush1.bf16.msra.mxu0 0
        %2730 = vmatprep.subr.bf16.mxu0 0
        %2731 = vmatpush1.bf16.msra.mxu0 0
        %2732 = vmatprep.subr.bf16.mxu0 0
        %2733 = vmatpush1.bf16.msra.mxu0 0
        %2734 = vmatprep.subr.bf16.mxu0 0
        %2735 = vmatpush1.bf16.msra.mxu0 0
        %2736 = vmatprep.subr.bf16.mxu0 0
        %2737 = vmatpush1.bf16.msra.mxu0 0
        %2738 = vmatprep.subr.bf16.mxu0 0
        %2739 = vmatpush1.bf16.msra.mxu0 0
        %2740 = vmatprep.subr.bf16.mxu0 0
        %2741 = vmatpush1.bf16.msra.mxu0 0
        %2742 = vmatprep.subr.bf16.mxu0 0
        %2743 = vmatpush1.bf16.msra.mxu0 0
        %2744 = vmatprep.subr.bf16.mxu0 0
        %2745 = vmatpush1.bf16.msra.mxu0 0
        %2746 = vmatprep.subr.bf16.mxu0 0
        %2747 = vmatpush1.bf16.msra.mxu0 0
        %2748 = vmatprep.subr.bf16.mxu0 0
        %2749 = vmatpush1.bf16.msra.mxu0 0
        %2750 = vmatprep.subr.bf16.mxu0 0
        %2751 = vmatpush1.bf16.msra.mxu0 0
        %2752 = vmatprep.mubr.bf16.mxu0 0
        %2753 = vmatmul.mubr.bf16.gmra.mrb[0].mxu0 %v2718
        %v2754 = vpop.f32.mrb[0].mxu0
        %v2755 = vadd.f32 %v2703, %v2754
        %v2756 = vpop.f32.mrb[0].mxu0
        %v2757 = vpop.f32.mrb[0].mxu0
        %v2758 = vadd.f32 %v2703, %v2757
        %v2759 = vpop.f32.mrb[0].mxu0
        %2760 = vdwg.mxu0
        %v2761 = vadd.f32 %v554, %v2755
        %v2762 = vadd.f32 %v555, %v2758
        %v2763 = vld [vmem:[#allocation8] sm:$0x1]
        %v2764 = vld [vmem:[#allocation9] sm:$0x1]
        %v2765 = vsel %vm580, %v2761, 0.0
        %2766 = vadd.xlane.f32.xlu0 %v2765
        %v2767 = vpop.xlane.xlu0 %2766
        %v2768 = vsel %vm580, %v2762, 0.0
        %2769 = vadd.xlane.f32.xlu0 %v2768
        %v2770 = vpop.xlane.xlu0 %2769
        %v2771 = vrcp.pop 32.0
        %v2772 = vmul.f32 %v2767, %v2771
        %v2773 = vmul.f32 %v2770, %v2771
        %v2774 = vsub.f32 %v2761, %v2772
        %v2775 = vsub.f32 %v2762, %v2773
        %v2776 = vmul.f32 %v2774, %v2774
        %v2777 = vmul.f32 %v2775, %v2775
        %v2778 = vsel %vm580, %v2776, 0.0
        %2779 = vadd.xlane.f32.xlu0 %v2778
        %v2780 = vpop.xlane.xlu0 %2779
        %v2781 = vsel %vm580, %v2777, 0.0
        %2782 = vadd.xlane.f32.xlu0 %v2781
        %v2783 = vpop.xlane.xlu0 %2782
        %v2784 = vmul.f32 %v2780, %v2771
        %v2785 = vmul.f32 %v2783, %v2771
        %v2786 = vadd.f32 %v2784, 1e-12
        %v2787 = vadd.f32 %v2785, 1e-12
        %v2788 = vrsqrt.pop %v2786
        %v2789 = vrsqrt.pop %v2787
        %v2790 = vmul.f32 %v2774, %v2788
        %v2791 = vmul.f32 %v2775, %v2789
        %v2793 = vlaneseq
        %v2794 = vshrl.u32 %v2793, 7
        %v2795 = vsub.s32 0, %v2794
        %v2796 = vrot.slane %v2763, %v2795
        %v2798 = vmul.f32 %v2796, %v2790
        %v2799 = vmul.f32 %v2796, %v2791
        %v2801 = vlaneseq
        %v2802 = vshrl.u32 %v2801, 7
        %v2803 = vsub.s32 0, %v2802
        %v2804 = vrot.slane %v2764, %v2803
        %v2806 = vadd.f32 %v2798, %v2804
        %v2807 = vadd.f32 %v2799, %v2804
        %v2808 = vpack.c.bf16 %v2807, %v2806
        %v2809 = vld [vmem:[#allocation11] sm:$0xf]
        %v2810 = vld [vmem:[#allocation11 + $0x4] sm:$0xf]
        %v2811 = vld [vmem:[#allocation11 + $0x8] sm:$0xf]
        %v2812 = vld [vmem:[#allocation11 + $0xc] sm:$0xf]
        %v2813 = vld [vmem:[%s9] sm:$0x1]
        %v2815 = vlaneseq
        %v2816 = vshrl.u32 %v2815, 7
        %v2817 = vsub.s32 0, %v2816
        %v2818 = vrot.slane %v2813, %v2817
        %v2824 = vunpack.c.l.b16 %v2809
        %v2825 = vunpack.c.l.b16 %v2810
        %v2826 = vunpack.c.l.b16 %v2811
        %v2827 = vunpack.c.l.b16 %v2812
        %v2828 = vpack.c.b16 %v2825, %v2824
        %v2829 = vpack.c.b16 %v2827, %v2826
        %v2833 = vsel %vm580, %v2808, 0
        %2835 = vmatprep.subr.bf16.mxu0 0
        %2836 = vmatpush1.bf16.msra.mxu0 %v2828
        %2837 = vmatprep.subr.bf16.mxu0 0
        %2838 = vmatpush1.bf16.msra.mxu0 %v2829
        %2839 = vmatprep.subr.bf16.mxu0 0
        %2840 = vmatpush1.bf16.msra.mxu0 0
        %2841 = vmatprep.subr.bf16.mxu0 0
        %2842 = vmatpush1.bf16.msra.mxu0 0
        %2843 = vmatprep.subr.bf16.mxu0 0
        %2844 = vmatpush1.bf16.msra.mxu0 0
        %2845 = vmatprep.subr.bf16.mxu0 0
        %2846 = vmatpush1.bf16.msra.mxu0 0
        %2847 = vmatprep.subr.bf16.mxu0 0
        %2848 = vmatpush1.bf16.msra.mxu0 0
        %2849 = vmatprep.subr.bf16.mxu0 0
        %2850 = vmatpush1.bf16.msra.mxu0 0
        %2851 = vmatprep.subr.bf16.mxu0 0
        %2852 = vmatpush1.bf16.msra.mxu0 0
        %2853 = vmatprep.subr.bf16.mxu0 0
        %2854 = vmatpush1.bf16.msra.mxu0 0
        %2855 = vmatprep.subr.bf16.mxu0 0
        %2856 = vmatpush1.bf16.msra.mxu0 0
        %2857 = vmatprep.subr.bf16.mxu0 0
        %2858 = vmatpush1.bf16.msra.mxu0 0
        %2859 = vmatprep.subr.bf16.mxu0 0
        %2860 = vmatpush1.bf16.msra.mxu0 0
        %2861 = vmatprep.subr.bf16.mxu0 0
        %2862 = vmatpush1.bf16.msra.mxu0 0
        %2863 = vmatprep.subr.bf16.mxu0 0
        %2864 = vmatpush1.bf16.msra.mxu0 0
        %2865 = vmatprep.subr.bf16.mxu0 0
        %2866 = vmatpush1.bf16.msra.mxu0 0
        %2867 = vmatprep.mubr.bf16.mxu0 0
        %2868 = vmatmul.mubr.bf16.gmra.mrb[0].mxu0 %v2833
        %v2869 = vpop.f32.mrb[0].mxu0
        %v2870 = vadd.f32 %v2818, %v2869
        %v2871 = vpop.f32.mrb[0].mxu0
        %v2872 = vpop.f32.mrb[0].mxu0
        %v2873 = vadd.f32 %v2818, %v2872
        %v2874 = vpop.f32.mrb[0].mxu0
        %2875 = vdwg.mxu0
        %v2876 = vmax.f32 %v2870, 0.0
        %v2877 = vmax.f32 %v2873, 0.0
        %v2878 = vpack.c.bf16 %v2877, %v2876
        %v2879 = vld [vmem:[%s10] sm:$0xf]
        %v2880 = vld [vmem:[%s10 + $0x4] sm:$0xf]
        %v2881 = vld [vmem:[%s10 + $0x8] sm:$0xf]
        %v2882 = vld [vmem:[%s10 + $0xc] sm:$0xf]
        %v2883 = vld [vmem:[%s10 + $0x10] sm:$0xf]
        %v2884 = vld [vmem:[%s10 + $0x14] sm:$0xf]
        %v2885 = vld [vmem:[%s10 + $0x18] sm:$0xf]
        %v2886 = vld [vmem:[%s10 + $0x1c] sm:$0xf]
        %v2887 = vld [vmem:[%s11] sm:$0x1]
        %v2889 = vlaneseq
        %v2890 = vshrl.u32 %v2889, 7
        %v2891 = vsub.s32 0, %v2890
        %v2892 = vrot.slane %v2887, %v2891
        %v2902 = vunpack.c.l.b16 %v2879
        %v2903 = vunpack.c.l.b16 %v2880
        %v2904 = vunpack.c.l.b16 %v2881
        %v2905 = vunpack.c.l.b16 %v2882
        %v2906 = vunpack.c.l.b16 %v2883
        %v2907 = vunpack.c.l.b16 %v2884
        %v2908 = vunpack.c.l.b16 %v2885
        %v2909 = vunpack.c.l.b16 %v2886
        %v2910 = vpack.c.b16 %v2903, %v2902
        %v2911 = vpack.c.b16 %v2905, %v2904
        %v2912 = vpack.c.b16 %v2907, %v2906
        %v2913 = vpack.c.b16 %v2909, %v2908
        %vm2918 = vcmask 523264
        %v2920 = vsel %vm2918, %v2878, 0
        %2922 = vmatprep.subr.bf16.mxu0 0
        %2923 = vmatpush1.bf16.msra.mxu0 %v2910
        %2924 = vmatprep.subr.bf16.mxu0 0
        %2925 = vmatpush1.bf16.msra.mxu0 %v2911
        %2926 = vmatprep.subr.bf16.mxu0 0
        %2927 = vmatpush1.bf16.msra.mxu0 %v2912
        %2928 = vmatprep.subr.bf16.mxu0 0
        %2929 = vmatpush1.bf16.msra.mxu0 %v2913
        %2930 = vmatprep.subr.bf16.mxu0 0
        %2931 = vmatpush1.bf16.msra.mxu0 0
        %2932 = vmatprep.subr.bf16.mxu0 0
        %2933 = vmatpush1.bf16.msra.mxu0 0
        %2934 = vmatprep.subr.bf16.mxu0 0
        %2935 = vmatpush1.bf16.msra.mxu0 0
        %2936 = vmatprep.subr.bf16.mxu0 0
        %2937 = vmatpush1.bf16.msra.mxu0 0
        %2938 = vmatprep.subr.bf16.mxu0 0
        %2939 = vmatpush1.bf16.msra.mxu0 0
        %2940 = vmatprep.subr.bf16.mxu0 0
        %2941 = vmatpush1.bf16.msra.mxu0 0
        %2942 = vmatprep.subr.bf16.mxu0 0
        %2943 = vmatpush1.bf16.msra.mxu0 0
        %2944 = vmatprep.subr.bf16.mxu0 0
        %2945 = vmatpush1.bf16.msra.mxu0 0
        %2946 = vmatprep.subr.bf16.mxu0 0
        %2947 = vmatpush1.bf16.msra.mxu0 0
        %2948 = vmatprep.subr.bf16.mxu0 0
        %2949 = vmatpush1.bf16.msra.mxu0 0
        %2950 = vmatprep.subr.bf16.mxu0 0
        %2951 = vmatpush1.bf16.msra.mxu0 0
        %2952 = vmatprep.subr.bf16.mxu0 0
        %2953 = vmatpush1.bf16.msra.mxu0 0
        %2954 = vmatprep.mubr.bf16.mxu0 0
        %2955 = vmatmul.mubr.bf16.gmra.mrb[0].mxu0 %v2920
        %v2956 = vpop.f32.mrb[0].mxu0
        %v2957 = vadd.f32 %v2892, %v2956
        %v2958 = vpop.f32.mrb[0].mxu0
        %v2959 = vpop.f32.mrb[0].mxu0
        %v2960 = vadd.f32 %v2892, %v2959
        %v2961 = vpop.f32.mrb[0].mxu0
        %2962 = vdwg.mxu0
        %v2963 = vadd.f32 %v2957, %v2806
        %v2964 = vadd.f32 %v2960, %v2807
        %v2965 = vld [vmem:[%s12] sm:$0x1]
        %v2966 = vld [vmem:[%s13] sm:$0x1]
        %v2967 = vsel %vm580, %v2963, 0.0
        %2968 = vadd.xlane.f32.xlu0 %v2967
        %v2969 = vpop.xlane.xlu0 %2968
        %v2970 = vsel %vm580, %v2964, 0.0
        %2971 = vadd.xlane.f32.xlu0 %v2970
        %v2972 = vpop.xlane.xlu0 %2971
        %v2973 = vmul.f32 %v2969, %v2771
        %v2974 = vmul.f32 %v2972, %v2771
        %v2975 = vsub.f32 %v2963, %v2973
        %v2976 = vsub.f32 %v2964, %v2974
        %v2977 = vmul.f32 %v2975, %v2975
        %v2978 = vmul.f32 %v2976, %v2976
        %v2979 = vsel %vm580, %v2977, 0.0
        %2980 = vadd.xlane.f32.xlu0 %v2979
        %v2981 = vpop.xlane.xlu0 %2980
        %v2982 = vsel %vm580, %v2978, 0.0
        %2983 = vadd.xlane.f32.xlu0 %v2982
        %v2984 = vpop.xlane.xlu0 %2983
        %v2985 = vmul.f32 %v2981, %v2771
        %v2986 = vmul.f32 %v2984, %v2771
        %v2987 = vadd.f32 %v2985, 1e-12
        %v2988 = vadd.f32 %v2986, 1e-12
        %v2989 = vrsqrt.pop %v2987
        %v2990 = vrsqrt.pop %v2988
        %v2991 = vmul.f32 %v2975, %v2989
        %v2992 = vmul.f32 %v2976, %v2990
        %v2994 = vlaneseq
        %v2995 = vshrl.u32 %v2994, 7
        %v2996 = vsub.s32 0, %v2995
        %v2997 = vrot.slane %v2965, %v2996
        %v2999 = vmul.f32 %v2997, %v2991
        %v3000 = vmul.f32 %v2997, %v2992
        %v3002 = vlaneseq
        %v3003 = vshrl.u32 %v3002, 7
        %v3004 = vsub.s32 0, %v3003
        %v3005 = vrot.slane %v2966, %v3004
        %v3007 = vadd.f32 %v2999, %v3005
        %v3008 = vadd.f32 %v3000, %v3005
        %3009 = vst.msk [vmem:[%s540] sm:$0xff] %vm580, %v3007
        %3010 = vst.msk [vmem:[%s540 + $0x8] sm:$0xff] %vm580, %v3008
        %s3011 = sand.u32 %s343, 1
        %s3012 = scalar_lea.sflag [#allocation5], %s3011
        %s3013 = sand.u32 %s343, 1
        %s3014 = smul.addr %s3013, 16
        %s3015 = scalar_lea.vmem [#allocation12], %s3014
        // Predicated region
        $region97: #{tpu_custom_call.1} parent=75 // pred_check
          %p3016 = pneg %p353
        $region98: #{tpu_custom_call.1} parent=75 // pred_check_branch
          %3018 = sbr.rel (%p3016) target = $region100
        $region99: #{tpu_custom_call.1} parent=75 // pred_region
          %s3019 = smul.u32 2, %s31
          %s3021 = ssub.s32 256, 256
          %3022 = vsyncadd %s3012, %s3021
          %s3023 = smul.addr %s3019, 128
          %s3024 = scalar_lea.hbm %s14, %s3023
          %s3025 = sshll.u32 %s3015, 4
          %s3026 = int_to_ptr.vmem [resolvable:$true] %s3025
          %3031 = dma.vmem_to_hbm [thread:$0]  %s3026, 256, %s3024, %s3012, 128, 128, 8
        $region100: #{tpu_custom_call.1} parent=75 // pred_fallthru
          _
      $region76: #{tpu_custom_call.1} parent=5 // pred_fallthru
        _
      %p3032 = scmp.le.s32.totalorder 2, %s26
      // Predicated region
      $region101: #{tpu_custom_call.1} parent=5 // pred_check
        %p3033 = pneg %p3032
      $region102: #{tpu_custom_call.1} parent=5 // pred_check_branch
        %3035 = sbr.rel (%p3033) target = $region104
      $region103: #{tpu_custom_call.1} parent=5 // pred_region
        %s3036 = ssub.s32 %s26, 2
        // Predicated region
        $region105: #{tpu_custom_call.1} parent=103 // pred_check
          %p3037 = pneg %p359
        $region106: #{tpu_custom_call.1} parent=103 // pred_check_branch
          %3039 = sbr.rel (%p3037) target = $region108
        $region107: #{tpu_custom_call.1} parent=103 // pred_region
          %s3040 = sand.u32 %s344, 1
          %s3041 = scalar_lea.sflag [#allocation5], %s3040
          %s3042 = sand.u32 %s344, 1
          %s3043 = smul.addr %s3042, 16
          %s3044 = scalar_lea.vmem [#allocation12], %s3043
          %3045 = dma.done %s3041, 256
        $region108: #{tpu_custom_call.1} parent=103 // pred_fallthru
          _
      $region104: #{tpu_custom_call.1} parent=5 // pred_fallthru
        _
    $region6: #{tpu_custom_call.1} parent=1 // loop_footer
      %s30 = sadd.s32 1, %s26
    $region7: #{tpu_custom_call.1} parent=1 // loop_footer_branch
      %25 = sbr.rel target = $region3
    $region8: #{tpu_custom_call.1} parent=1 // loop_exit
      _
    %3046 = vsyncpa [#allocation4], 1
    %s3047 = scalar_lea.sflag [#allocation4], 1
    %3048 = vsyncpa %s3047, 1
    %3049 = vsyncpa [#allocation7], 1
    %3050 = vsyncpa [#allocation10], 1
    %3051 = vsyncpa [#allocation5], 1
    %s3052 = scalar_lea.sflag [#allocation5], 1
    %3053 = vsyncpa %s3052, 1

// kernel: tpu_custom_call.1
$region0: #{tpu_custom_call.1}
  #allocation0 [shape = 'u32[]', space=smem, size = 0x4, offset = 0x4, fixed_abs, tag = 'smem constant byte address 0x4 - core index']
  #allocation1 [shape = 'u32[144,128]{1,0:T(1,128)}', space=vmem, size = 0x12000, scoped, tag = 'internal scratch']
  #allocation2 [shape = 'bf16[16,32]{1,0:T(16,128)(2,1)}', space=vmem, size = 0x1000, scoped, tag = 'scratch operand']
  %s0 = inlined_call_operand.vmem [shape: f32[32,32], index: 0, kind: input, shape index: {}]
  %s1 = inlined_call_operand.vmem [shape: bf16[4,1,8], index: 1, kind: input, shape index: {}]
  %s2 = inlined_call_operand.vmem [shape: bf16[32,96], index: 2, kind: input, shape index: {}]
  %s3 = inlined_call_operand.hbm [shape: f32[1,96], index: 3, kind: input, shape index: {}]
  %s4 = inlined_call_operand.vmem [shape: bf16[32,32], index: 4, kind: input, shape index: {}]
  %s5 = inlined_call_operand.hbm [shape: f32[1,32], index: 5, kind: input, shape index: {}]
  %s6 = inlined_call_operand.hbm [shape: f32[1,32], index: 6, kind: input, shape index: {}]
  %s7 = inlined_call_operand.hbm [shape: f32[1,32], index: 7, kind: input, shape index: {}]
  %s8 = inlined_call_operand.hbm [shape: bf16[32,64], index: 8, kind: input, shape index: {}]
  %s9 = inlined_call_operand.vmem [shape: f32[1,64], index: 9, kind: input, shape index: {}]
  %s10 = inlined_call_operand.vmem [shape: bf16[64,32], index: 10, kind: input, shape index: {}]
  %s11 = inlined_call_operand.vmem [shape: f32[1,32], index: 11, kind: input, shape index: {}]
  %s12 = inlined_call_operand.vmem [shape: f32[1,32], index: 12, kind: input, shape index: {}]
  %s13 = inlined_call_operand.vmem [shape: f32[1,32], index: 13, kind: input, shape index: {}]
  %s14 = inlined_call_operand.hbm [shape: f32[32,32], index: 14, kind: output, shape index: {}]
  %s15 = sld [smem:[#allocation0]]
  $region109: #{tpu_custom_call.1} parent=0
    _
  %s17 = ssub.s32 1, %s15
  %s18 = scalar_select 0, %s17, %s15
  $region1: #{tpu_custom_call.1} parent=0
    #allocation3 [shape = 'u8[512]{0}', space=vmem, size = 0x400, scoped, tag = 'input window, operand 3, single buffered']
    #allocation4 [shape = 's32[2]{0}', space=sflag, size = 0x8, scoped, tag = 'scoped memory for tpu_custom_call.1']
    #allocation5 [shape = 's32[2]{0}', space=sflag, size = 0x8, scoped, tag = 'scoped memory for tpu_custom_call.1']
    #allocation6 [shape = 'u8[512]{0}', space=vmem, size = 0x400, scoped, tag = 'input window, operand 5, single buffered']
    #allocation7 [shape = 's32[1]{0}', space=sflag, size = 0x4, scoped, tag = 'scoped memory for tpu_custom_call.1']
    #allocation8 [shape = 'u8[512]{0}', space=vmem, size = 0x400, scoped, tag = 'input window, operand 6, single buffered']
    #allocation9 [shape = 'u8[512]{0}', space=vmem, size = 0x400, scoped, tag = 'input window, operand 7, single buffered']
    #allocation10 [shape = 's32[1]{0}', space=sflag, size = 0x4, scoped, tag = 'scoped memory for tpu_custom_call.1']
    #allocation11 [shape = 'u8[8192]{0}', space=vmem, size = 0x2000, scoped, tag = 'input window, operand 8, single buffered']
    #allocation12 [shape = 'u8[16384]{0}', space=vmem, size = 0x4000, scoped, tag = 'output window, operand 0']
    %19 = vsyncpa [#allocation4], 0
    %20 = vsyncpa [#allocation7], 0
    %21 = vsyncpa [#allocation10], 0
    %22 = vsyncpa [#allocation5], 0
    %s23 = scalar_lea.sflag [#allocation5], 1
    %24 = vsyncpa %s23, 0
    loop: start=0, step=1, limit=4
    $region2: #{tpu_custom_call.1} parent=1 // loop_pre_header
      _
    $region3: #{tpu_custom_call.1} parent=1 // loop_header
      %s26 = sphi 0, %s30
      %p27 = scmp.ge.s32.totalorder %s26, 4
      %s36 = sphi 0, %s38
      %s39 = sphi 0, %s36
      %s40 = sphi 0, %s39
      %s56 = sphi 0, %s40
      %s62 = sphi 0, %s64
      %s65 = sphi 0, %s62
      %s66 = sphi 0, %s65
      %s82 = sphi 0, %s66
      %s86 = sphi 0, %s86
      %s88 = sphi 0, %s86
      %s89 = sphi 0, %s88
      %s103 = sphi 0, %s89
      %s107 = sphi 0, %s107
      %s109 = sphi 0, %s107
      %s110 = sphi 0, %s109
      %s124 = sphi 0, %s110
      %s128 = sphi 0, %s128
      %s130 = sphi 0, %s128
      %s131 = sphi 0, %s130
      %s145 = sphi 0, %s131
      %s149 = sphi 0, %s149
      %s151 = sphi 0, %s149
      %s152 = sphi 0, %s151
      %s166 = sphi 0, %s152
      %s170 = sphi 0, %s170
      %s172 = sphi 0, %s170
      %s173 = sphi 0, %s172
      %s187 = sphi 0, %s173
      %s191 = sphi 0, %s191
      %s193 = sphi 0, %s191
      %s194 = sphi 0, %s193
      %s208 = sphi 0, %s194
      %s212 = sphi 0, %s212
      %s214 = sphi 0, %s212
      %s215 = sphi 0, %s214
      %s229 = sphi 0, %s215
      %s233 = sphi 0, %s233
      %s235 = sphi 0, %s233
      %s236 = sphi 0, %s235
      %s250 = sphi 0, %s236
      %s254 = sphi 0, %s254
      %s256 = sphi 0, %s254
      %s257 = sphi 0, %s256
      %s271 = sphi 0, %s257
      %s275 = sphi 0, %s275
      %s277 = sphi 0, %s275
      %s278 = sphi 0, %s277
      %s292 = sphi 0, %s278
      %s296 = sphi 0, %s296
      %s298 = sphi 0, %s296
      %s299 = sphi 0, %s298
      %s313 = sphi 0, %s299
      %s317 = sphi 0, %s317
      %s319 = sphi 0, %s317
      %s320 = sphi 0, %s319
      %s334 = sphi 0, %s320
      %s340 = sphi 0, %s342
      %s343 = sphi 0, %s340
      %s344 = sphi 0, %s343
      %s360 = sphi 0, %s344
    $region4: #{tpu_custom_call.1} parent=1 // loop_header_branch
      %29 = sbr.rel (%p27) target = $region8
    $region5: #{tpu_custom_call.1} parent=1 // loop_body
      %s31 = ssub.s32 %s26, 1
      %s32 = ssub.s32 %s26, 2
      %s33 = sadd.s32 %s26, 1
      %s34 = ssub.s32 %s26, %s33
      %p35 = scmp.eq.s32.totalorder %s34, 0
      %s37 = sadd.s32 %s36, 1
      %s38 = scalar_select %p35, %s36, %s37
      %p41 = pneg %p35
      %p42 = scmp.eq.s32.totalorder %s26, 1
      %p43 = por %p41, %p42
      %p44 = scmp.ne.s32.totalorder %s36, %s39
      %p45 = scmp.eq.s32.totalorder %s26, 0
      %p46 = por %p44, %p45
      %p47 = scmp.ne.s32.totalorder %s36, %s39
      %p48 = scmp.eq.s32.totalorder %s31, 1
      %p49 = por %p47, %p48
      %p50 = scmp.ne.s32.totalorder %s39, %s40
      %p51 = scmp.eq.s32.totalorder %s31, 0
      %p52 = por %p50, %p51
      %p53 = scmp.ne.s32.totalorder %s39, %s40
      %p54 = scmp.eq.s32.totalorder %s32, 1
      %p55 = por %p53, %p54
      %p57 = scmp.ne.s32.totalorder %s40, %s56
      %p58 = scmp.eq.s32.totalorder %s32, 0
      %p59 = por %p57, %p58
      %s60 = ssub.s32 %s26, %s33
      %p61 = scmp.eq.s32.totalorder %s60, 0
      %s63 = sadd.s32 %s62, 1
      %s64 = scalar_select %p61, %s62, %s63
      %p67 = pneg %p61
      %p68 = scmp.eq.s32.totalorder %s26, 1
      %p69 = por %p67, %p68
      %p70 = scmp.ne.s32.totalorder %s62, %s65
      %p71 = scmp.eq.s32.totalorder %s26, 0
      %p72 = por %p70, %p71
      %p73 = scmp.ne.s32.totalorder %s62, %s65
      %p74 = scmp.eq.s32.totalorder %s31, 1
      %p75 = por %p73, %p74
      %p76 = scmp.ne.s32.totalorder %s65, %s66
      %p77 = scmp.eq.s32.totalorder %s31, 0
      %p78 = por %p76, %p77
      %p79 = scmp.ne.s32.totalorder %s65, %s66
      %p80 = scmp.eq.s32.totalorder %s32, 1
      %p81 = por %p79, %p80
      %p83 = scmp.ne.s32.totalorder %s66, %s82
      %p84 = scmp.eq.s32.totalorder %s32, 0
      %p85 = por %p83, %p84
      %s87 = sadd.s32 %s86, 1
      %p90 = scmp.eq.s32.totalorder %s26, 1
      %p91 = scmp.ne.s32.totalorder %s86, %s88
      %p92 = scmp.eq.s32.totalorder %s26, 0
      %p93 = por %p91, %p92
      %p94 = scmp.ne.s32.totalorder %s86, %s88
      %p95 = scmp.eq.s32.totalorder %s31, 1
      %p96 = por %p94, %p95
      %p97 = scmp.ne.s32.totalorder %s88, %s89
      %p98 = scmp.eq.s32.totalorder %s31, 0
      %p99 = por %p97, %p98
      %p100 = scmp.ne.s32.totalorder %s88, %s89
      %p101 = scmp.eq.s32.totalorder %s32, 1
      %p102 = por %p100, %p101
      %p104 = scmp.ne.s32.totalorder %s89, %s103
      %p105 = scmp.eq.s32.totalorder %s32, 0
      %p106 = por %p104, %p105
      %s108 = sadd.s32 %s107, 1
      %p111 = scmp.eq.s32.totalorder %s26, 1
      %p112 = scmp.ne.s32.totalorder %s107, %s109
      %p113 = scmp.eq.s32.totalorder %s26, 0
      %p114 = por %p112, %p113
      %p115 = scmp.ne.s32.totalorder %s107, %s109
      %p116 = scmp.eq.s32.totalorder %s31, 1
      %p117 = por %p115, %p116
      %p118 = scmp.ne.s32.totalorder %s109, %s110
      %p119 = scmp.eq.s32.totalorder %s31, 0
      %p120 = por %p118, %p119
      %p121 = scmp.ne.s32.totalorder %s109, %s110
      %p122 = scmp.eq.s32.totalorder %s32, 1
      %p123 = por %p121, %p122
      %p125 = scmp.ne.s32.totalorder %s110, %s124
      %p126 = scmp.eq.s32.totalorder %s32, 0
      %p127 = por %p125, %p126
      %s129 = sadd.s32 %s128, 1
      %p132 = scmp.eq.s32.totalorder %s26, 1
      %p133 = scmp.ne.s32.totalorder %s128, %s130
      %p134 = scmp.eq.s32.totalorder %s26, 0
      %p135 = por %p133, %p134
      %p136 = scmp.ne.s32.totalorder %s128, %s130
      %p137 = scmp.eq.s32.totalorder %s31, 1
      %p138 = por %p136, %p137
      %p139 = scmp.ne.s32.totalorder %s130, %s131
      %p140 = scmp.eq.s32.totalorder %s31, 0
      %p141 = por %p139, %p140
      %p142 = scmp.ne.s32.totalorder %s130, %s131
      %p143 = scmp.eq.s32.totalorder %s32, 1
      %p144 = por %p142, %p143
      %p146 = scmp.ne.s32.totalorder %s131, %s145
      %p147 = scmp.eq.s32.totalorder %s32, 0
      %p148 = por %p146, %p147
      %s150 = sadd.s32 %s149, 1
      %p153 = scmp.eq.s32.totalorder %s26, 1
      %p154 = scmp.ne.s32.totalorder %s149, %s151
      %p155 = scmp.eq.s32.totalorder %s26, 0
      %p156 = por %p154, %p155
      %p157 = scmp.ne.s32.totalorder %s149, %s151
      %p158 = scmp.eq.s32.totalorder %s31, 1
      %p159 = por %p157, %p158
      %p160 = scmp.ne.s32.totalorder %s151, %s152
      %p161 = scmp.eq.s32.totalorder %s31, 0
      %p162 = por %p160, %p161
      %p163 = scmp.ne.s32.totalorder %s151, %s152
      %p164 = scmp.eq.s32.totalorder %s32, 1
      %p165 = por %p163, %p164
      %p167 = scmp.ne.s32.totalorder %s152, %s166
      %p168 = scmp.eq.s32.totalorder %s32, 0
      %p169 = por %p167, %p168
      %s171 = sadd.s32 %s170, 1
      %p174 = scmp.eq.s32.totalorder %s26, 1
      %p175 = scmp.ne.s32.totalorder %s170, %s172
      %p176 = scmp.eq.s32.totalorder %s26, 0
      %p177 = por %p175, %p176
      %p178 = scmp.ne.s32.totalorder %s170, %s172
      %p179 = scmp.eq.s32.totalorder %s31, 1
      %p180 = por %p178, %p179
      %p181 = scmp.ne.s32.totalorder %s172, %s173
      %p182 = scmp.eq.s32.totalorder %s31, 0
      %p183 = por %p181, %p182
      %p184 = scmp.ne.s32.totalorder %s172, %s173
      %p185 = scmp.eq.s32.totalorder %s32, 1
      %p186 = por %p184, %p185
      %p188 = scmp.ne.s32.totalorder %s173, %s187
      %p189 = scmp.eq.s32.totalorder %s32, 0
      %p190 = por %p188, %p189
      %s192 = sadd.s32 %s191, 1
      %p195 = scmp.eq.s32.totalorder %s26, 1
      %p196 = scmp.ne.s32.totalorder %s191, %s193
      %p197 = scmp.eq.s32.totalorder %s26, 0
      %p198 = por %p196, %p197
      %p199 = scmp.ne.s32.totalorder %s191, %s193
      %p200 = scmp.eq.s32.totalorder %s31, 1
      %p201 = por %p199, %p200
      %p202 = scmp.ne.s32.totalorder %s193, %s194
      %p203 = scmp.eq.s32.totalorder %s31, 0
      %p204 = por %p202, %p203
      %p205 = scmp.ne.s32.totalorder %s193, %s194
      %p206 = scmp.eq.s32.totalorder %s32, 1
      %p207 = por %p205, %p206
      %p209 = scmp.ne.s32.totalorder %s194, %s208
      %p210 = scmp.eq.s32.totalorder %s32, 0
      %p211 = por %p209, %p210
      %s213 = sadd.s32 %s212, 1
      %p216 = scmp.eq.s32.totalorder %s26, 1
      %p217 = scmp.ne.s32.totalorder %s212, %s214
      %p218 = scmp.eq.s32.totalorder %s26, 0
      %p219 = por %p217, %p218
      %p220 = scmp.ne.s32.totalorder %s212, %s214
      %p221 = scmp.eq.s32.totalorder %s31, 1
      %p222 = por %p220, %p221
      %p223 = scmp.ne.s32.totalorder %s214, %s215
      %p224 = scmp.eq.s32.totalorder %s31, 0
      %p225 = por %p223, %p224
      %p226 = scmp.ne.s32.totalorder %s214, %s215
      %p227 = scmp.eq.s32.totalorder %s32, 1
      %p228 = por %p226, %p227
      %p230 = scmp.ne.s32.totalorder %s215, %s229
      %p231 = scmp.eq.s32.totalorder %s32, 0
      %p232 = por %p230, %p231
      %s234 = sadd.s32 %s233, 1
      %p237 = scmp.eq.s32.totalorder %s26, 1
      %p238 = scmp.ne.s32.totalorder %s233, %s235
      %p239 = scmp.eq.s32.totalorder %s26, 0
      %p240 = por %p238, %p239
      %p241 = scmp.ne.s32.totalorder %s233, %s235
      %p242 = scmp.eq.s32.totalorder %s31, 1
      %p243 = por %p241, %p242
      %p244 = scmp.ne.s32.totalorder %s235, %s236
      %p245 = scmp.eq.s32.totalorder %s31, 0
      %p246 = por %p244, %p245
      %p247 = scmp.ne.s32.totalorder %s235, %s236
      %p248 = scmp.eq.s32.totalorder %s32, 1
      %p249 = por %p247, %p248
      %p251 = scmp.ne.s32.totalorder %s236, %s250
      %p252 = scmp.eq.s32.totalorder %s32, 0
      %p253 = por %p251, %p252
      %s255 = sadd.s32 %s254, 1
      %p258 = scmp.eq.s32.totalorder %s26, 1
      %p259 = scmp.ne.s32.totalorder %s254, %s256
      %p260 = scmp.eq.s32.totalorder %s26, 0
      %p261 = por %p259, %p260
      %p262 = scmp.ne.s32.totalorder %s254, %s256
      %p263 = scmp.eq.s32.totalorder %s31, 1
      %p264 = por %p262, %p263
      %p265 = scmp.ne.s32.totalorder %s256, %s257
      %p266 = scmp.eq.s32.totalorder %s31, 0
      %p267 = por %p265, %p266
      %p268 = scmp.ne.s32.totalorder %s256, %s257
      %p269 = scmp.eq.s32.totalorder %s32, 1
      %p270 = por %p268, %p269
      %p272 = scmp.ne.s32.totalorder %s257, %s271
      %p273 = scmp.eq.s32.totalorder %s32, 0
      %p274 = por %p272, %p273
      %s276 = sadd.s32 %s275, 1
      %p279 = scmp.eq.s32.totalorder %s26, 1
      %p280 = scmp.ne.s32.totalorder %s275, %s277
      %p281 = scmp.eq.s32.totalorder %s26, 0
      %p282 = por %p280, %p281
      %p283 = scmp.ne.s32.totalorder %s275, %s277
      %p284 = scmp.eq.s32.totalorder %s31, 1
      %p285 = por %p283, %p284
      %p286 = scmp.ne.s32.totalorder %s277, %s278
      %p287 = scmp.eq.s32.totalorder %s31, 0
      %p288 = por %p286, %p287
      %p289 = scmp.ne.s32.totalorder %s277, %s278
      %p290 = scmp.eq.s32.totalorder %s32, 1
      %p291 = por %p289, %p290
      %p293 = scmp.ne.s32.totalorder %s278, %s292
      %p294 = scmp.eq.s32.totalorder %s32, 0
      %p295 = por %p293, %p294
      %s297 = sadd.s32 %s296, 1
      %p300 = scmp.eq.s32.totalorder %s26, 1
      %p301 = scmp.ne.s32.totalorder %s296, %s298
      %p302 = scmp.eq.s32.totalorder %s26, 0
      %p303 = por %p301, %p302
      %p304 = scmp.ne.s32.totalorder %s296, %s298
      %p305 = scmp.eq.s32.totalorder %s31, 1
      %p306 = por %p304, %p305
      %p307 = scmp.ne.s32.totalorder %s298, %s299
      %p308 = scmp.eq.s32.totalorder %s31, 0
      %p309 = por %p307, %p308
      %p310 = scmp.ne.s32.totalorder %s298, %s299
      %p311 = scmp.eq.s32.totalorder %s32, 1
      %p312 = por %p310, %p311
      %p314 = scmp.ne.s32.totalorder %s299, %s313
      %p315 = scmp.eq.s32.totalorder %s32, 0
      %p316 = por %p314, %p315
      %s318 = sadd.s32 %s317, 1
      %p321 = scmp.eq.s32.totalorder %s26, 1
      %p322 = scmp.ne.s32.totalorder %s317, %s319
      %p323 = scmp.eq.s32.totalorder %s26, 0
      %p324 = por %p322, %p323
      %p325 = scmp.ne.s32.totalorder %s317, %s319
      %p326 = scmp.eq.s32.totalorder %s31, 1
      %p327 = por %p325, %p326
      %p328 = scmp.ne.s32.totalorder %s319, %s320
      %p329 = scmp.eq.s32.totalorder %s31, 0
      %p330 = por %p328, %p329
      %p331 = scmp.ne.s32.totalorder %s319, %s320
      %p332 = scmp.eq.s32.totalorder %s32, 1
      %p333 = por %p331, %p332
      %p335 = scmp.ne.s32.totalorder %s320, %s334
      %p336 = scmp.eq.s32.totalorder %s32, 0
      %p337 = por %p335, %p336
      %s338 = ssub.s32 %s26, %s33
      %p339 = scmp.eq.s32.totalorder %s338, 0
      %s341 = sadd.s32 %s340, 1
      %s342 = scalar_select %p339, %s340, %s341
      %p345 = pneg %p339
      %p346 = scmp.eq.s32.totalorder %s26, 1
      %p347 = por %p345, %p346
      %p348 = scmp.ne.s32.totalorder %s340, %s343
      %p349 = scmp.eq.s32.totalorder %s26, 0
      %p350 = por %p348, %p349
      %p351 = scmp.ne.s32.totalorder %s340, %s343
      %p352 = scmp.eq.s32.totalorder %s31, 1
      %p353 = por %p351, %p352
      %p354 = scmp.ne.s32.totalorder %s343, %s344
      %p355 = scmp.eq.s32.totalorder %s31, 0
      %p356 = por %p354, %p355
      %p357 = scmp.ne.s32.totalorder %s343, %s344
      %p358 = scmp.eq.s32.totalorder %s32, 1
      %p359 = por %p357, %p358
      %p361 = scmp.ne.s32.totalorder %s344, %s360
      %p362 = scmp.eq.s32.totalorder %s32, 0
      %p363 = por %p361, %p362
      %p364 = scmp.le.s32.totalorder 1, %s26
      %p365 = scmp.lt.s32.totalorder %s26, 3
      %p366 = pnand %p364, %p365
      %p367 = pneg %p366
      // Predicated region
      $region9: #{tpu_custom_call.1} parent=5 // pred_check
        _
      $region10: #{tpu_custom_call.1} parent=5 // pred_check_branch
        %369 = sbr.rel (%p366) target = $region12
      $region11: #{tpu_custom_call.1} parent=5 // pred_region
        %s370 = ssub.s32 %s26, 1
        // Predicated region
        $region13: #{tpu_custom_call.1} parent=11 // pred_check
          %p371 = pneg %p99
        $region14: #{tpu_custom_call.1} parent=11 // pred_check_branch
          %373 = sbr.rel (%p371) target = $region16
        $region15: #{tpu_custom_call.1} parent=11 // pred_region
          _
        $region16: #{tpu_custom_call.1} parent=11 // pred_fallthru
          _
        // Predicated region
        $region17: #{tpu_custom_call.1} parent=11 // pred_check
          %p374 = pneg %p120
        $region18: #{tpu_custom_call.1} parent=11 // pred_check_branch
          %376 = sbr.rel (%p374) target = $region20
        $region19: #{tpu_custom_call.1} parent=11 // pred_region
          %s378 = ssub.s32 16, 16
          %379 = vsyncadd [#allocation4], %s378
          %s381 = sshll.u32 [#allocation3], 4
          %s382 = int_to_ptr.vmem [resolvable:$true] %s381
          %384 = dma.hbm_to_vmem [thread:$0]  %s3, 16, %s382, [#allocation4]
        $region20: #{tpu_custom_call.1} parent=11 // pred_fallthru
          _
        // Predicated region
        $region21: #{tpu_custom_call.1} parent=11 // pred_check
          %p385 = pneg %p141
        $region22: #{tpu_custom_call.1} parent=11 // pred_check_branch
          %387 = sbr.rel (%p385) target = $region24
        $region23: #{tpu_custom_call.1} parent=11 // pred_region
          _
        $region24: #{tpu_custom_call.1} parent=11 // pred_fallthru
          _
        // Predicated region
        $region25: #{tpu_custom_call.1} parent=11 // pred_check
          %p388 = pneg %p162
        $region26: #{tpu_custom_call.1} parent=11 // pred_check_branch
          %390 = sbr.rel (%p388) target = $region28
        $region27: #{tpu_custom_call.1} parent=11 // pred_region
          %s392 = ssub.s32 16, 16
          %393 = vsyncadd [#allocation7], %s392
          %s395 = sshll.u32 [#allocation6], 4
          %s396 = int_to_ptr.vmem [resolvable:$true] %s395
          %398 = dma.hbm_to_vmem [thread:$0]  %s5, 16, %s396, [#allocation7]
        $region28: #{tpu_custom_call.1} parent=11 // pred_fallthru
          _
        // Predicated region
        $region29: #{tpu_custom_call.1} parent=11 // pred_check
          %p399 = pneg %p183
        $region30: #{tpu_custom_call.1} parent=11 // pred_check_branch
          %401 = sbr.rel (%p399) target = $region32
        $region31: #{tpu_custom_call.1} parent=11 // pred_region
          %s403 = ssub.s32 16, 16
          %404 = vsyncadd [#allocation7], %s403
          %s406 = sshll.u32 [#allocation8], 4
          %s407 = int_to_ptr.vmem [resolvable:$true] %s406
          %409 = dma.hbm_to_vmem [thread:$0]  %s6, 16, %s407, [#allocation7]
        $region32: #{tpu_custom_call.1} parent=11 // pred_fallthru
          _
        // Predicated region
        $region33: #{tpu_custom_call.1} parent=11 // pred_check
          %p410 = pneg %p204
        $region34: #{tpu_custom_call.1} parent=11 // pred_check_branch
          %412 = sbr.rel (%p410) target = $region36
        $region35: #{tpu_custom_call.1} parent=11 // pred_region
          %s414 = ssub.s32 16, 16
          %415 = vsyncadd [#allocation10], %s414
          %s417 = sshll.u32 [#allocation9], 4
          %s418 = int_to_ptr.vmem [resolvable:$true] %s417
          %420 = dma.hbm_to_vmem [thread:$0]  %s7, 16, %s418, [#allocation10]
        $region36: #{tpu_custom_call.1} parent=11 // pred_fallthru
          _
        // Predicated region
        $region37: #{tpu_custom_call.1} parent=11 // pred_check
          %p421 = pneg %p225
        $region38: #{tpu_custom_call.1} parent=11 // pred_check_branch
          %423 = sbr.rel (%p421) target = $region40
        $region39: #{tpu_custom_call.1} parent=11 // pred_region
          %s425 = ssub.s32 256, 256
          %426 = vsyncadd [#allocation10], %s425
          %s427 = sshll.u32 [#allocation11], 4
          %s428 = int_to_ptr.vmem [resolvable:$true] %s427
          %433 = dma.hbm_to_vmem [thread:$0]  %s8, 256, %s428, [#allocation10], 64, 64, 4
        $region40: #{tpu_custom_call.1} parent=11 // pred_fallthru
          _
        // Predicated region
        $region41: #{tpu_custom_call.1} parent=11 // pred_check
          %p434 = pneg %p246
        $region42: #{tpu_custom_call.1} parent=11 // pred_check_branch
          %436 = sbr.rel (%p434) target = $region44
        $region43: #{tpu_custom_call.1} parent=11 // pred_region
          _
        $region44: #{tpu_custom_call.1} parent=11 // pred_fallthru
          _
        // Predicated region
        $region45: #{tpu_custom_call.1} parent=11 // pred_check
          %p437 = pneg %p267
        $region46: #{tpu_custom_call.1} parent=11 // pred_check_branch
          %439 = sbr.rel (%p437) target = $region48
        $region47: #{tpu_custom_call.1} parent=11 // pred_region
          _
        $region48: #{tpu_custom_call.1} parent=11 // pred_fallthru
          _
        // Predicated region
        $region49: #{tpu_custom_call.1} parent=11 // pred_check
          %p440 = pneg %p288
        $region50: #{tpu_custom_call.1} parent=11 // pred_check_branch
          %442 = sbr.rel (%p440) target = $region52
        $region51: #{tpu_custom_call.1} parent=11 // pred_region
          _
        $region52: #{tpu_custom_call.1} parent=11 // pred_fallthru
          _
        // Predicated region
        $region53: #{tpu_custom_call.1} parent=11 // pred_check
          %p443 = pneg %p309
        $region54: #{tpu_custom_call.1} parent=11 // pred_check_branch
          %445 = sbr.rel (%p443) target = $region56
        $region55: #{tpu_custom_call.1} parent=11 // pred_region
          _
        $region56: #{tpu_custom_call.1} parent=11 // pred_fallthru
          _
        // Predicated region
        $region57: #{tpu_custom_call.1} parent=11 // pred_check
          %p446 = pneg %p330
        $region58: #{tpu_custom_call.1} parent=11 // pred_check_branch
          %448 = sbr.rel (%p446) target = $region60
        $region59: #{tpu_custom_call.1} parent=11 // pred_region
          _
        $region60: #{tpu_custom_call.1} parent=11 // pred_fallthru
          _
      $region12: #{tpu_custom_call.1} parent=5 // pred_fallthru
        _
      %p449 = scmp.lt.s32.totalorder %s26, 2
      // Predicated region
      $region61: #{tpu_custom_call.1} parent=5 // pred_check
        %p450 = pneg %p449
      $region62: #{tpu_custom_call.1} parent=5 // pred_check_branch
        %452 = sbr.rel (%p450) target = $region64
      $region63: #{tpu_custom_call.1} parent=5 // pred_region
        // Predicated region
        $region65: #{tpu_custom_call.1} parent=63 // pred_check
          %p453 = pneg %p46
        $region66: #{tpu_custom_call.1} parent=63 // pred_check_branch
          %455 = sbr.rel (%p453) target = $region68
        $region67: #{tpu_custom_call.1} parent=63 // pred_region
          %s456 = smul.u32 2, %s26
          %p457 = scmp.lt.s32.totalorder %s456, 3
          %s458 = scalar_select %p457, %s456, 3
          %s459 = smul.addr %s458, 8
          %s460 = scalar_lea.vmem %s0, %s459
          %s461 = smul.u32 2, %s26
        $region68: #{tpu_custom_call.1} parent=63 // pred_fallthru
          _
        // Predicated region
        $region69: #{tpu_custom_call.1} parent=63 // pred_check
          %p462 = pneg %p72
        $region70: #{tpu_custom_call.1} parent=63 // pred_check_branch
          %464 = sbr.rel (%p462) target = $region72
        $region71: #{tpu_custom_call.1} parent=63 // pred_region
          %s465 = smul.u32 2, %s26
          %p466 = scmp.lt.s32.totalorder %s465, 3
          %s467 = scalar_select %p466, %s465, 3
          %s468 = scalar_lea.vmem %s1, %s467
          %s469 = smul.u32 2, %s26
        $region72: #{tpu_custom_call.1} parent=63 // pred_fallthru
          _
      $region64: #{tpu_custom_call.1} parent=5 // pred_fallthru
        _
      %p470 = scmp.le.s32.totalorder 1, %s26
      %p471 = scmp.lt.s32.totalorder %s26, 3
      %p472 = pnand %p470, %p471
      %p473 = pneg %p472
      // Predicated region
      $region73: #{tpu_custom_call.1} parent=5 // pred_check
        _
      $region74: #{tpu_custom_call.1} parent=5 // pred_check_branch
        %475 = sbr.rel (%p472) target = $region76
      $region75: #{tpu_custom_call.1} parent=5 // pred_region
        %s476 = ssub.s32 %s26, 1
        // Predicated region
        $region77: #{tpu_custom_call.1} parent=75 // pred_check
          %p477 = pneg %p120
        $region78: #{tpu_custom_call.1} parent=75 // pred_check_branch
          %479 = sbr.rel (%p477) target = $region80
        $region79: #{tpu_custom_call.1} parent=75 // pred_region
          %480 = dma.done [#allocation4], 16
        $region80: #{tpu_custom_call.1} parent=75 // pred_fallthru
          _
        // Predicated region
        $region81: #{tpu_custom_call.1} parent=75 // pred_check
          %p481 = pneg %p162
        $region82: #{tpu_custom_call.1} parent=75 // pred_check_branch
          %483 = sbr.rel (%p481) target = $region84
        $region83: #{tpu_custom_call.1} parent=75 // pred_region
          %484 = dma.done [#allocation7], 16
        $region84: #{tpu_custom_call.1} parent=75 // pred_fallthru
          _
        // Predicated region
        $region85: #{tpu_custom_call.1} parent=75 // pred_check
          %p485 = pneg %p183
        $region86: #{tpu_custom_call.1} parent=75 // pred_check_branch
          %487 = sbr.rel (%p485) target = $region88
        $region87: #{tpu_custom_call.1} parent=75 // pred_region
          %488 = dma.done [#allocation7], 16
        $region88: #{tpu_custom_call.1} parent=75 // pred_fallthru
          _
        // Predicated region
        $region89: #{tpu_custom_call.1} parent=75 // pred_check
          %p489 = pneg %p204
        $region90: #{tpu_custom_call.1} parent=75 // pred_check_branch
          %491 = sbr.rel (%p489) target = $region92
        $region91: #{tpu_custom_call.1} parent=75 // pred_region
          %492 = dma.done [#allocation10], 16
        $region92: #{tpu_custom_call.1} parent=75 // pred_fallthru
          _
        // Predicated region
        $region93: #{tpu_custom_call.1} parent=75 // pred_check
          %p493 = pneg %p225
        $region94: #{tpu_custom_call.1} parent=75 // pred_check_branch
          %495 = sbr.rel (%p493) target = $region96
        $region95: #{tpu_custom_call.1} parent=75 // pred_region
          %496 = dma.done [#allocation10], 256
        $region96: #{tpu_custom_call.1} parent=75 // pred_fallthru
          _
        %s497 = smul.u32 2, %s31
        %p498 = scmp.lt.s32.totalorder %s497, 3
        %s499 = scalar_select %p498, %s497, 3
        %s500 = smul.addr %s499, 8
        %s501 = scalar_lea.vmem %s0, %s500
        %p502 = pneg %p52
        %p503 = pneg %p49
        %s504 = smul.u32 2, %s31
        %p505 = scmp.lt.s32.totalorder %s504, 3
        %s506 = scalar_select %p505, %s504, 3
        %s507 = scalar_lea.vmem %s1, %s506
        %p508 = pneg %p78
        %p509 = pneg %p75
        %p510 = pneg %p99
        %p511 = pneg %p96
        %p512 = pneg %p120
        %p513 = pneg %p117
        %p514 = pneg %p141
        %p515 = pneg %p138
        %p516 = pneg %p162
        %p517 = pneg %p159
        %p518 = pneg %p183
        %p519 = pneg %p180
        %p520 = pneg %p204
        %p521 = pneg %p201
        %p522 = pneg %p225
        %p523 = pneg %p222
        %p524 = pneg %p246
        %p525 = pneg %p243
        %p526 = pneg %p267
        %p527 = pneg %p264
        %p528 = pneg %p288
        %p529 = pneg %p285
        %p530 = pneg %p309
        %p531 = pneg %p306
        %p532 = pneg %p330
        %p533 = pneg %p327
        %p534 = pneg %p356
        %p535 = pneg %p353
        %s536 = sand.u32 %s343, 1
        %s537 = scalar_lea.sflag [#allocation5], %s536
        %s538 = sand.u32 %s343, 1
        %s539 = smul.addr %s538, 16
        %s540 = scalar_lea.vmem [#allocation12], %s539
        %s541 = smul.u32 2, %s31
        %p542 = scmp.lt.s32.totalorder %s541, 3
        %s543 = scalar_select %p542, %s541, 3
        %s544 = smul.addr %s543, 8
        %s545 = scalar_lea.vmem %s0, %s544
        %s546 = smul.u32 2, %s31
        %s547 = smul.u32 2, %s31
        %p548 = scmp.lt.s32.totalorder %s547, 3
        %s549 = scalar_select %p548, %s547, 3
        %s550 = scalar_lea.vmem %s1, %s549
        %s551 = smul.u32 2, %s31
        %s552 = smul.u32 2, %s31
        %v554 = vld [vmem:[%s545] sm:$0xff]
        %v555 = vld [vmem:[%s545 + $0x8] sm:$0xff]
        %v556 = vpack.c.bf16 %v555, %v554
        %v557 = vld [vmem:[%s2] sm:$0xf]
        %v558 = vld [vmem:[%s2 + $0x4] sm:$0xf]
        %v559 = vld [vmem:[%s2 + $0x8] sm:$0xf]
        %v560 = vld [vmem:[%s2 + $0xc] sm:$0xf]
        %v561 = vld [vmem:[#allocation3] sm:$0x1]
        %v563 = vlaneseq
        %v564 = vshrl.u32 %v563, 7
        %v565 = vsub.s32 0, %v564
        %v566 = vrot.slane %v561, %v565
        %v572 = vunpack.c.l.b16 %v557
        %v573 = vunpack.c.l.b16 %v558
        %v574 = vunpack.c.l.b16 %v559
        %v575 = vunpack.c.l.b16 %v560
        %v576 = vpack.c.b16 %v573, %v572
        %v577 = vpack.c.b16 %v575, %v574
        %vm580 = vcmask 261120
        %v582 = vsel %vm580, %v556, 0
        %584 = vmatprep.subr.bf16.mxu0 0
        %585 = vmatpush1.bf16.msra.mxu0 %v576
        %586 = vmatprep.subr.bf16.mxu0 0
        %587 = vmatpush1.bf16.msra.mxu0 %v577
        %588 = vmatprep.subr.bf16.mxu0 0
        %589 = vmatpush1.bf16.msra.mxu0 0
        %590 = vmatprep.subr.bf16.mxu0 0
        %591 = vmatpush1.bf16.msra.mxu0 0
        %592 = vmatprep.subr.bf16.mxu0 0
        %593 = vmatpush1.bf16.msra.mxu0 0
        %594 = vmatprep.subr.bf16.mxu0 0
        %595 = vmatpush1.bf16.msra.mxu0 0
        %596 = vmatprep.subr.bf16.mxu0 0
        %597 = vmatpush1.bf16.msra.mxu0 0
        %598 = vmatprep.subr.bf16.mxu0 0
        %599 = vmatpush1.bf16.msra.mxu0 0
        %600 = vmatprep.subr.bf16.mxu0 0
        %601 = vmatpush1.bf16.msra.mxu0 0
        %602 = vmatprep.subr.bf16.mxu0 0
        %603 = vmatpush1.bf16.msra.mxu0 0
        %604 = vmatprep.subr.bf16.mxu0 0
        %605 = vmatpush1.bf16.msra.mxu0 0
        %606 = vmatprep.subr.bf16.mxu0 0
        %607 = vmatpush1.bf16.msra.mxu0 0
        %608 = vmatprep.subr.bf16.mxu0 0
        %609 = vmatpush1.bf16.msra.mxu0 0
        %610 = vmatprep.subr.bf16.mxu0 0
        %611 = vmatpush1.bf16.msra.mxu0 0
        %612 = vmatprep.subr.bf16.mxu0 0
        %613 = vmatpush1.bf16.msra.mxu0 0
        %614 = vmatprep.subr.bf16.mxu0 0
        %615 = vmatpush1.bf16.msra.mxu0 0
        %616 = vmatprep.mubr.bf16.mxu0 0
        %617 = vmatmul.mubr.bf16.gmra.mrb[0].mxu0 %v582
        %v618 = vpop.f32.mrb[0].mxu0
        %v619 = vadd.f32 %v566, %v618
        %v620 = vpop.f32.mrb[0].mxu0
        %v621 = vpop.f32.mrb[0].mxu0
        %v622 = vadd.f32 %v566, %v621
        %v623 = vpop.f32.mrb[0].mxu0
        %624 = vdwg.mxu0
        %626 = vrot.lane.b32.xlu0 %v619, 120
        %v627 = vpop.permute.xlu0 %626
        %629 = vrot.lane.b32.xlu0 %v619, 112
        %v630 = vpop.permute.xlu0 %629
        %632 = vrot.lane.b32.xlu0 %v619, 104
        %v633 = vpop.permute.xlu0 %632
        %v635 = vcombine.low %v619, %v630
        %v636 = vcombine.high %v619, %v630
        %v638 = vunpack.c.l.s4 1983009808
        %v639 = vunpack.c.0.s8 %v638
        %v640 = vlaneseq
        %v641 = vshrl.u32 %v640, 7
        %v642 = vsub.s32 %v639, %v641
        %v643 = vrot.slane %v635, %v642
        %v645 = vunpack.c.l.s4 1983009808
        %v646 = vunpack.c.0.s8 %v645
        %v647 = vlaneseq
        %v648 = vshrl.u32 %v647, 7
        %v649 = vsub.s32 %v646, %v648
        %v650 = vrot.slane %v636, %v649
        %v651 = vcombine.low %v627, %v633
        %v652 = vcombine.high %v627, %v633
        %v654 = vunpack.c.l.s4 1983009808
        %v655 = vunpack.c.0.s8 %v654
        %v656 = vlaneseq
        %v657 = vshrl.u32 %v656, 7
        %v658 = vsub.s32 %v655, %v657
        %v659 = vrot.slane %v651, %v658
        %v661 = vunpack.c.l.s4 1983009808
        %v662 = vunpack.c.0.s8 %v661
        %v663 = vlaneseq
        %v664 = vshrl.u32 %v663, 7
        %v665 = vsub.s32 %v662, %v664
        %v666 = vrot.slane %v652, %v665
        %v667 = vcombine.low %v643, %v659
        %v668 = vcombine.high %v643, %v659
        %v670 = vunpack.c.l.s4 1934713408
        %v671 = vunpack.c.0.s8 %v670
        %v672 = vlaneseq
        %v673 = vshrl.u32 %v672, 7
        %v674 = vsub.s32 %v671, %v673
        %v675 = vrot.slane %v667, %v674
        %v677 = vunpack.c.l.s4 1934713408
        %v678 = vunpack.c.0.s8 %v677
        %v679 = vlaneseq
        %v680 = vshrl.u32 %v679, 7
        %v681 = vsub.s32 %v678, %v680
        %v682 = vrot.slane %v668, %v681
        %v683 = vcombine.low %v650, %v666
        %v684 = vcombine.high %v650, %v666
        %v686 = vunpack.c.l.s4 1934713408
        %v687 = vunpack.c.0.s8 %v686
        %v688 = vlaneseq
        %v689 = vshrl.u32 %v688, 7
        %v690 = vsub.s32 %v687, %v689
        %v691 = vrot.slane %v683, %v690
        %v693 = vunpack.c.l.s4 1934713408
        %v694 = vunpack.c.0.s8 %v693
        %v695 = vlaneseq
        %v696 = vshrl.u32 %v695, 7
        %v697 = vsub.s32 %v694, %v696
        %v698 = vrot.slane %v684, %v697
        %v699 = vcombine.high %v675, 0.0
        %v700 = vcombine.high %v682, 0.0
        %v701 = vcombine.high %v691, 0.0
        %v702 = vcombine.high %v698, 0.0
        %v703 = vcombine.low %v675, %v682
        %v705 = vunpack.c.l.s4 1983009808
        %v706 = vunpack.c.0.s8 %v705
        %v707 = vlaneseq
        %v708 = vshrl.u32 %v707, 7
        %v709 = vsub.s32 %v706, %v708
        %v710 = vrot.slane %v703, %v709
        %v711 = vcombine.low %v699, %v700
        %v713 = vunpack.c.l.s4 1983009808
        %v714 = vunpack.c.0.s8 %v713
        %v715 = vlaneseq
        %v716 = vshrl.u32 %v715, 7
        %v717 = vsub.s32 %v714, %v716
        %v718 = vrot.slane %v711, %v717
        %v719 = vcombine.low %v691, %v698
        %v721 = vunpack.c.l.s4 1983009808
        %v722 = vunpack.c.0.s8 %v721
        %v723 = vlaneseq
        %v724 = vshrl.u32 %v723, 7
        %v725 = vsub.s32 %v722, %v724
        %v726 = vrot.slane %v719, %v725
        %v727 = vcombine.low %v701, %v702
        %v729 = vunpack.c.l.s4 1983009808
        %v730 = vunpack.c.0.s8 %v729
        %v731 = vlaneseq
        %v732 = vshrl.u32 %v731, 7
        %v733 = vsub.s32 %v730, %v732
        %v734 = vrot.slane %v727, %v733
        %v735 = vcombine.low %v710, %v718
        %v736 = vcombine.high %v710, %v718
        %v738 = vunpack.c.l.s4 1934713408
        %v739 = vunpack.c.0.s8 %v738
        %v740 = vlaneseq
        %v741 = vshrl.u32 %v740, 7
        %v742 = vsub.s32 %v739, %v741
        %v743 = vrot.slane %v735, %v742
        %v745 = vunpack.c.l.s4 1934713408
        %v746 = vunpack.c.0.s8 %v745
        %v747 = vlaneseq
        %v748 = vshrl.u32 %v747, 7
        %v749 = vsub.s32 %v746, %v748
        %v750 = vrot.slane %v736, %v749
        %v751 = vcombine.low %v726, %v734
        %v752 = vcombine.high %v726, %v734
        %v754 = vunpack.c.l.s4 1934713408
        %v755 = vunpack.c.0.s8 %v754
        %v756 = vlaneseq
        %v757 = vshrl.u32 %v756, 7
        %v758 = vsub.s32 %v755, %v757
        %v759 = vrot.slane %v751, %v758
        %v761 = vunpack.c.l.s4 1934713408
        %v762 = vunpack.c.0.s8 %v761
        %v763 = vlaneseq
        %v764 = vshrl.u32 %v763, 7
        %v765 = vsub.s32 %v762, %v764
        %v766 = vrot.slane %v752, %v765
        %v767 = vcombine.low %v743, %v759
        %v768 = vcombine.high %v743, %v759
        %v769 = vcombine.low %v750, %v766
        %v770 = vcombine.high %v750, %v766
        %v771 = vpack.c.bf16 %v767, %v767
        %v772 = vpack.c.bf16 %v768, %v768
        %v773 = vpack.c.bf16 %v769, %v769
        %v774 = vpack.c.bf16 %v770, %v770
        %775 = vrot.lane.b32.xlu0 %v619, 96
        %v776 = vpop.permute.xlu0 %775
        %777 = vrot.lane.b32.xlu0 %v627, 96
        %v778 = vpop.permute.xlu0 %777
        %779 = vrot.lane.b32.xlu0 %v630, 96
        %v780 = vpop.permute.xlu0 %779
        %781 = vrot.lane.b32.xlu0 %v633, 96
        %v782 = vpop.permute.xlu0 %781
        %v787 = vcombine.low %v776, %v780
        %v788 = vcombine.high %v776, %v780
        %v790 = vunpack.c.l.s4 1983009808
        %v791 = vunpack.c.0.s8 %v790
        %v792 = vlaneseq
        %v793 = vshrl.u32 %v792, 7
        %v794 = vsub.s32 %v791, %v793
        %v795 = vrot.slane %v787, %v794
        %v797 = vunpack.c.l.s4 1983009808
        %v798 = vunpack.c.0.s8 %v797
        %v799 = vlaneseq
        %v800 = vshrl.u32 %v799, 7
        %v801 = vsub.s32 %v798, %v800
        %v802 = vrot.slane %v788, %v801
        %v803 = vcombine.low %v778, %v782
        %v804 = vcombine.high %v778, %v782
        %v806 = vunpack.c.l.s4 1983009808
        %v807 = vunpack.c.0.s8 %v806
        %v808 = vlaneseq
        %v809 = vshrl.u32 %v808, 7
        %v810 = vsub.s32 %v807, %v809
        %v811 = vrot.slane %v803, %v810
        %v813 = vunpack.c.l.s4 1983009808
        %v814 = vunpack.c.0.s8 %v813
        %v815 = vlaneseq
        %v816 = vshrl.u32 %v815, 7
        %v817 = vsub.s32 %v814, %v816
        %v818 = vrot.slane %v804, %v817
        %v819 = vcombine.low %v795, %v811
        %v820 = vcombine.high %v795, %v811
        %v822 = vunpack.c.l.s4 1934713408
        %v823 = vunpack.c.0.s8 %v822
        %v824 = vlaneseq
        %v825 = vshrl.u32 %v824, 7
        %v826 = vsub.s32 %v823, %v825
        %v827 = vrot.slane %v819, %v826
        %v829 = vunpack.c.l.s4 1934713408
        %v830 = vunpack.c.0.s8 %v829
        %v831 = vlaneseq
        %v832 = vshrl.u32 %v831, 7
        %v833 = vsub.s32 %v830, %v832
        %v834 = vrot.slane %v820, %v833
        %v835 = vcombine.low %v802, %v818
        %v836 = vcombine.high %v802, %v818
        %v838 = vunpack.c.l.s4 1934713408
        %v839 = vunpack.c.0.s8 %v838
        %v840 = vlaneseq
        %v841 = vshrl.u32 %v840, 7
        %v842 = vsub.s32 %v839, %v841
        %v843 = vrot.slane %v835, %v842
        %v845 = vunpack.c.l.s4 1934713408
        %v846 = vunpack.c.0.s8 %v845
        %v847 = vlaneseq
        %v848 = vshrl.u32 %v847, 7
        %v849 = vsub.s32 %v846, %v848
        %v850 = vrot.slane %v836, %v849
        %v851 = vcombine.high %v827, 0.0
        %v852 = vcombine.high %v834, 0.0
        %v853 = vcombine.high %v843, 0.0
        %v854 = vcombine.high %v850, 0.0
        %v855 = vcombine.low %v827, %v834
        %v857 = vunpack.c.l.s4 1983009808
        %v858 = vunpack.c.0.s8 %v857
        %v859 = vlaneseq
        %v860 = vshrl.u32 %v859, 7
        %v861 = vsub.s32 %v858, %v860
        %v862 = vrot.slane %v855, %v861
        %v863 = vcombine.low %v851, %v852
        %v865 = vunpack.c.l.s4 1983009808
        %v866 = vunpack.c.0.s8 %v865
        %v867 = vlaneseq
        %v868 = vshrl.u32 %v867, 7
        %v869 = vsub.s32 %v866, %v868
        %v870 = vrot.slane %v863, %v869
        %v871 = vcombine.low %v843, %v850
        %v873 = vunpack.c.l.s4 1983009808
        %v874 = vunpack.c.0.s8 %v873
        %v875 = vlaneseq
        %v876 = vshrl.u32 %v875, 7
        %v877 = vsub.s32 %v874, %v876
        %v878 = vrot.slane %v871, %v877
        %v879 = vcombine.low %v853, %v854
        %v881 = vunpack.c.l.s4 1983009808
        %v882 = vunpack.c.0.s8 %v881
        %v883 = vlaneseq
        %v884 = vshrl.u32 %v883, 7
        %v885 = vsub.s32 %v882, %v884
        %v886 = vrot.slane %v879, %v885
        %v887 = vcombine.low %v862, %v870
        %v888 = vcombine.high %v862, %v870
        %v890 = vunpack.c.l.s4 1934713408
        %v891 = vunpack.c.0.s8 %v890
        %v892 = vlaneseq
        %v893 = vshrl.u32 %v892, 7
        %v894 = vsub.s32 %v891, %v893
        %v895 = vrot.slane %v887, %v894
        %v897 = vunpack.c.l.s4 1934713408
        %v898 = vunpack.c.0.s8 %v897
        %v899 = vlaneseq
        %v900 = vshrl.u32 %v899, 7
        %v901 = vsub.s32 %v898, %v900
        %v902 = vrot.slane %v888, %v901
        %v903 = vcombine.low %v878, %v886
        %v904 = vcombine.high %v878, %v886
        %v906 = vunpack.c.l.s4 1934713408
        %v907 = vunpack.c.0.s8 %v906
        %v908 = vlaneseq
        %v909 = vshrl.u32 %v908, 7
        %v910 = vsub.s32 %v907, %v909
        %v911 = vrot.slane %v903, %v910
        %v913 = vunpack.c.l.s4 1934713408
        %v914 = vunpack.c.0.s8 %v913
        %v915 = vlaneseq
        %v916 = vshrl.u32 %v915, 7
        %v917 = vsub.s32 %v914, %v916
        %v918 = vrot.slane %v904, %v917
        %v919 = vcombine.low %v895, %v911
        %v920 = vcombine.high %v895, %v911
        %v921 = vcombine.low %v902, %v918
        %v922 = vcombine.high %v902, %v918
        %v923 = vpack.c.bf16 %v919, %v919
        %v924 = vpack.c.bf16 %v920, %v920
        %v925 = vpack.c.bf16 %v921, %v921
        %v926 = vpack.c.bf16 %v922, %v922
        %927 = vrot.lane.b32.xlu0 %v619, 64
        %v928 = vpop.permute.xlu0 %927
        %929 = vrot.lane.b32.xlu0 %v627, 64
        %v930 = vpop.permute.xlu0 %929
        %931 = vrot.lane.b32.xlu0 %v630, 64
        %v932 = vpop.permute.xlu0 %931
        %933 = vrot.lane.b32.xlu0 %v633, 64
        %v934 = vpop.permute.xlu0 %933
        %v939 = vcombine.low %v928, %v932
        %v940 = vcombine.high %v928, %v932
        %v942 = vunpack.c.l.s4 1983009808
        %v943 = vunpack.c.0.s8 %v942
        %v944 = vlaneseq
        %v945 = vshrl.u32 %v944, 7
        %v946 = vsub.s32 %v943, %v945
        %v947 = vrot.slane %v939, %v946
        %v949 = vunpack.c.l.s4 1983009808
        %v950 = vunpack.c.0.s8 %v949
        %v951 = vlaneseq
        %v952 = vshrl.u32 %v951, 7
        %v953 = vsub.s32 %v950, %v952
        %v954 = vrot.slane %v940, %v953
        %v955 = vcombine.low %v930, %v934
        %v956 = vcombine.high %v930, %v934
        %v958 = vunpack.c.l.s4 1983009808
        %v959 = vunpack.c.0.s8 %v958
        %v960 = vlaneseq
        %v961 = vshrl.u32 %v960, 7
        %v962 = vsub.s32 %v959, %v961
        %v963 = vrot.slane %v955, %v962
        %v965 = vunpack.c.l.s4 1983009808
        %v966 = vunpack.c.0.s8 %v965
        %v967 = vlaneseq
        %v968 = vshrl.u32 %v967, 7
        %v969 = vsub.s32 %v966, %v968
        %v970 = vrot.slane %v956, %v969
        %v971 = vcombine.low %v947, %v963
        %v972 = vcombine.high %v947, %v963
        %v974 = vunpack.c.l.s4 1934713408
        %v975 = vunpack.c.0.s8 %v974
        %v976 = vlaneseq
        %v977 = vshrl.u32 %v976, 7
        %v978 = vsub.s32 %v975, %v977
        %v979 = vrot.slane %v971, %v978
        %v981 = vunpack.c.l.s4 1934713408
        %v982 = vunpack.c.0.s8 %v981
        %v983 = vlaneseq
        %v984 = vshrl.u32 %v983, 7
        %v985 = vsub.s32 %v982, %v984
        %v986 = vrot.slane %v972, %v985
        %v987 = vcombine.low %v954, %v970
        %v988 = vcombine.high %v954, %v970
        %v990 = vunpack.c.l.s4 1934713408
        %v991 = vunpack.c.0.s8 %v990
        %v992 = vlaneseq
        %v993 = vshrl.u32 %v992, 7
        %v994 = vsub.s32 %v991, %v993
        %v995 = vrot.slane %v987, %v994
        %v997 = vunpack.c.l.s4 1934713408
        %v998 = vunpack.c.0.s8 %v997
        %v999 = vlaneseq
        %v1000 = vshrl.u32 %v999, 7
        %v1001 = vsub.s32 %v998, %v1000
        %v1002 = vrot.slane %v988, %v1001
        %v1003 = vcombine.high %v979, 0.0
        %v1004 = vcombine.high %v986, 0.0
        %v1005 = vcombine.high %v995, 0.0
        %v1006 = vcombine.high %v1002, 0.0
        %v1007 = vcombine.low %v979, %v986
        %v1009 = vunpack.c.l.s4 1983009808
        %v1010 = vunpack.c.0.s8 %v1009
        %v1011 = vlaneseq
        %v1012 = vshrl.u32 %v1011, 7
        %v1013 = vsub.s32 %v1010, %v1012
        %v1014 = vrot.slane %v1007, %v1013
        %v1015 = vcombine.low %v1003, %v1004
        %v1017 = vunpack.c.l.s4 1983009808
        %v1018 = vunpack.c.0.s8 %v1017
        %v1019 = vlaneseq
        %v1020 = vshrl.u32 %v1019, 7
        %v1021 = vsub.s32 %v1018, %v1020
        %v1022 = vrot.slane %v1015, %v1021
        %v1023 = vcombine.low %v995, %v1002
        %v1025 = vunpack.c.l.s4 1983009808
        %v1026 = vunpack.c.0.s8 %v1025
        %v1027 = vlaneseq
        %v1028 = vshrl.u32 %v1027, 7
        %v1029 = vsub.s32 %v1026, %v1028
        %v1030 = vrot.slane %v1023, %v1029
        %v1031 = vcombine.low %v1005, %v1006
        %v1033 = vunpack.c.l.s4 1983009808
        %v1034 = vunpack.c.0.s8 %v1033
        %v1035 = vlaneseq
        %v1036 = vshrl.u32 %v1035, 7
        %v1037 = vsub.s32 %v1034, %v1036
        %v1038 = vrot.slane %v1031, %v1037
        %v1039 = vcombine.low %v1014, %v1022
        %v1040 = vcombine.high %v1014, %v1022
        %v1042 = vunpack.c.l.s4 1934713408
        %v1043 = vunpack.c.0.s8 %v1042
        %v1044 = vlaneseq
        %v1045 = vshrl.u32 %v1044, 7
        %v1046 = vsub.s32 %v1043, %v1045
        %v1047 = vrot.slane %v1039, %v1046
        %v1049 = vunpack.c.l.s4 1934713408
        %v1050 = vunpack.c.0.s8 %v1049
        %v1051 = vlaneseq
        %v1052 = vshrl.u32 %v1051, 7
        %v1053 = vsub.s32 %v1050, %v1052
        %v1054 = vrot.slane %v1040, %v1053
        %v1055 = vcombine.low %v1030, %v1038
        %v1056 = vcombine.high %v1030, %v1038
        %v1058 = vunpack.c.l.s4 1934713408
        %v1059 = vunpack.c.0.s8 %v1058
        %v1060 = vlaneseq
        %v1061 = vshrl.u32 %v1060, 7
        %v1062 = vsub.s32 %v1059, %v1061
        %v1063 = vrot.slane %v1055, %v1062
        %v1065 = vunpack.c.l.s4 1934713408
        %v1066 = vunpack.c.0.s8 %v1065
        %v1067 = vlaneseq
        %v1068 = vshrl.u32 %v1067, 7
        %v1069 = vsub.s32 %v1066, %v1068
        %v1070 = vrot.slane %v1056, %v1069
        %v1071 = vcombine.low %v1047, %v1063
        %v1072 = vcombine.high %v1047, %v1063
        %v1073 = vcombine.low %v1054, %v1070
        %v1074 = vcombine.high %v1054, %v1070
        %v1075 = vpack.c.bf16 %v1071, %v1071
        %v1076 = vpack.c.bf16 %v1072, %v1072
        %v1077 = vpack.c.bf16 %v1073, %v1073
        %v1078 = vpack.c.bf16 %v1074, %v1074
        %v1079 = vld [vmem:[%s550] sm:$0x1]
        %v1080 = vunpack.c.l.bf16 %v1079
        %v1081 = vlaneseq
        %v1082 = vshrl.u32 %v1081, 7
        %v1083 = vsub.s32 0, %v1082
        %v1084 = vrot.slane %v1080, %v1083
        %vm1085 = vcmask 64512
        %v1087 = vsel %vm1085, %v771, 0
        %v1090 = vsel %vm1085, %v923, 0
        %1092 = vmatprep.subr.bf16.mxu0 0
        %1093 = vmatpush1.bf16.xpose.msra.mxu0 %v1090
        %1094 = vmatprep.subr.bf16.mxu0 0
        %1095 = vmatpush1.bf16.xpose.msra.mxu0 0
        %1096 = vmatprep.subr.bf16.mxu0 0
        %1097 = vmatpush1.bf16.xpose.msra.mxu0 0
        %1098 = vmatprep.subr.bf16.mxu0 0
        %1099 = vmatpush1.bf16.xpose.msra.mxu0 0
        %1100 = vmatprep.subr.bf16.mxu0 0
        %1101 = vmatpush1.bf16.xpose.msra.mxu0 0
        %1102 = vmatprep.subr.bf16.mxu0 0
        %1103 = vmatpush1.bf16.xpose.msra.mxu0 0
        %1104 = vmatprep.subr.bf16.mxu0 0
        %1105 = vmatpush1.bf16.xpose.msra.mxu0 0
        %1106 = vmatprep.subr.bf16.mxu0 0
        %1107 = vmatpush1.bf16.xpose.msra.mxu0 0
        %1108 = vmatprep.subr.bf16.mxu0 0
        %1109 = vmatpush1.bf16.xpose.msra.mxu0 0
        %1110 = vmatprep.subr.bf16.mxu0 0
        %1111 = vmatpush1.bf16.xpose.msra.mxu0 0
        %1112 = vmatprep.subr.bf16.mxu0 0
        %1113 = vmatpush1.bf16.xpose.msra.mxu0 0
        %1114 = vmatprep.subr.bf16.mxu0 0
        %1115 = vmatpush1.bf16.xpose.msra.mxu0 0
        %1116 = vmatprep.subr.bf16.mxu0 0
        %1117 = vmatpush1.bf16.xpose.msra.mxu0 0
        %1118 = vmatprep.subr.bf16.mxu0 0
        %1119 = vmatpush1.bf16.xpose.msra.mxu0 0
        %1120 = vmatprep.subr.bf16.mxu0 0
        %1121 = vmatpush1.bf16.xpose.msra.mxu0 0
        %1122 = vmatprep.subr.bf16.mxu0 0
        %1123 = vmatpush1.bf16.xpose.msra.mxu0 0
        %1124 = vmatprep.mubr.bf16.mxu0 0
        %1125 = vmatmul.mubr.bf16.gmra.mrb[0].mxu0 %v1087
        %v1126 = vpop.f32.mrb[0].mxu0
        %v1127 = vadd.f32 %v1084, %v1126
        %v1128 = vpop.f32.mrb[0].mxu0
        %v1129 = vpop.f32.mrb[0].mxu0
        %v1130 = vpop.f32.mrb[0].mxu0
        %1131 = vdwg.mxu0
        %v1133 = vsel %vm1085, %v772, 0
        %v1136 = vsel %vm1085, %v924, 0
        %1138 = vmatprep.subr.bf16.mxu0 0
        %1139 = vmatpush1.bf16.xpose.msra.mxu0 %v1136
        %1140 = vmatprep.subr.bf16.mxu0 0
        %1141 = vmatpush1.bf16.xpose.msra.mxu0 0
        %1142 = vmatprep.subr.bf16.mxu0 0
        %1143 = vmatpush1.bf16.xpose.msra.mxu0 0
        %1144 = vmatprep.subr.bf16.mxu0 0
        %1145 = vmatpush1.bf16.xpose.msra.mxu0 0
        %1146 = vmatprep.subr.bf16.mxu0 0
        %1147 = vmatpush1.bf16.xpose.msra.mxu0 0
        %1148 = vmatprep.subr.bf16.mxu0 0
        %1149 = vmatpush1.bf16.xpose.msra.mxu0 0
        %1150 = vmatprep.subr.bf16.mxu0 0
        %1151 = vmatpush1.bf16.xpose.msra.mxu0 0
        %1152 = vmatprep.subr.bf16.mxu0 0
        %1153 = vmatpush1.bf16.xpose.msra.mxu0 0
        %1154 = vmatprep.subr.bf16.mxu0 0
        %1155 = vmatpush1.bf16.xpose.msra.mxu0 0
        %1156 = vmatprep.subr.bf16.mxu0 0
        %1157 = vmatpush1.bf16.xpose.msra.mxu0 0
        %1158 = vmatprep.subr.bf16.mxu0 0
        %1159 = vmatpush1.bf16.xpose.msra.mxu0 0
        %1160 = vmatprep.subr.bf16.mxu0 0
        %1161 = vmatpush1.bf16.xpose.msra.mxu0 0
        %1162 = vmatprep.subr.bf16.mxu0 0
        %1163 = vmatpush1.bf16.xpose.msra.mxu0 0
        %1164 = vmatprep.subr.bf16.mxu0 0
        %1165 = vmatpush1.bf16.xpose.msra.mxu0 0
        %1166 = vmatprep.subr.bf16.mxu0 0
        %1167 = vmatpush1.bf16.xpose.msra.mxu0 0
        %1168 = vmatprep.subr.bf16.mxu0 0
        %1169 = vmatpush1.bf16.xpose.msra.mxu0 0
        %1170 = vmatprep.mubr.bf16.mxu0 0
        %1171 = vmatmul.mubr.bf16.gmra.mrb[0].mxu0 %v1133
        %v1172 = vpop.f32.mrb[0].mxu0
        %v1173 = vadd.f32 %v1084, %v1172
        %v1174 = vpop.f32.mrb[0].mxu0
        %v1175 = vpop.f32.mrb[0].mxu0
        %v1176 = vpop.f32.mrb[0].mxu0
        %1177 = vdwg.mxu0
        %v1179 = vsel %vm1085, %v773, 0
        %v1182 = vsel %vm1085, %v925, 0
        %1184 = vmatprep.subr.bf16.mxu0 0
        %1185 = vmatpush1.bf16.xpose.msra.mxu0 %v1182
        %1186 = vmatprep.subr.bf16.mxu0 0
        %1187 = vmatpush1.bf16.xpose.msra.mxu0 0
        %1188 = vmatprep.subr.bf16.mxu0 0
        %1189 = vmatpush1.bf16.xpose.msra.mxu0 0
        %1190 = vmatprep.subr.bf16.mxu0 0
        %1191 = vmatpush1.bf16.xpose.msra.mxu0 0
        %1192 = vmatprep.subr.bf16.mxu0 0
        %1193 = vmatpush1.bf16.xpose.msra.mxu0 0
        %1194 = vmatprep.subr.bf16.mxu0 0
        %1195 = vmatpush1.bf16.xpose.msra.mxu0 0
        %1196 = vmatprep.subr.bf16.mxu0 0
        %1197 = vmatpush1.bf16.xpose.msra.mxu0 0
        %1198 = vmatprep.subr.bf16.mxu0 0
        %1199 = vmatpush1.bf16.xpose.msra.mxu0 0
        %1200 = vmatprep.subr.bf16.mxu0 0
        %1201 = vmatpush1.bf16.xpose.msra.mxu0 0
        %1202 = vmatprep.subr.bf16.mxu0 0
        %1203 = vmatpush1.bf16.xpose.msra.mxu0 0
        %1204 = vmatprep.subr.bf16.mxu0 0
        %1205 = vmatpush1.bf16.xpose.msra.mxu0 0
        %1206 = vmatprep.subr.bf16.mxu0 0
        %1207 = vmatpush1.bf16.xpose.msra.mxu0 0
        %1208 = vmatprep.subr.bf16.mxu0 0
        %1209 = vmatpush1.bf16.xpose.msra.mxu0 0
        %1210 = vmatprep.subr.bf16.mxu0 0
        %1211 = vmatpush1.bf16.xpose.msra.mxu0 0
        %1212 = vmatprep.subr.bf16.mxu0 0
        %1213 = vmatpush1.bf16.xpose.msra.mxu0 0
        %1214 = vmatprep.subr.bf16.mxu0 0
        %1215 = vmatpush1.bf16.xpose.msra.mxu0 0
        %1216 = vmatprep.mubr.bf16.mxu0 0
        %1217 = vmatmul.mubr.bf16.gmra.mrb[0].mxu0 %v1179
        %v1218 = vpop.f32.mrb[0].mxu0
        %v1219 = vadd.f32 %v1084, %v1218
        %v1220 = vpop.f32.mrb[0].mxu0
        %v1221 = vpop.f32.mrb[0].mxu0
        %v1222 = vpop.f32.mrb[0].mxu0
        %1223 = vdwg.mxu0
        %v1225 = vsel %vm1085, %v774, 0
        %v1228 = vsel %vm1085, %v926, 0
        %1230 = vmatprep.subr.bf16.mxu0 0
        %1231 = vmatpush1.bf16.xpose.msra.mxu0 %v1228
        %1232 = vmatprep.subr.bf16.mxu0 0
        %1233 = vmatpush1.bf16.xpose.msra.mxu0 0
        %1234 = vmatprep.subr.bf16.mxu0 0
        %1235 = vmatpush1.bf16.xpose.msra.mxu0 0
        %1236 = vmatprep.subr.bf16.mxu0 0
        %1237 = vmatpush1.bf16.xpose.msra.mxu0 0
        %1238 = vmatprep.subr.bf16.mxu0 0
        %1239 = vmatpush1.bf16.xpose.msra.mxu0 0
        %1240 = vmatprep.subr.bf16.mxu0 0
        %1241 = vmatpush1.bf16.xpose.msra.mxu0 0
        %1242 = vmatprep.subr.bf16.mxu0 0
        %1243 = vmatpush1.bf16.xpose.msra.mxu0 0
        %1244 = vmatprep.subr.bf16.mxu0 0
        %1245 = vmatpush1.bf16.xpose.msra.mxu0 0
        %1246 = vmatprep.subr.bf16.mxu0 0
        %1247 = vmatpush1.bf16.xpose.msra.mxu0 0
        %1248 = vmatprep.subr.bf16.mxu0 0
        %1249 = vmatpush1.bf16.xpose.msra.mxu0 0
        %1250 = vmatprep.subr.bf16.mxu0 0
        %1251 = vmatpush1.bf16.xpose.msra.mxu0 0
        %1252 = vmatprep.subr.bf16.mxu0 0
        %1253 = vmatpush1.bf16.xpose.msra.mxu0 0
        %1254 = vmatprep.subr.bf16.mxu0 0
        %1255 = vmatpush1.bf16.xpose.msra.mxu0 0
        %1256 = vmatprep.subr.bf16.mxu0 0
        %1257 = vmatpush1.bf16.xpose.msra.mxu0 0
        %1258 = vmatprep.subr.bf16.mxu0 0
        %1259 = vmatpush1.bf16.xpose.msra.mxu0 0
        %1260 = vmatprep.subr.bf16.mxu0 0
        %1261 = vmatpush1.bf16.xpose.msra.mxu0 0
        %1262 = vmatprep.mubr.bf16.mxu0 0
        %1263 = vmatmul.mubr.bf16.gmra.mrb[0].mxu0 %v1225
        %v1264 = vpop.f32.mrb[0].mxu0
        %v1265 = vadd.f32 %v1084, %v1264
        %v1266 = vpop.f32.mrb[0].mxu0
        %v1267 = vpop.f32.mrb[0].mxu0
        %v1268 = vpop.f32.mrb[0].mxu0
        %1269 = vdwg.mxu0
        %v1270 = vsel %vm1085, %v1127, -inf
        %1271 = vmax.xlane.f32.xlu0 %v1270
        %v1272 = vpop.xlane.xlu0 %1271
        %v1273 = vsel %vm1085, %v1173, -inf
        %1274 = vmax.xlane.f32.xlu0 %v1273
        %v1275 = vpop.xlane.xlu0 %1274
        %v1276 = vsel %vm1085, %v1219, -inf
        %1277 = vmax.xlane.f32.xlu0 %v1276
        %v1278 = vpop.xlane.xlu0 %1277
        %v1279 = vsel %vm1085, %v1265, -inf
        %1280 = vmax.xlane.f32.xlu0 %v1279
        %v1281 = vpop.xlane.xlu0 %1280
        %v1282 = vsub.f32 %v1127, %v1272
        %v1283 = vsub.f32 %v1173, %v1275
        %v1284 = vsub.f32 %v1219, %v1278
        %v1285 = vsub.f32 %v1265, %v1281
        %v1286 = vmul.f32 %v1282, 1.442695
        %v1287 = vpow.pop %v1286
        %v1288 = vmul.f32 %v1283, 1.442695
        %v1289 = vpow.pop %v1288
        %v1290 = vmul.f32 %v1284, 1.442695
        %v1291 = vpow.pop %v1290
        %v1292 = vmul.f32 %v1285, 1.442695
        %v1293 = vpow.pop %v1292
        %v1294 = vsel %vm1085, %v1287, 0.0
        %1295 = vadd.xlane.f32.xlu0 %v1294
        %v1296 = vpop.xlane.xlu0 %1295
        %v1297 = vsel %vm1085, %v1289, 0.0
        %1298 = vadd.xlane.f32.xlu0 %v1297
        %v1299 = vpop.xlane.xlu0 %1298
        %v1300 = vsel %vm1085, %v1291, 0.0
        %1301 = vadd.xlane.f32.xlu0 %v1300
        %v1302 = vpop.xlane.xlu0 %1301
        %v1303 = vsel %vm1085, %v1293, 0.0
        %1304 = vadd.xlane.f32.xlu0 %v1303
        %v1305 = vpop.xlane.xlu0 %1304
        %v1306 = vrcp.pop %v1296
        %v1307 = vrcp.pop %v1299
        %v1308 = vrcp.pop %v1302
        %v1309 = vrcp.pop %v1305
        %v1310 = vmul.f32 %v1287, %v1306
        %v1311 = vmul.f32 %v1289, %v1307
        %v1312 = vmul.f32 %v1291, %v1308
        %v1313 = vmul.f32 %v1293, %v1309
        %v1314 = vpack.c.bf16 %v1310, %v1310
        %v1315 = vpack.c.bf16 %v1311, %v1311
        %v1316 = vpack.c.bf16 %v1312, %v1312
        %v1317 = vpack.c.bf16 %v1313, %v1313
        %v1319 = vsel %vm1085, %v1314, 0
        %vm1321 = vcmask 1043456
        %v1323 = vsel %vm1321, %v1075, 0
        %1325 = vmatprep.subr.bf16.mxu0 0
        %1326 = vmatpush1.bf16.msra.mxu0 %v1323
        %1327 = vmatprep.subr.bf16.mxu0 0
        %1328 = vmatpush1.bf16.msra.mxu0 0
        %1329 = vmatprep.subr.bf16.mxu0 0
        %1330 = vmatpush1.bf16.msra.mxu0 0
        %1331 = vmatprep.subr.bf16.mxu0 0
        %1332 = vmatpush1.bf16.msra.mxu0 0
        %1333 = vmatprep.subr.bf16.mxu0 0
        %1334 = vmatpush1.bf16.msra.mxu0 0
        %1335 = vmatprep.subr.bf16.mxu0 0
        %1336 = vmatpush1.bf16.msra.mxu0 0
        %1337 = vmatprep.subr.bf16.mxu0 0
        %1338 = vmatpush1.bf16.msra.mxu0 0
        %1339 = vmatprep.subr.bf16.mxu0 0
        %1340 = vmatpush1.bf16.msra.mxu0 0
        %1341 = vmatprep.subr.bf16.mxu0 0
        %1342 = vmatpush1.bf16.msra.mxu0 0
        %1343 = vmatprep.subr.bf16.mxu0 0
        %1344 = vmatpush1.bf16.msra.mxu0 0
        %1345 = vmatprep.subr.bf16.mxu0 0
        %1346 = vmatpush1.bf16.msra.mxu0 0
        %1347 = vmatprep.subr.bf16.mxu0 0
        %1348 = vmatpush1.bf16.msra.mxu0 0
        %1349 = vmatprep.subr.bf16.mxu0 0
        %1350 = vmatpush1.bf16.msra.mxu0 0
        %1351 = vmatprep.subr.bf16.mxu0 0
        %1352 = vmatpush1.bf16.msra.mxu0 0
        %1353 = vmatprep.subr.bf16.mxu0 0
        %1354 = vmatpush1.bf16.msra.mxu0 0
        %1355 = vmatprep.subr.bf16.mxu0 0
        %1356 = vmatpush1.bf16.msra.mxu0 0
        %1357 = vmatprep.mubr.bf16.mxu0 0
        %1358 = vmatmul.mubr.bf16.gmra.mrb[0].mxu0 %v1319
        %v1359 = vpop.f32.mrb[0].mxu0
        %v1360 = vadd.f32 0.0, %v1359
        %v1361 = vpop.f32.mrb[0].mxu0
        %v1362 = vpop.f32.mrb[0].mxu0
        %v1363 = vpop.f32.mrb[0].mxu0
        %1364 = vdwg.mxu0
        %v1366 = vsel %vm1085, %v1315, 0
        %v1369 = vsel %vm1321, %v1076, 0
        %1371 = vmatprep.subr.bf16.mxu0 0
        %1372 = vmatpush1.bf16.msra.mxu0 %v1369
        %1373 = vmatprep.subr.bf16.mxu0 0
        %1374 = vmatpush1.bf16.msra.mxu0 0
        %1375 = vmatprep.subr.bf16.mxu0 0
        %1376 = vmatpush1.bf16.msra.mxu0 0
        %1377 = vmatprep.subr.bf16.mxu0 0
        %1378 = vmatpush1.bf16.msra.mxu0 0
        %1379 = vmatprep.subr.bf16.mxu0 0
        %1380 = vmatpush1.bf16.msra.mxu0 0
        %1381 = vmatprep.subr.bf16.mxu0 0
        %1382 = vmatpush1.bf16.msra.mxu0 0
        %1383 = vmatprep.subr.bf16.mxu0 0
        %1384 = vmatpush1.bf16.msra.mxu0 0
        %1385 = vmatprep.subr.bf16.mxu0 0
        %1386 = vmatpush1.bf16.msra.mxu0 0
        %1387 = vmatprep.subr.bf16.mxu0 0
        %1388 = vmatpush1.bf16.msra.mxu0 0
        %1389 = vmatprep.subr.bf16.mxu0 0
        %1390 = vmatpush1.bf16.msra.mxu0 0
        %1391 = vmatprep.subr.bf16.mxu0 0
        %1392 = vmatpush1.bf16.msra.mxu0 0
        %1393 = vmatprep.subr.bf16.mxu0 0
        %1394 = vmatpush1.bf16.msra.mxu0 0
        %1395 = vmatprep.subr.bf16.mxu0 0
        %1396 = vmatpush1.bf16.msra.mxu0 0
        %1397 = vmatprep.subr.bf16.mxu0 0
        %1398 = vmatpush1.bf16.msra.mxu0 0
        %1399 = vmatprep.subr.bf16.mxu0 0
        %1400 = vmatpush1.bf16.msra.mxu0 0
        %1401 = vmatprep.subr.bf16.mxu0 0
        %1402 = vmatpush1.bf16.msra.mxu0 0
        %1403 = vmatprep.mubr.bf16.mxu0 0
        %1404 = vmatmul.mubr.bf16.gmra.mrb[0].mxu0 %v1366
        %v1405 = vpop.f32.mrb[0].mxu0
        %v1406 = vadd.f32 0.0, %v1405
        %v1407 = vpop.f32.mrb[0].mxu0
        %v1408 = vpop.f32.mrb[0].mxu0
        %v1409 = vpop.f32.mrb[0].mxu0
        %1410 = vdwg.mxu0
        %v1412 = vsel %vm1085, %v1316, 0
        %v1415 = vsel %vm1321, %v1077, 0
        %1417 = vmatprep.subr.bf16.mxu0 0
        %1418 = vmatpush1.bf16.msra.mxu0 %v1415
        %1419 = vmatprep.subr.bf16.mxu0 0
        %1420 = vmatpush1.bf16.msra.mxu0 0
        %1421 = vmatprep.subr.bf16.mxu0 0
        %1422 = vmatpush1.bf16.msra.mxu0 0
        %1423 = vmatprep.subr.bf16.mxu0 0
        %1424 = vmatpush1.bf16.msra.mxu0 0
        %1425 = vmatprep.subr.bf16.mxu0 0
        %1426 = vmatpush1.bf16.msra.mxu0 0
        %1427 = vmatprep.subr.bf16.mxu0 0
        %1428 = vmatpush1.bf16.msra.mxu0 0
        %1429 = vmatprep.subr.bf16.mxu0 0
        %1430 = vmatpush1.bf16.msra.mxu0 0
        %1431 = vmatprep.subr.bf16.mxu0 0
        %1432 = vmatpush1.bf16.msra.mxu0 0
        %1433 = vmatprep.subr.bf16.mxu0 0
        %1434 = vmatpush1.bf16.msra.mxu0 0
        %1435 = vmatprep.subr.bf16.mxu0 0
        %1436 = vmatpush1.bf16.msra.mxu0 0
        %1437 = vmatprep.subr.bf16.mxu0 0
        %1438 = vmatpush1.bf16.msra.mxu0 0
        %1439 = vmatprep.subr.bf16.mxu0 0
        %1440 = vmatpush1.bf16.msra.mxu0 0
        %1441 = vmatprep.subr.bf16.mxu0 0
        %1442 = vmatpush1.bf16.msra.mxu0 0
        %1443 = vmatprep.subr.bf16.mxu0 0
        %1444 = vmatpush1.bf16.msra.mxu0 0
        %1445 = vmatprep.subr.bf16.mxu0 0
        %1446 = vmatpush1.bf16.msra.mxu0 0
        %1447 = vmatprep.subr.bf16.mxu0 0
        %1448 = vmatpush1.bf16.msra.mxu0 0
        %1449 = vmatprep.mubr.bf16.mxu0 0
        %1450 = vmatmul.mubr.bf16.gmra.mrb[0].mxu0 %v1412
        %v1451 = vpop.f32.mrb[0].mxu0
        %v1452 = vadd.f32 0.0, %v1451
        %v1453 = vpop.f32.mrb[0].mxu0
        %v1454 = vpop.f32.mrb[0].mxu0
        %v1455 = vpop.f32.mrb[0].mxu0
        %1456 = vdwg.mxu0
        %v1458 = vsel %vm1085, %v1317, 0
        %v1461 = vsel %vm1321, %v1078, 0
        %1463 = vmatprep.subr.bf16.mxu0 0
        %1464 = vmatpush1.bf16.msra.mxu0 %v1461
        %1465 = vmatprep.subr.bf16.mxu0 0
        %1466 = vmatpush1.bf16.msra.mxu0 0
        %1467 = vmatprep.subr.bf16.mxu0 0
        %1468 = vmatpush1.bf16.msra.mxu0 0
        %1469 = vmatprep.subr.bf16.mxu0 0
        %1470 = vmatpush1.bf16.msra.mxu0 0
        %1471 = vmatprep.subr.bf16.mxu0 0
        %1472 = vmatpush1.bf16.msra.mxu0 0
        %1473 = vmatprep.subr.bf16.mxu0 0
        %1474 = vmatpush1.bf16.msra.mxu0 0
        %1475 = vmatprep.subr.bf16.mxu0 0
        %1476 = vmatpush1.bf16.msra.mxu0 0
        %1477 = vmatprep.subr.bf16.mxu0 0
        %1478 = vmatpush1.bf16.msra.mxu0 0
        %1479 = vmatprep.subr.bf16.mxu0 0
        %1480 = vmatpush1.bf16.msra.mxu0 0
        %1481 = vmatprep.subr.bf16.mxu0 0
        %1482 = vmatpush1.bf16.msra.mxu0 0
        %1483 = vmatprep.subr.bf16.mxu0 0
        %1484 = vmatpush1.bf16.msra.mxu0 0
        %1485 = vmatprep.subr.bf16.mxu0 0
        %1486 = vmatpush1.bf16.msra.mxu0 0
        %1487 = vmatprep.subr.bf16.mxu0 0
        %1488 = vmatpush1.bf16.msra.mxu0 0
        %1489 = vmatprep.subr.bf16.mxu0 0
        %1490 = vmatpush1.bf16.msra.mxu0 0
        %1491 = vmatprep.subr.bf16.mxu0 0
        %1492 = vmatpush1.bf16.msra.mxu0 0
        %1493 = vmatprep.subr.bf16.mxu0 0
        %1494 = vmatpush1.bf16.msra.mxu0 0
        %1495 = vmatprep.mubr.bf16.mxu0 0
        %1496 = vmatmul.mubr.bf16.gmra.mrb[0].mxu0 %v1458
        %v1497 = vpop.f32.mrb[0].mxu0
        %v1498 = vadd.f32 0.0, %v1497
        %v1499 = vpop.f32.mrb[0].mxu0
        %v1500 = vpop.f32.mrb[0].mxu0
        %v1501 = vpop.f32.mrb[0].mxu0
        %1502 = vdwg.mxu0
        %v1503 = vcombine.low %v1360, %v1452
        %v1504 = vcombine.high %v1360, %v1452
        %v1506 = vunpack.c.l.s4 1983009808
        %v1507 = vunpack.c.0.s8 %v1506
        %v1508 = vlaneseq
        %v1509 = vshrl.u32 %v1508, 7
        %v1510 = vsub.s32 %v1507, %v1509
        %v1511 = vrot.slane %v1503, %v1510
        %v1513 = vunpack.c.l.s4 1983009808
        %v1514 = vunpack.c.0.s8 %v1513
        %v1515 = vlaneseq
        %v1516 = vshrl.u32 %v1515, 7
        %v1517 = vsub.s32 %v1514, %v1516
        %v1518 = vrot.slane %v1504, %v1517
        %v1519 = vcombine.low %v1406, %v1498
        %v1520 = vcombine.high %v1406, %v1498
        %v1522 = vunpack.c.l.s4 1983009808
        %v1523 = vunpack.c.0.s8 %v1522
        %v1524 = vlaneseq
        %v1525 = vshrl.u32 %v1524, 7
        %v1526 = vsub.s32 %v1523, %v1525
        %v1527 = vrot.slane %v1519, %v1526
        %v1529 = vunpack.c.l.s4 1983009808
        %v1530 = vunpack.c.0.s8 %v1529
        %v1531 = vlaneseq
        %v1532 = vshrl.u32 %v1531, 7
        %v1533 = vsub.s32 %v1530, %v1532
        %v1534 = vrot.slane %v1520, %v1533
        %v1535 = vcombine.low %v1511, %v1527
        %v1536 = vcombine.high %v1511, %v1527
        %v1538 = vunpack.c.l.s4 1934713408
        %v1539 = vunpack.c.0.s8 %v1538
        %v1540 = vlaneseq
        %v1541 = vshrl.u32 %v1540, 7
        %v1542 = vsub.s32 %v1539, %v1541
        %v1543 = vrot.slane %v1535, %v1542
        %v1545 = vunpack.c.l.s4 1934713408
        %v1546 = vunpack.c.0.s8 %v1545
        %v1547 = vlaneseq
        %v1548 = vshrl.u32 %v1547, 7
        %v1549 = vsub.s32 %v1546, %v1548
        %v1550 = vrot.slane %v1536, %v1549
        %v1551 = vcombine.low %v1518, %v1534
        %v1552 = vcombine.high %v1518, %v1534
        %v1554 = vunpack.c.l.s4 1934713408
        %v1555 = vunpack.c.0.s8 %v1554
        %v1556 = vlaneseq
        %v1557 = vshrl.u32 %v1556, 7
        %v1558 = vsub.s32 %v1555, %v1557
        %v1559 = vrot.slane %v1551, %v1558
        %v1561 = vunpack.c.l.s4 1934713408
        %v1562 = vunpack.c.0.s8 %v1561
        %v1563 = vlaneseq
        %v1564 = vshrl.u32 %v1563, 7
        %v1565 = vsub.s32 %v1562, %v1564
        %v1566 = vrot.slane %v1552, %v1565
        %v1567 = vcombine.high %v1543, 0.0
        %v1568 = vcombine.high %v1550, 0.0
        %v1569 = vcombine.high %v1559, 0.0
        %v1570 = vcombine.high %v1566, 0.0
        %v1571 = vcombine.low %v1543, %v1550
        %v1573 = vunpack.c.l.s4 1983009808
        %v1574 = vunpack.c.0.s8 %v1573
        %v1575 = vlaneseq
        %v1576 = vshrl.u32 %v1575, 7
        %v1577 = vsub.s32 %v1574, %v1576
        %v1578 = vrot.slane %v1571, %v1577
        %v1579 = vcombine.low %v1567, %v1568
        %v1581 = vunpack.c.l.s4 1983009808
        %v1582 = vunpack.c.0.s8 %v1581
        %v1583 = vlaneseq
        %v1584 = vshrl.u32 %v1583, 7
        %v1585 = vsub.s32 %v1582, %v1584
        %v1586 = vrot.slane %v1579, %v1585
        %v1587 = vcombine.low %v1559, %v1566
        %v1589 = vunpack.c.l.s4 1983009808
        %v1590 = vunpack.c.0.s8 %v1589
        %v1591 = vlaneseq
        %v1592 = vshrl.u32 %v1591, 7
        %v1593 = vsub.s32 %v1590, %v1592
        %v1594 = vrot.slane %v1587, %v1593
        %v1595 = vcombine.low %v1569, %v1570
        %v1597 = vunpack.c.l.s4 1983009808
        %v1598 = vunpack.c.0.s8 %v1597
        %v1599 = vlaneseq
        %v1600 = vshrl.u32 %v1599, 7
        %v1601 = vsub.s32 %v1598, %v1600
        %v1602 = vrot.slane %v1595, %v1601
        %v1603 = vcombine.low %v1578, %v1586
        %v1604 = vcombine.high %v1578, %v1586
        %v1606 = vunpack.c.l.s4 1934713408
        %v1607 = vunpack.c.0.s8 %v1606
        %v1608 = vlaneseq
        %v1609 = vshrl.u32 %v1608, 7
        %v1610 = vsub.s32 %v1607, %v1609
        %v1611 = vrot.slane %v1603, %v1610
        %v1613 = vunpack.c.l.s4 1934713408
        %v1614 = vunpack.c.0.s8 %v1613
        %v1615 = vlaneseq
        %v1616 = vshrl.u32 %v1615, 7
        %v1617 = vsub.s32 %v1614, %v1616
        %v1618 = vrot.slane %v1604, %v1617
        %v1619 = vcombine.low %v1594, %v1602
        %v1620 = vcombine.high %v1594, %v1602
        %v1622 = vunpack.c.l.s4 1934713408
        %v1623 = vunpack.c.0.s8 %v1622
        %v1624 = vlaneseq
        %v1625 = vshrl.u32 %v1624, 7
        %v1626 = vsub.s32 %v1623, %v1625
        %v1627 = vrot.slane %v1619, %v1626
        %v1629 = vunpack.c.l.s4 1934713408
        %v1630 = vunpack.c.0.s8 %v1629
        %v1631 = vlaneseq
        %v1632 = vshrl.u32 %v1631, 7
        %v1633 = vsub.s32 %v1630, %v1632
        %v1634 = vrot.slane %v1620, %v1633
        %v1635 = vcombine.low %v1611, %v1627
        %v1636 = vcombine.high %v1611, %v1627
        %v1637 = vcombine.low %v1618, %v1634
        %v1638 = vcombine.high %v1618, %v1634
        %1640 = vrot.lane.b32.xlu0 %v1636, 8
        %v1641 = vpop.permute.xlu0 %1640
        %1644 = vrot.lane.b32.xlu0 %v1637, 16
        %v1645 = vpop.permute.xlu0 %1644
        %1648 = vrot.lane.b32.xlu0 %v1638, 24
        %v1649 = vpop.permute.xlu0 %1648
        %v1651 = vsel %vm1085, %v1635, %v1641
        %vm1652 = vcmask 130048
        %v1653 = vsel %vm1652, %v1651, %v1645
        %vm1654 = vcmask 195584
        %v1655 = vsel %vm1654, %v1653, %v1649
        %v1656 = vpack.c.bf16 %v1655, %v1655
        %vm1657 = vcmask 257024
        %1658 = vst.msk [vmem:[#allocation2] sm:$0xf] %vm1657, %v1656
        %1660 = vrot.lane.b32.xlu0 %v622, 120
        %v1661 = vpop.permute.xlu0 %1660
        %1663 = vrot.lane.b32.xlu0 %v622, 112
        %v1664 = vpop.permute.xlu0 %1663
        %1666 = vrot.lane.b32.xlu0 %v622, 104
        %v1667 = vpop.permute.xlu0 %1666
        %v1669 = vcombine.low %v622, %v1664
        %v1670 = vcombine.high %v622, %v1664
        %v1672 = vunpack.c.l.s4 1983009808
        %v1673 = vunpack.c.0.s8 %v1672
        %v1674 = vlaneseq
        %v1675 = vshrl.u32 %v1674, 7
        %v1676 = vsub.s32 %v1673, %v1675
        %v1677 = vrot.slane %v1669, %v1676
        %v1679 = vunpack.c.l.s4 1983009808
        %v1680 = vunpack.c.0.s8 %v1679
        %v1681 = vlaneseq
        %v1682 = vshrl.u32 %v1681, 7
        %v1683 = vsub.s32 %v1680, %v1682
        %v1684 = vrot.slane %v1670, %v1683
        %v1685 = vcombine.low %v1661, %v1667
        %v1686 = vcombine.high %v1661, %v1667
        %v1688 = vunpack.c.l.s4 1983009808
        %v1689 = vunpack.c.0.s8 %v1688
        %v1690 = vlaneseq
        %v1691 = vshrl.u32 %v1690, 7
        %v1692 = vsub.s32 %v1689, %v1691
        %v1693 = vrot.slane %v1685, %v1692
        %v1695 = vunpack.c.l.s4 1983009808
        %v1696 = vunpack.c.0.s8 %v1695
        %v1697 = vlaneseq
        %v1698 = vshrl.u32 %v1697, 7
        %v1699 = vsub.s32 %v1696, %v1698
        %v1700 = vrot.slane %v1686, %v1699
        %v1701 = vcombine.low %v1677, %v1693
        %v1702 = vcombine.high %v1677, %v1693
        %v1704 = vunpack.c.l.s4 1934713408
        %v1705 = vunpack.c.0.s8 %v1704
        %v1706 = vlaneseq
        %v1707 = vshrl.u32 %v1706, 7
        %v1708 = vsub.s32 %v1705, %v1707
        %v1709 = vrot.slane %v1701, %v1708
        %v1711 = vunpack.c.l.s4 1934713408
        %v1712 = vunpack.c.0.s8 %v1711
        %v1713 = vlaneseq
        %v1714 = vshrl.u32 %v1713, 7
        %v1715 = vsub.s32 %v1712, %v1714
        %v1716 = vrot.slane %v1702, %v1715
        %v1717 = vcombine.low %v1684, %v1700
        %v1718 = vcombine.high %v1684, %v1700
        %v1720 = vunpack.c.l.s4 1934713408
        %v1721 = vunpack.c.0.s8 %v1720
        %v1722 = vlaneseq
        %v1723 = vshrl.u32 %v1722, 7
        %v1724 = vsub.s32 %v1721, %v1723
        %v1725 = vrot.slane %v1717, %v1724
        %v1727 = vunpack.c.l.s4 1934713408
        %v1728 = vunpack.c.0.s8 %v1727
        %v1729 = vlaneseq
        %v1730 = vshrl.u32 %v1729, 7
        %v1731 = vsub.s32 %v1728, %v1730
        %v1732 = vrot.slane %v1718, %v1731
        %v1733 = vcombine.high %v1709, 0.0
        %v1734 = vcombine.high %v1716, 0.0
        %v1735 = vcombine.high %v1725, 0.0
        %v1736 = vcombine.high %v1732, 0.0
        %v1737 = vcombine.low %v1709, %v1716
        %v1739 = vunpack.c.l.s4 1983009808
        %v1740 = vunpack.c.0.s8 %v1739
        %v1741 = vlaneseq
        %v1742 = vshrl.u32 %v1741, 7
        %v1743 = vsub.s32 %v1740, %v1742
        %v1744 = vrot.slane %v1737, %v1743
        %v1745 = vcombine.low %v1733, %v1734
        %v1747 = vunpack.c.l.s4 1983009808
        %v1748 = vunpack.c.0.s8 %v1747
        %v1749 = vlaneseq
        %v1750 = vshrl.u32 %v1749, 7
        %v1751 = vsub.s32 %v1748, %v1750
        %v1752 = vrot.slane %v1745, %v1751
        %v1753 = vcombine.low %v1725, %v1732
        %v1755 = vunpack.c.l.s4 1983009808
        %v1756 = vunpack.c.0.s8 %v1755
        %v1757 = vlaneseq
        %v1758 = vshrl.u32 %v1757, 7
        %v1759 = vsub.s32 %v1756, %v1758
        %v1760 = vrot.slane %v1753, %v1759
        %v1761 = vcombine.low %v1735, %v1736
        %v1763 = vunpack.c.l.s4 1983009808
        %v1764 = vunpack.c.0.s8 %v1763
        %v1765 = vlaneseq
        %v1766 = vshrl.u32 %v1765, 7
        %v1767 = vsub.s32 %v1764, %v1766
        %v1768 = vrot.slane %v1761, %v1767
        %v1769 = vcombine.low %v1744, %v1752
        %v1770 = vcombine.high %v1744, %v1752
        %v1772 = vunpack.c.l.s4 1934713408
        %v1773 = vunpack.c.0.s8 %v1772
        %v1774 = vlaneseq
        %v1775 = vshrl.u32 %v1774, 7
        %v1776 = vsub.s32 %v1773, %v1775
        %v1777 = vrot.slane %v1769, %v1776
        %v1779 = vunpack.c.l.s4 1934713408
        %v1780 = vunpack.c.0.s8 %v1779
        %v1781 = vlaneseq
        %v1782 = vshrl.u32 %v1781, 7
        %v1783 = vsub.s32 %v1780, %v1782
        %v1784 = vrot.slane %v1770, %v1783
        %v1785 = vcombine.low %v1760, %v1768
        %v1786 = vcombine.high %v1760, %v1768
        %v1788 = vunpack.c.l.s4 1934713408
        %v1789 = vunpack.c.0.s8 %v1788
        %v1790 = vlaneseq
        %v1791 = vshrl.u32 %v1790, 7
        %v1792 = vsub.s32 %v1789, %v1791
        %v1793 = vrot.slane %v1785, %v1792
        %v1795 = vunpack.c.l.s4 1934713408
        %v1796 = vunpack.c.0.s8 %v1795
        %v1797 = vlaneseq
        %v1798 = vshrl.u32 %v1797, 7
        %v1799 = vsub.s32 %v1796, %v1798
        %v1800 = vrot.slane %v1786, %v1799
        %v1801 = vcombine.low %v1777, %v1793
        %v1802 = vcombine.high %v1777, %v1793
        %v1803 = vcombine.low %v1784, %v1800
        %v1804 = vcombine.high %v1784, %v1800
        %v1805 = vpack.c.bf16 %v1801, %v1801
        %v1806 = vpack.c.bf16 %v1802, %v1802
        %v1807 = vpack.c.bf16 %v1803, %v1803
        %v1808 = vpack.c.bf16 %v1804, %v1804
        %1809 = vrot.lane.b32.xlu0 %v622, 96
        %v1810 = vpop.permute.xlu0 %1809
        %1811 = vrot.lane.b32.xlu0 %v1661, 96
        %v1812 = vpop.permute.xlu0 %1811
        %1813 = vrot.lane.b32.xlu0 %v1664, 96
        %v1814 = vpop.permute.xlu0 %1813
        %1815 = vrot.lane.b32.xlu0 %v1667, 96
        %v1816 = vpop.permute.xlu0 %1815
        %v1821 = vcombine.low %v1810, %v1814
        %v1822 = vcombine.high %v1810, %v1814
        %v1824 = vunpack.c.l.s4 1983009808
        %v1825 = vunpack.c.0.s8 %v1824
        %v1826 = vlaneseq
        %v1827 = vshrl.u32 %v1826, 7
        %v1828 = vsub.s32 %v1825, %v1827
        %v1829 = vrot.slane %v1821, %v1828
        %v1831 = vunpack.c.l.s4 1983009808
        %v1832 = vunpack.c.0.s8 %v1831
        %v1833 = vlaneseq
        %v1834 = vshrl.u32 %v1833, 7
        %v1835 = vsub.s32 %v1832, %v1834
        %v1836 = vrot.slane %v1822, %v1835
        %v1837 = vcombine.low %v1812, %v1816
        %v1838 = vcombine.high %v1812, %v1816
        %v1840 = vunpack.c.l.s4 1983009808
        %v1841 = vunpack.c.0.s8 %v1840
        %v1842 = vlaneseq
        %v1843 = vshrl.u32 %v1842, 7
        %v1844 = vsub.s32 %v1841, %v1843
        %v1845 = vrot.slane %v1837, %v1844
        %v1847 = vunpack.c.l.s4 1983009808
        %v1848 = vunpack.c.0.s8 %v1847
        %v1849 = vlaneseq
        %v1850 = vshrl.u32 %v1849, 7
        %v1851 = vsub.s32 %v1848, %v1850
        %v1852 = vrot.slane %v1838, %v1851
        %v1853 = vcombine.low %v1829, %v1845
        %v1854 = vcombine.high %v1829, %v1845
        %v1856 = vunpack.c.l.s4 1934713408
        %v1857 = vunpack.c.0.s8 %v1856
        %v1858 = vlaneseq
        %v1859 = vshrl.u32 %v1858, 7
        %v1860 = vsub.s32 %v1857, %v1859
        %v1861 = vrot.slane %v1853, %v1860
        %v1863 = vunpack.c.l.s4 1934713408
        %v1864 = vunpack.c.0.s8 %v1863
        %v1865 = vlaneseq
        %v1866 = vshrl.u32 %v1865, 7
        %v1867 = vsub.s32 %v1864, %v1866
        %v1868 = vrot.slane %v1854, %v1867
        %v1869 = vcombine.low %v1836, %v1852
        %v1870 = vcombine.high %v1836, %v1852
        %v1872 = vunpack.c.l.s4 1934713408
        %v1873 = vunpack.c.0.s8 %v1872
        %v1874 = vlaneseq
        %v1875 = vshrl.u32 %v1874, 7
        %v1876 = vsub.s32 %v1873, %v1875
        %v1877 = vrot.slane %v1869, %v1876
        %v1879 = vunpack.c.l.s4 1934713408
        %v1880 = vunpack.c.0.s8 %v1879
        %v1881 = vlaneseq
        %v1882 = vshrl.u32 %v1881, 7
        %v1883 = vsub.s32 %v1880, %v1882
        %v1884 = vrot.slane %v1870, %v1883
        %v1885 = vcombine.high %v1861, 0.0
        %v1886 = vcombine.high %v1868, 0.0
        %v1887 = vcombine.high %v1877, 0.0
        %v1888 = vcombine.high %v1884, 0.0
        %v1889 = vcombine.low %v1861, %v1868
        %v1891 = vunpack.c.l.s4 1983009808
        %v1892 = vunpack.c.0.s8 %v1891
        %v1893 = vlaneseq
        %v1894 = vshrl.u32 %v1893, 7
        %v1895 = vsub.s32 %v1892, %v1894
        %v1896 = vrot.slane %v1889, %v1895
        %v1897 = vcombine.low %v1885, %v1886
        %v1899 = vunpack.c.l.s4 1983009808
        %v1900 = vunpack.c.0.s8 %v1899
        %v1901 = vlaneseq
        %v1902 = vshrl.u32 %v1901, 7
        %v1903 = vsub.s32 %v1900, %v1902
        %v1904 = vrot.slane %v1897, %v1903
        %v1905 = vcombine.low %v1877, %v1884
        %v1907 = vunpack.c.l.s4 1983009808
        %v1908 = vunpack.c.0.s8 %v1907
        %v1909 = vlaneseq
        %v1910 = vshrl.u32 %v1909, 7
        %v1911 = vsub.s32 %v1908, %v1910
        %v1912 = vrot.slane %v1905, %v1911
        %v1913 = vcombine.low %v1887, %v1888
        %v1915 = vunpack.c.l.s4 1983009808
        %v1916 = vunpack.c.0.s8 %v1915
        %v1917 = vlaneseq
        %v1918 = vshrl.u32 %v1917, 7
        %v1919 = vsub.s32 %v1916, %v1918
        %v1920 = vrot.slane %v1913, %v1919
        %v1921 = vcombine.low %v1896, %v1904
        %v1922 = vcombine.high %v1896, %v1904
        %v1924 = vunpack.c.l.s4 1934713408
        %v1925 = vunpack.c.0.s8 %v1924
        %v1926 = vlaneseq
        %v1927 = vshrl.u32 %v1926, 7
        %v1928 = vsub.s32 %v1925, %v1927
        %v1929 = vrot.slane %v1921, %v1928
        %v1931 = vunpack.c.l.s4 1934713408
        %v1932 = vunpack.c.0.s8 %v1931
        %v1933 = vlaneseq
        %v1934 = vshrl.u32 %v1933, 7
        %v1935 = vsub.s32 %v1932, %v1934
        %v1936 = vrot.slane %v1922, %v1935
        %v1937 = vcombine.low %v1912, %v1920
        %v1938 = vcombine.high %v1912, %v1920
        %v1940 = vunpack.c.l.s4 1934713408
        %v1941 = vunpack.c.0.s8 %v1940
        %v1942 = vlaneseq
        %v1943 = vshrl.u32 %v1942, 7
        %v1944 = vsub.s32 %v1941, %v1943
        %v1945 = vrot.slane %v1937, %v1944
        %v1947 = vunpack.c.l.s4 1934713408
        %v1948 = vunpack.c.0.s8 %v1947
        %v1949 = vlaneseq
        %v1950 = vshrl.u32 %v1949, 7
        %v1951 = vsub.s32 %v1948, %v1950
        %v1952 = vrot.slane %v1938, %v1951
        %v1953 = vcombine.low %v1929, %v1945
        %v1954 = vcombine.high %v1929, %v1945
        %v1955 = vcombine.low %v1936, %v1952
        %v1956 = vcombine.high %v1936, %v1952
        %v1957 = vpack.c.bf16 %v1953, %v1953
        %v1958 = vpack.c.bf16 %v1954, %v1954
        %v1959 = vpack.c.bf16 %v1955, %v1955
        %v1960 = vpack.c.bf16 %v1956, %v1956
        %1961 = vrot.lane.b32.xlu0 %v622, 64
        %v1962 = vpop.permute.xlu0 %1961
        %1963 = vrot.lane.b32.xlu0 %v1661, 64
        %v1964 = vpop.permute.xlu0 %1963
        %1965 = vrot.lane.b32.xlu0 %v1664, 64
        %v1966 = vpop.permute.xlu0 %1965
        %1967 = vrot.lane.b32.xlu0 %v1667, 64
        %v1968 = vpop.permute.xlu0 %1967
        %v1973 = vcombine.low %v1962, %v1966
        %v1974 = vcombine.high %v1962, %v1966
        %v1976 = vunpack.c.l.s4 1983009808
        %v1977 = vunpack.c.0.s8 %v1976
        %v1978 = vlaneseq
        %v1979 = vshrl.u32 %v1978, 7
        %v1980 = vsub.s32 %v1977, %v1979
        %v1981 = vrot.slane %v1973, %v1980
        %v1983 = vunpack.c.l.s4 1983009808
        %v1984 = vunpack.c.0.s8 %v1983
        %v1985 = vlaneseq
        %v1986 = vshrl.u32 %v1985, 7
        %v1987 = vsub.s32 %v1984, %v1986
        %v1988 = vrot.slane %v1974, %v1987
        %v1989 = vcombine.low %v1964, %v1968
        %v1990 = vcombine.high %v1964, %v1968
        %v1992 = vunpack.c.l.s4 1983009808
        %v1993 = vunpack.c.0.s8 %v1992
        %v1994 = vlaneseq
        %v1995 = vshrl.u32 %v1994, 7
        %v1996 = vsub.s32 %v1993, %v1995
        %v1997 = vrot.slane %v1989, %v1996
        %v1999 = vunpack.c.l.s4 1983009808
        %v2000 = vunpack.c.0.s8 %v1999
        %v2001 = vlaneseq
        %v2002 = vshrl.u32 %v2001, 7
        %v2003 = vsub.s32 %v2000, %v2002
        %v2004 = vrot.slane %v1990, %v2003
        %v2005 = vcombine.low %v1981, %v1997
        %v2006 = vcombine.high %v1981, %v1997
        %v2008 = vunpack.c.l.s4 1934713408
        %v2009 = vunpack.c.0.s8 %v2008
        %v2010 = vlaneseq
        %v2011 = vshrl.u32 %v2010, 7
        %v2012 = vsub.s32 %v2009, %v2011
        %v2013 = vrot.slane %v2005, %v2012
        %v2015 = vunpack.c.l.s4 1934713408
        %v2016 = vunpack.c.0.s8 %v2015
        %v2017 = vlaneseq
        %v2018 = vshrl.u32 %v2017, 7
        %v2019 = vsub.s32 %v2016, %v2018
        %v2020 = vrot.slane %v2006, %v2019
        %v2021 = vcombine.low %v1988, %v2004
        %v2022 = vcombine.high %v1988, %v2004
        %v2024 = vunpack.c.l.s4 1934713408
        %v2025 = vunpack.c.0.s8 %v2024
        %v2026 = vlaneseq
        %v2027 = vshrl.u32 %v2026, 7
        %v2028 = vsub.s32 %v2025, %v2027
        %v2029 = vrot.slane %v2021, %v2028
        %v2031 = vunpack.c.l.s4 1934713408
        %v2032 = vunpack.c.0.s8 %v2031
        %v2033 = vlaneseq
        %v2034 = vshrl.u32 %v2033, 7
        %v2035 = vsub.s32 %v2032, %v2034
        %v2036 = vrot.slane %v2022, %v2035
        %v2037 = vcombine.high %v2013, 0.0
        %v2038 = vcombine.high %v2020, 0.0
        %v2039 = vcombine.high %v2029, 0.0
        %v2040 = vcombine.high %v2036, 0.0
        %v2041 = vcombine.low %v2013, %v2020
        %v2043 = vunpack.c.l.s4 1983009808
        %v2044 = vunpack.c.0.s8 %v2043
        %v2045 = vlaneseq
        %v2046 = vshrl.u32 %v2045, 7
        %v2047 = vsub.s32 %v2044, %v2046
        %v2048 = vrot.slane %v2041, %v2047
        %v2049 = vcombine.low %v2037, %v2038
        %v2051 = vunpack.c.l.s4 1983009808
        %v2052 = vunpack.c.0.s8 %v2051
        %v2053 = vlaneseq
        %v2054 = vshrl.u32 %v2053, 7
        %v2055 = vsub.s32 %v2052, %v2054
        %v2056 = vrot.slane %v2049, %v2055
        %v2057 = vcombine.low %v2029, %v2036
        %v2059 = vunpack.c.l.s4 1983009808
        %v2060 = vunpack.c.0.s8 %v2059
        %v2061 = vlaneseq
        %v2062 = vshrl.u32 %v2061, 7
        %v2063 = vsub.s32 %v2060, %v2062
        %v2064 = vrot.slane %v2057, %v2063
        %v2065 = vcombine.low %v2039, %v2040
        %v2067 = vunpack.c.l.s4 1983009808
        %v2068 = vunpack.c.0.s8 %v2067
        %v2069 = vlaneseq
        %v2070 = vshrl.u32 %v2069, 7
        %v2071 = vsub.s32 %v2068, %v2070
        %v2072 = vrot.slane %v2065, %v2071
        %v2073 = vcombine.low %v2048, %v2056
        %v2074 = vcombine.high %v2048, %v2056
        %v2076 = vunpack.c.l.s4 1934713408
        %v2077 = vunpack.c.0.s8 %v2076
        %v2078 = vlaneseq
        %v2079 = vshrl.u32 %v2078, 7
        %v2080 = vsub.s32 %v2077, %v2079
        %v2081 = vrot.slane %v2073, %v2080
        %v2083 = vunpack.c.l.s4 1934713408
        %v2084 = vunpack.c.0.s8 %v2083
        %v2085 = vlaneseq
        %v2086 = vshrl.u32 %v2085, 7
        %v2087 = vsub.s32 %v2084, %v2086
        %v2088 = vrot.slane %v2074, %v2087
        %v2089 = vcombine.low %v2064, %v2072
        %v2090 = vcombine.high %v2064, %v2072
        %v2092 = vunpack.c.l.s4 1934713408
        %v2093 = vunpack.c.0.s8 %v2092
        %v2094 = vlaneseq
        %v2095 = vshrl.u32 %v2094, 7
        %v2096 = vsub.s32 %v2093, %v2095
        %v2097 = vrot.slane %v2089, %v2096
        %v2099 = vunpack.c.l.s4 1934713408
        %v2100 = vunpack.c.0.s8 %v2099
        %v2101 = vlaneseq
        %v2102 = vshrl.u32 %v2101, 7
        %v2103 = vsub.s32 %v2100, %v2102
        %v2104 = vrot.slane %v2090, %v2103
        %v2105 = vcombine.low %v2081, %v2097
        %v2106 = vcombine.high %v2081, %v2097
        %v2107 = vcombine.low %v2088, %v2104
        %v2108 = vcombine.high %v2088, %v2104
        %v2109 = vpack.c.bf16 %v2105, %v2105
        %v2110 = vpack.c.bf16 %v2106, %v2106
        %v2111 = vpack.c.bf16 %v2107, %v2107
        %v2112 = vpack.c.bf16 %v2108, %v2108
        %s2113 = scalar_lea.vmem %s550, 1
        %v2114 = vld [vmem:[%s2113] sm:$0x1]
        %v2115 = vunpack.c.l.bf16 %v2114
        %v2116 = vlaneseq
        %v2117 = vshrl.u32 %v2116, 7
        %v2118 = vsub.s32 0, %v2117
        %v2119 = vrot.slane %v2115, %v2118
        %v2121 = vsel %vm1085, %v1805, 0
        %v2124 = vsel %vm1085, %v1957, 0
        %2126 = vmatprep.subr.bf16.mxu0 0
        %2127 = vmatpush1.bf16.xpose.msra.mxu0 %v2124
        %2128 = vmatprep.subr.bf16.mxu0 0
        %2129 = vmatpush1.bf16.xpose.msra.mxu0 0
        %2130 = vmatprep.subr.bf16.mxu0 0
        %2131 = vmatpush1.bf16.xpose.msra.mxu0 0
        %2132 = vmatprep.subr.bf16.mxu0 0
        %2133 = vmatpush1.bf16.xpose.msra.mxu0 0
        %2134 = vmatprep.subr.bf16.mxu0 0
        %2135 = vmatpush1.bf16.xpose.msra.mxu0 0
        %2136 = vmatprep.subr.bf16.mxu0 0
        %2137 = vmatpush1.bf16.xpose.msra.mxu0 0
        %2138 = vmatprep.subr.bf16.mxu0 0
        %2139 = vmatpush1.bf16.xpose.msra.mxu0 0
        %2140 = vmatprep.subr.bf16.mxu0 0
        %2141 = vmatpush1.bf16.xpose.msra.mxu0 0
        %2142 = vmatprep.subr.bf16.mxu0 0
        %2143 = vmatpush1.bf16.xpose.msra.mxu0 0
        %2144 = vmatprep.subr.bf16.mxu0 0
        %2145 = vmatpush1.bf16.xpose.msra.mxu0 0
        %2146 = vmatprep.subr.bf16.mxu0 0
        %2147 = vmatpush1.bf16.xpose.msra.mxu0 0
        %2148 = vmatprep.subr.bf16.mxu0 0
        %2149 = vmatpush1.bf16.xpose.msra.mxu0 0
        %2150 = vmatprep.subr.bf16.mxu0 0
        %2151 = vmatpush1.bf16.xpose.msra.mxu0 0
        %2152 = vmatprep.subr.bf16.mxu0 0
        %2153 = vmatpush1.bf16.xpose.msra.mxu0 0
        %2154 = vmatprep.subr.bf16.mxu0 0
        %2155 = vmatpush1.bf16.xpose.msra.mxu0 0
        %2156 = vmatprep.subr.bf16.mxu0 0
        %2157 = vmatpush1.bf16.xpose.msra.mxu0 0
        %2158 = vmatprep.mubr.bf16.mxu0 0
        %2159 = vmatmul.mubr.bf16.gmra.mrb[0].mxu0 %v2121
        %v2160 = vpop.f32.mrb[0].mxu0
        %v2161 = vadd.f32 %v2119, %v2160
        %v2162 = vpop.f32.mrb[0].mxu0
        %v2163 = vpop.f32.mrb[0].mxu0
        %v2164 = vpop.f32.mrb[0].mxu0
        %2165 = vdwg.mxu0
        %v2167 = vsel %vm1085, %v1806, 0
        %v2170 = vsel %vm1085, %v1958, 0
        %2172 = vmatprep.subr.bf16.mxu0 0
        %2173 = vmatpush1.bf16.xpose.msra.mxu0 %v2170
        %2174 = vmatprep.subr.bf16.mxu0 0
        %2175 = vmatpush1.bf16.xpose.msra.mxu0 0
        %2176 = vmatprep.subr.bf16.mxu0 0
        %2177 = vmatpush1.bf16.xpose.msra.mxu0 0
        %2178 = vmatprep.subr.bf16.mxu0 0
        %2179 = vmatpush1.bf16.xpose.msra.mxu0 0
        %2180 = vmatprep.subr.bf16.mxu0 0
        %2181 = vmatpush1.bf16.xpose.msra.mxu0 0
        %2182 = vmatprep.subr.bf16.mxu0 0
        %2183 = vmatpush1.bf16.xpose.msra.mxu0 0
        %2184 = vmatprep.subr.bf16.mxu0 0
        %2185 = vmatpush1.bf16.xpose.msra.mxu0 0
        %2186 = vmatprep.subr.bf16.mxu0 0
        %2187 = vmatpush1.bf16.xpose.msra.mxu0 0
        %2188 = vmatprep.subr.bf16.mxu0 0
        %2189 = vmatpush1.bf16.xpose.msra.mxu0 0
        %2190 = vmatprep.subr.bf16.mxu0 0
        %2191 = vmatpush1.bf16.xpose.msra.mxu0 0
        %2192 = vmatprep.subr.bf16.mxu0 0
        %2193 = vmatpush1.bf16.xpose.msra.mxu0 0
        %2194 = vmatprep.subr.bf16.mxu0 0
        %2195 = vmatpush1.bf16.xpose.msra.mxu0 0
        %2196 = vmatprep.subr.bf16.mxu0 0
        %2197 = vmatpush1.bf16.xpose.msra.mxu0 0
        %2198 = vmatprep.subr.bf16.mxu0 0
        %2199 = vmatpush1.bf16.xpose.msra.mxu0 0
        %2200 = vmatprep.subr.bf16.mxu0 0
        %2201 = vmatpush1.bf16.xpose.msra.mxu0 0
        %2202 = vmatprep.subr.bf16.mxu0 0
        %2203 = vmatpush1.bf16.xpose.msra.mxu0 0
        %2204 = vmatprep.mubr.bf16.mxu0 0
        %2205 = vmatmul.mubr.bf16.gmra.mrb[0].mxu0 %v2167
        %v2206 = vpop.f32.mrb[0].mxu0
        %v2207 = vadd.f32 %v2119, %v2206
        %v2208 = vpop.f32.mrb[0].mxu0
        %v2209 = vpop.f32.mrb[0].mxu0
        %v2210 = vpop.f32.mrb[0].mxu0
        %2211 = vdwg.mxu0
        %v2213 = vsel %vm1085, %v1807, 0
        %v2216 = vsel %vm1085, %v1959, 0
        %2218 = vmatprep.subr.bf16.mxu0 0
        %2219 = vmatpush1.bf16.xpose.msra.mxu0 %v2216
        %2220 = vmatprep.subr.bf16.mxu0 0
        %2221 = vmatpush1.bf16.xpose.msra.mxu0 0
        %2222 = vmatprep.subr.bf16.mxu0 0
        %2223 = vmatpush1.bf16.xpose.msra.mxu0 0
        %2224 = vmatprep.subr.bf16.mxu0 0
        %2225 = vmatpush1.bf16.xpose.msra.mxu0 0
        %2226 = vmatprep.subr.bf16.mxu0 0
        %2227 = vmatpush1.bf16.xpose.msra.mxu0 0
        %2228 = vmatprep.subr.bf16.mxu0 0
        %2229 = vmatpush1.bf16.xpose.msra.mxu0 0
        %2230 = vmatprep.subr.bf16.mxu0 0
        %2231 = vmatpush1.bf16.xpose.msra.mxu0 0
        %2232 = vmatprep.subr.bf16.mxu0 0
        %2233 = vmatpush1.bf16.xpose.msra.mxu0 0
        %2234 = vmatprep.subr.bf16.mxu0 0
        %2235 = vmatpush1.bf16.xpose.msra.mxu0 0
        %2236 = vmatprep.subr.bf16.mxu0 0
        %2237 = vmatpush1.bf16.xpose.msra.mxu0 0
        %2238 = vmatprep.subr.bf16.mxu0 0
        %2239 = vmatpush1.bf16.xpose.msra.mxu0 0
        %2240 = vmatprep.subr.bf16.mxu0 0
        %2241 = vmatpush1.bf16.xpose.msra.mxu0 0
        %2242 = vmatprep.subr.bf16.mxu0 0
        %2243 = vmatpush1.bf16.xpose.msra.mxu0 0
        %2244 = vmatprep.subr.bf16.mxu0 0
        %2245 = vmatpush1.bf16.xpose.msra.mxu0 0
        %2246 = vmatprep.subr.bf16.mxu0 0
        %2247 = vmatpush1.bf16.xpose.msra.mxu0 0
        %2248 = vmatprep.subr.bf16.mxu0 0
        %2249 = vmatpush1.bf16.xpose.msra.mxu0 0
        %2250 = vmatprep.mubr.bf16.mxu0 0
        %2251 = vmatmul.mubr.bf16.gmra.mrb[0].mxu0 %v2213
        %v2252 = vpop.f32.mrb[0].mxu0
        %v2253 = vadd.f32 %v2119, %v2252
        %v2254 = vpop.f32.mrb[0].mxu0
        %v2255 = vpop.f32.mrb[0].mxu0
        %v2256 = vpop.f32.mrb[0].mxu0
        %2257 = vdwg.mxu0
        %v2259 = vsel %vm1085, %v1808, 0
        %v2262 = vsel %vm1085, %v1960, 0
        %2264 = vmatprep.subr.bf16.mxu0 0
        %2265 = vmatpush1.bf16.xpose.msra.mxu0 %v2262
        %2266 = vmatprep.subr.bf16.mxu0 0
        %2267 = vmatpush1.bf16.xpose.msra.mxu0 0
        %2268 = vmatprep.subr.bf16.mxu0 0
        %2269 = vmatpush1.bf16.xpose.msra.mxu0 0
        %2270 = vmatprep.subr.bf16.mxu0 0
        %2271 = vmatpush1.bf16.xpose.msra.mxu0 0
        %2272 = vmatprep.subr.bf16.mxu0 0
        %2273 = vmatpush1.bf16.xpose.msra.mxu0 0
        %2274 = vmatprep.subr.bf16.mxu0 0
        %2275 = vmatpush1.bf16.xpose.msra.mxu0 0
        %2276 = vmatprep.subr.bf16.mxu0 0
        %2277 = vmatpush1.bf16.xpose.msra.mxu0 0
        %2278 = vmatprep.subr.bf16.mxu0 0
        %2279 = vmatpush1.bf16.xpose.msra.mxu0 0
        %2280 = vmatprep.subr.bf16.mxu0 0
        %2281 = vmatpush1.bf16.xpose.msra.mxu0 0
        %2282 = vmatprep.subr.bf16.mxu0 0
        %2283 = vmatpush1.bf16.xpose.msra.mxu0 0
        %2284 = vmatprep.subr.bf16.mxu0 0
        %2285 = vmatpush1.bf16.xpose.msra.mxu0 0
        %2286 = vmatprep.subr.bf16.mxu0 0
        %2287 = vmatpush1.bf16.xpose.msra.mxu0 0
        %2288 = vmatprep.subr.bf16.mxu0 0
        %2289 = vmatpush1.bf16.xpose.msra.mxu0 0
        %2290 = vmatprep.subr.bf16.mxu0 0
        %2291 = vmatpush1.bf16.xpose.msra.mxu0 0
        %2292 = vmatprep.subr.bf16.mxu0 0
        %2293 = vmatpush1.bf16.xpose.msra.mxu0 0
        %2294 = vmatprep.subr.bf16.mxu0 0
        %2295 = vmatpush1.bf16.xpose.msra.mxu0 0
        %2296 = vmatprep.mubr.bf16.mxu0 0
        %2297 = vmatmul.mubr.bf16.gmra.mrb[0].mxu0 %v2259
        %v2298 = vpop.f32.mrb[0].mxu0
        %v2299 = vadd.f32 %v2119, %v2298
        %v2300 = vpop.f32.mrb[0].mxu0
        %v2301 = vpop.f32.mrb[0].mxu0
        %v2302 = vpop.f32.mrb[0].mxu0
        %2303 = vdwg.mxu0
        %v2304 = vsel %vm1085, %v2161, -inf
        %2305 = vmax.xlane.f32.xlu0 %v2304
        %v2306 = vpop.xlane.xlu0 %2305
        %v2307 = vsel %vm1085, %v2207, -inf
        %2308 = vmax.xlane.f32.xlu0 %v2307
        %v2309 = vpop.xlane.xlu0 %2308
        %v2310 = vsel %vm1085, %v2253, -inf
        %2311 = vmax.xlane.f32.xlu0 %v2310
        %v2312 = vpop.xlane.xlu0 %2311
        %v2313 = vsel %vm1085, %v2299, -inf
        %2314 = vmax.xlane.f32.xlu0 %v2313
        %v2315 = vpop.xlane.xlu0 %2314
        %v2316 = vsub.f32 %v2161, %v2306
        %v2317 = vsub.f32 %v2207, %v2309
        %v2318 = vsub.f32 %v2253, %v2312
        %v2319 = vsub.f32 %v2299, %v2315
        %v2320 = vmul.f32 %v2316, 1.442695
        %v2321 = vpow.pop %v2320
        %v2322 = vmul.f32 %v2317, 1.442695
        %v2323 = vpow.pop %v2322
        %v2324 = vmul.f32 %v2318, 1.442695
        %v2325 = vpow.pop %v2324
        %v2326 = vmul.f32 %v2319, 1.442695
        %v2327 = vpow.pop %v2326
        %v2328 = vsel %vm1085, %v2321, 0.0
        %2329 = vadd.xlane.f32.xlu0 %v2328
        %v2330 = vpop.xlane.xlu0 %2329
        %v2331 = vsel %vm1085, %v2323, 0.0
        %2332 = vadd.xlane.f32.xlu0 %v2331
        %v2333 = vpop.xlane.xlu0 %2332
        %v2334 = vsel %vm1085, %v2325, 0.0
        %2335 = vadd.xlane.f32.xlu0 %v2334
        %v2336 = vpop.xlane.xlu0 %2335
        %v2337 = vsel %vm1085, %v2327, 0.0
        %2338 = vadd.xlane.f32.xlu0 %v2337
        %v2339 = vpop.xlane.xlu0 %2338
        %v2340 = vrcp.pop %v2330
        %v2341 = vrcp.pop %v2333
        %v2342 = vrcp.pop %v2336
        %v2343 = vrcp.pop %v2339
        %v2344 = vmul.f32 %v2321, %v2340
        %v2345 = vmul.f32 %v2323, %v2341
        %v2346 = vmul.f32 %v2325, %v2342
        %v2347 = vmul.f32 %v2327, %v2343
        %v2348 = vpack.c.bf16 %v2344, %v2344
        %v2349 = vpack.c.bf16 %v2345, %v2345
        %v2350 = vpack.c.bf16 %v2346, %v2346
        %v2351 = vpack.c.bf16 %v2347, %v2347
        %v2353 = vsel %vm1085, %v2348, 0
        %v2356 = vsel %vm1321, %v2109, 0
        %2358 = vmatprep.subr.bf16.mxu0 0
        %2359 = vmatpush1.bf16.msra.mxu0 %v2356
        %2360 = vmatprep.subr.bf16.mxu0 0
        %2361 = vmatpush1.bf16.msra.mxu0 0
        %2362 = vmatprep.subr.bf16.mxu0 0
        %2363 = vmatpush1.bf16.msra.mxu0 0
        %2364 = vmatprep.subr.bf16.mxu0 0
        %2365 = vmatpush1.bf16.msra.mxu0 0
        %2366 = vmatprep.subr.bf16.mxu0 0
        %2367 = vmatpush1.bf16.msra.mxu0 0
        %2368 = vmatprep.subr.bf16.mxu0 0
        %2369 = vmatpush1.bf16.msra.mxu0 0
        %2370 = vmatprep.subr.bf16.mxu0 0
        %2371 = vmatpush1.bf16.msra.mxu0 0
        %2372 = vmatprep.subr.bf16.mxu0 0
        %2373 = vmatpush1.bf16.msra.mxu0 0
        %2374 = vmatprep.subr.bf16.mxu0 0
        %2375 = vmatpush1.bf16.msra.mxu0 0
        %2376 = vmatprep.subr.bf16.mxu0 0
        %2377 = vmatpush1.bf16.msra.mxu0 0
        %2378 = vmatprep.subr.bf16.mxu0 0
        %2379 = vmatpush1.bf16.msra.mxu0 0
        %2380 = vmatprep.subr.bf16.mxu0 0
        %2381 = vmatpush1.bf16.msra.mxu0 0
        %2382 = vmatprep.subr.bf16.mxu0 0
        %2383 = vmatpush1.bf16.msra.mxu0 0
        %2384 = vmatprep.subr.bf16.mxu0 0
        %2385 = vmatpush1.bf16.msra.mxu0 0
        %2386 = vmatprep.subr.bf16.mxu0 0
        %2387 = vmatpush1.bf16.msra.mxu0 0
        %2388 = vmatprep.subr.bf16.mxu0 0
        %2389 = vmatpush1.bf16.msra.mxu0 0
        %2390 = vmatprep.mubr.bf16.mxu0 0
        %2391 = vmatmul.mubr.bf16.gmra.mrb[0].mxu0 %v2353
        %v2392 = vpop.f32.mrb[0].mxu0
        %v2393 = vadd.f32 0.0, %v2392
        %v2394 = vpop.f32.mrb[0].mxu0
        %v2395 = vpop.f32.mrb[0].mxu0
        %v2396 = vpop.f32.mrb[0].mxu0
        %2397 = vdwg.mxu0
        %v2399 = vsel %vm1085, %v2349, 0
        %v2402 = vsel %vm1321, %v2110, 0
        %2404 = vmatprep.subr.bf16.mxu0 0
        %2405 = vmatpush1.bf16.msra.mxu0 %v2402
        %2406 = vmatprep.subr.bf16.mxu0 0
        %2407 = vmatpush1.bf16.msra.mxu0 0
        %2408 = vmatprep.subr.bf16.mxu0 0
        %2409 = vmatpush1.bf16.msra.mxu0 0
        %2410 = vmatprep.subr.bf16.mxu0 0
        %2411 = vmatpush1.bf16.msra.mxu0 0
        %2412 = vmatprep.subr.bf16.mxu0 0
        %2413 = vmatpush1.bf16.msra.mxu0 0
        %2414 = vmatprep.subr.bf16.mxu0 0
        %2415 = vmatpush1.bf16.msra.mxu0 0
        %2416 = vmatprep.subr.bf16.mxu0 0
        %2417 = vmatpush1.bf16.msra.mxu0 0
        %2418 = vmatprep.subr.bf16.mxu0 0
        %2419 = vmatpush1.bf16.msra.mxu0 0
        %2420 = vmatprep.subr.bf16.mxu0 0
        %2421 = vmatpush1.bf16.msra.mxu0 0
        %2422 = vmatprep.subr.bf16.mxu0 0
        %2423 = vmatpush1.bf16.msra.mxu0 0
        %2424 = vmatprep.subr.bf16.mxu0 0
        %2425 = vmatpush1.bf16.msra.mxu0 0
        %2426 = vmatprep.subr.bf16.mxu0 0
        %2427 = vmatpush1.bf16.msra.mxu0 0
        %2428 = vmatprep.subr.bf16.mxu0 0
        %2429 = vmatpush1.bf16.msra.mxu0 0
        %2430 = vmatprep.subr.bf16.mxu0 0
        %2431 = vmatpush1.bf16.msra.mxu0 0
        %2432 = vmatprep.subr.bf16.mxu0 0
        %2433 = vmatpush1.bf16.msra.mxu0 0
        %2434 = vmatprep.subr.bf16.mxu0 0
        %2435 = vmatpush1.bf16.msra.mxu0 0
        %2436 = vmatprep.mubr.bf16.mxu0 0
        %2437 = vmatmul.mubr.bf16.gmra.mrb[0].mxu0 %v2399
        %v2438 = vpop.f32.mrb[0].mxu0
        %v2439 = vadd.f32 0.0, %v2438
        %v2440 = vpop.f32.mrb[0].mxu0
        %v2441 = vpop.f32.mrb[0].mxu0
        %v2442 = vpop.f32.mrb[0].mxu0
        %2443 = vdwg.mxu0
        %v2445 = vsel %vm1085, %v2350, 0
        %v2448 = vsel %vm1321, %v2111, 0
        %2450 = vmatprep.subr.bf16.mxu0 0
        %2451 = vmatpush1.bf16.msra.mxu0 %v2448
        %2452 = vmatprep.subr.bf16.mxu0 0
        %2453 = vmatpush1.bf16.msra.mxu0 0
        %2454 = vmatprep.subr.bf16.mxu0 0
        %2455 = vmatpush1.bf16.msra.mxu0 0
        %2456 = vmatprep.subr.bf16.mxu0 0
        %2457 = vmatpush1.bf16.msra.mxu0 0
        %2458 = vmatprep.subr.bf16.mxu0 0
        %2459 = vmatpush1.bf16.msra.mxu0 0
        %2460 = vmatprep.subr.bf16.mxu0 0
        %2461 = vmatpush1.bf16.msra.mxu0 0
        %2462 = vmatprep.subr.bf16.mxu0 0
        %2463 = vmatpush1.bf16.msra.mxu0 0
        %2464 = vmatprep.subr.bf16.mxu0 0
        %2465 = vmatpush1.bf16.msra.mxu0 0
        %2466 = vmatprep.subr.bf16.mxu0 0
        %2467 = vmatpush1.bf16.msra.mxu0 0
        %2468 = vmatprep.subr.bf16.mxu0 0
        %2469 = vmatpush1.bf16.msra.mxu0 0
        %2470 = vmatprep.subr.bf16.mxu0 0
        %2471 = vmatpush1.bf16.msra.mxu0 0
        %2472 = vmatprep.subr.bf16.mxu0 0
        %2473 = vmatpush1.bf16.msra.mxu0 0
        %2474 = vmatprep.subr.bf16.mxu0 0
        %2475 = vmatpush1.bf16.msra.mxu0 0
        %2476 = vmatprep.subr.bf16.mxu0 0
        %2477 = vmatpush1.bf16.msra.mxu0 0
        %2478 = vmatprep.subr.bf16.mxu0 0
        %2479 = vmatpush1.bf16.msra.mxu0 0
        %2480 = vmatprep.subr.bf16.mxu0 0
        %2481 = vmatpush1.bf16.msra.mxu0 0
        %2482 = vmatprep.mubr.bf16.mxu0 0
        %2483 = vmatmul.mubr.bf16.gmra.mrb[0].mxu0 %v2445
        %v2484 = vpop.f32.mrb[0].mxu0
        %v2485 = vadd.f32 0.0, %v2484
        %v2486 = vpop.f32.mrb[0].mxu0
        %v2487 = vpop.f32.mrb[0].mxu0
        %v2488 = vpop.f32.mrb[0].mxu0
        %2489 = vdwg.mxu0
        %v2491 = vsel %vm1085, %v2351, 0
        %v2494 = vsel %vm1321, %v2112, 0
        %2496 = vmatprep.subr.bf16.mxu0 0
        %2497 = vmatpush1.bf16.msra.mxu0 %v2494
        %2498 = vmatprep.subr.bf16.mxu0 0
        %2499 = vmatpush1.bf16.msra.mxu0 0
        %2500 = vmatprep.subr.bf16.mxu0 0
        %2501 = vmatpush1.bf16.msra.mxu0 0
        %2502 = vmatprep.subr.bf16.mxu0 0
        %2503 = vmatpush1.bf16.msra.mxu0 0
        %2504 = vmatprep.subr.bf16.mxu0 0
        %2505 = vmatpush1.bf16.msra.mxu0 0
        %2506 = vmatprep.subr.bf16.mxu0 0
        %2507 = vmatpush1.bf16.msra.mxu0 0
        %2508 = vmatprep.subr.bf16.mxu0 0
        %2509 = vmatpush1.bf16.msra.mxu0 0
        %2510 = vmatprep.subr.bf16.mxu0 0
        %2511 = vmatpush1.bf16.msra.mxu0 0
        %2512 = vmatprep.subr.bf16.mxu0 0
        %2513 = vmatpush1.bf16.msra.mxu0 0
        %2514 = vmatprep.subr.bf16.mxu0 0
        %2515 = vmatpush1.bf16.msra.mxu0 0
        %2516 = vmatprep.subr.bf16.mxu0 0
        %2517 = vmatpush1.bf16.msra.mxu0 0
        %2518 = vmatprep.subr.bf16.mxu0 0
        %2519 = vmatpush1.bf16.msra.mxu0 0
        %2520 = vmatprep.subr.bf16.mxu0 0
        %2521 = vmatpush1.bf16.msra.mxu0 0
        %2522 = vmatprep.subr.bf16.mxu0 0
        %2523 = vmatpush1.bf16.msra.mxu0 0
        %2524 = vmatprep.subr.bf16.mxu0 0
        %2525 = vmatpush1.bf16.msra.mxu0 0
        %2526 = vmatprep.subr.bf16.mxu0 0
        %2527 = vmatpush1.bf16.msra.mxu0 0
        %2528 = vmatprep.mubr.bf16.mxu0 0
        %2529 = vmatmul.mubr.bf16.gmra.mrb[0].mxu0 %v2491
        %v2530 = vpop.f32.mrb[0].mxu0
        %v2531 = vadd.f32 0.0, %v2530
        %v2532 = vpop.f32.mrb[0].mxu0
        %v2533 = vpop.f32.mrb[0].mxu0
        %v2534 = vpop.f32.mrb[0].mxu0
        %2535 = vdwg.mxu0
        %v2536 = vcombine.low %v2393, %v2485
        %v2537 = vcombine.high %v2393, %v2485
        %v2539 = vunpack.c.l.s4 1983009808
        %v2540 = vunpack.c.0.s8 %v2539
        %v2541 = vlaneseq
        %v2542 = vshrl.u32 %v2541, 7
        %v2543 = vsub.s32 %v2540, %v2542
        %v2544 = vrot.slane %v2536, %v2543
        %v2546 = vunpack.c.l.s4 1983009808
        %v2547 = vunpack.c.0.s8 %v2546
        %v2548 = vlaneseq
        %v2549 = vshrl.u32 %v2548, 7
        %v2550 = vsub.s32 %v2547, %v2549
        %v2551 = vrot.slane %v2537, %v2550
        %v2552 = vcombine.low %v2439, %v2531
        %v2553 = vcombine.high %v2439, %v2531
        %v2555 = vunpack.c.l.s4 1983009808
        %v2556 = vunpack.c.0.s8 %v2555
        %v2557 = vlaneseq
        %v2558 = vshrl.u32 %v2557, 7
        %v2559 = vsub.s32 %v2556, %v2558
        %v2560 = vrot.slane %v2552, %v2559
        %v2562 = vunpack.c.l.s4 1983009808
        %v2563 = vunpack.c.0.s8 %v2562
        %v2564 = vlaneseq
        %v2565 = vshrl.u32 %v2564, 7
        %v2566 = vsub.s32 %v2563, %v2565
        %v2567 = vrot.slane %v2553, %v2566
        %v2568 = vcombine.low %v2544, %v2560
        %v2569 = vcombine.high %v2544, %v2560
        %v2571 = vunpack.c.l.s4 1934713408
        %v2572 = vunpack.c.0.s8 %v2571
        %v2573 = vlaneseq
        %v2574 = vshrl.u32 %v2573, 7
        %v2575 = vsub.s32 %v2572, %v2574
        %v2576 = vrot.slane %v2568, %v2575
        %v2578 = vunpack.c.l.s4 1934713408
        %v2579 = vunpack.c.0.s8 %v2578
        %v2580 = vlaneseq
        %v2581 = vshrl.u32 %v2580, 7
        %v2582 = vsub.s32 %v2579, %v2581
        %v2583 = vrot.slane %v2569, %v2582
        %v2584 = vcombine.low %v2551, %v2567
        %v2585 = vcombine.high %v2551, %v2567
        %v2587 = vunpack.c.l.s4 1934713408
        %v2588 = vunpack.c.0.s8 %v2587
        %v2589 = vlaneseq
        %v2590 = vshrl.u32 %v2589, 7
        %v2591 = vsub.s32 %v2588, %v2590
        %v2592 = vrot.slane %v2584, %v2591
        %v2594 = vunpack.c.l.s4 1934713408
        %v2595 = vunpack.c.0.s8 %v2594
        %v2596 = vlaneseq
        %v2597 = vshrl.u32 %v2596, 7
        %v2598 = vsub.s32 %v2595, %v2597
        %v2599 = vrot.slane %v2585, %v2598
        %v2600 = vcombine.high %v2576, 0.0
        %v2601 = vcombine.high %v2583, 0.0
        %v2602 = vcombine.high %v2592, 0.0
        %v2603 = vcombine.high %v2599, 0.0
        %v2604 = vcombine.low %v2576, %v2583
        %v2606 = vunpack.c.l.s4 1983009808
        %v2607 = vunpack.c.0.s8 %v2606
        %v2608 = vlaneseq
        %v2609 = vshrl.u32 %v2608, 7
        %v2610 = vsub.s32 %v2607, %v2609
        %v2611 = vrot.slane %v2604, %v2610
        %v2612 = vcombine.low %v2600, %v2601
        %v2614 = vunpack.c.l.s4 1983009808
        %v2615 = vunpack.c.0.s8 %v2614
        %v2616 = vlaneseq
        %v2617 = vshrl.u32 %v2616, 7
        %v2618 = vsub.s32 %v2615, %v2617
        %v2619 = vrot.slane %v2612, %v2618
        %v2620 = vcombine.low %v2592, %v2599
        %v2622 = vunpack.c.l.s4 1983009808
        %v2623 = vunpack.c.0.s8 %v2622
        %v2624 = vlaneseq
        %v2625 = vshrl.u32 %v2624, 7
        %v2626 = vsub.s32 %v2623, %v2625
        %v2627 = vrot.slane %v2620, %v2626
        %v2628 = vcombine.low %v2602, %v2603
        %v2630 = vunpack.c.l.s4 1983009808
        %v2631 = vunpack.c.0.s8 %v2630
        %v2632 = vlaneseq
        %v2633 = vshrl.u32 %v2632, 7
        %v2634 = vsub.s32 %v2631, %v2633
        %v2635 = vrot.slane %v2628, %v2634
        %v2636 = vcombine.low %v2611, %v2619
        %v2637 = vcombine.high %v2611, %v2619
        %v2639 = vunpack.c.l.s4 1934713408
        %v2640 = vunpack.c.0.s8 %v2639
        %v2641 = vlaneseq
        %v2642 = vshrl.u32 %v2641, 7
        %v2643 = vsub.s32 %v2640, %v2642
        %v2644 = vrot.slane %v2636, %v2643
        %v2646 = vunpack.c.l.s4 1934713408
        %v2647 = vunpack.c.0.s8 %v2646
        %v2648 = vlaneseq
        %v2649 = vshrl.u32 %v2648, 7
        %v2650 = vsub.s32 %v2647, %v2649
        %v2651 = vrot.slane %v2637, %v2650
        %v2652 = vcombine.low %v2627, %v2635
        %v2653 = vcombine.high %v2627, %v2635
        %v2655 = vunpack.c.l.s4 1934713408
        %v2656 = vunpack.c.0.s8 %v2655
        %v2657 = vlaneseq
        %v2658 = vshrl.u32 %v2657, 7
        %v2659 = vsub.s32 %v2656, %v2658
        %v2660 = vrot.slane %v2652, %v2659
        %v2662 = vunpack.c.l.s4 1934713408
        %v2663 = vunpack.c.0.s8 %v2662
        %v2664 = vlaneseq
        %v2665 = vshrl.u32 %v2664, 7
        %v2666 = vsub.s32 %v2663, %v2665
        %v2667 = vrot.slane %v2653, %v2666
        %v2668 = vcombine.low %v2644, %v2660
        %v2669 = vcombine.high %v2644, %v2660
        %v2670 = vcombine.low %v2651, %v2667
        %v2671 = vcombine.high %v2651, %v2667
        %2673 = vrot.lane.b32.xlu0 %v2669, 8
        %v2674 = vpop.permute.xlu0 %2673
        %2677 = vrot.lane.b32.xlu0 %v2670, 16
        %v2678 = vpop.permute.xlu0 %2677
        %2681 = vrot.lane.b32.xlu0 %v2671, 24
        %v2682 = vpop.permute.xlu0 %2681
        %v2684 = vsel %vm1085, %v2668, %v2674
        %v2685 = vsel %vm1652, %v2684, %v2678
        %v2686 = vsel %vm1654, %v2685, %v2682
        %v2687 = vpack.c.bf16 %v2686, %v2686
        %v2689 = vrot.slane %v2687, 4
        %vm2691 = vcmask 261124
        %2692 = vst.msk [vmem:[#allocation2] sm:$0xf0] %vm2691, %v2689
        %v2693 = vld [vmem:[#allocation2] sm:$0xff]
        %v2694 = vld [vmem:[%s4] sm:$0xf]
        %v2695 = vld [vmem:[%s4 + $0x4] sm:$0xf]
        %v2696 = vld [vmem:[%s4 + $0x8] sm:$0xf]
        %v2697 = vld [vmem:[%s4 + $0xc] sm:$0xf]
        %v2698 = vld [vmem:[#allocation6] sm:$0x1]
        %v2700 = vlaneseq
        %v2701 = vshrl.u32 %v2700, 7
        %v2702 = vsub.s32 0, %v2701
        %v2703 = vrot.slane %v2698, %v2702
        %v2709 = vunpack.c.l.b16 %v2694
        %v2710 = vunpack.c.l.b16 %v2695
        %v2711 = vunpack.c.l.b16 %v2696
        %v2712 = vunpack.c.l.b16 %v2697
        %v2713 = vpack.c.b16 %v2710, %v2709
        %v2714 = vpack.c.b16 %v2712, %v2711
        %v2718 = vsel %vm580, %v2693, 0
        %2720 = vmatprep.subr.bf16.mxu0 0
        %2721 = vmatpush1.bf16.msra.mxu0 %v2713
        %2722 = vmatprep.subr.bf16.mxu0 0
        %2723 = vmatpush1.bf16.msra.mxu0 %v2714
        %2724 = vmatprep.subr.bf16.mxu0 0
        %2725 = vmatpush1.bf16.msra.mxu0 0
        %2726 = vmatprep.subr.bf16.mxu0 0
        %2727 = vmatpush1.bf16.msra.mxu0 0
        %2728 = vmatprep.subr.bf16.mxu0 0
        %2729 = vmatpush1.bf16.msra.mxu0 0
        %2730 = vmatprep.subr.bf16.mxu0 0
        %2731 = vmatpush1.bf16.msra.mxu0 0
        %2732 = vmatprep.subr.bf16.mxu0 0
        %2733 = vmatpush1.bf16.msra.mxu0 0
        %2734 = vmatprep.subr.bf16.mxu0 0
        %2735 = vmatpush1.bf16.msra.mxu0 0
        %2736 = vmatprep.subr.bf16.mxu0 0
        %2737 = vmatpush1.bf16.msra.mxu0 0
        %2738 = vmatprep.subr.bf16.mxu0 0
        %2739 = vmatpush1.bf16.msra.mxu0 0
        %2740 = vmatprep.subr.bf16.mxu0 0
        %2741 = vmatpush1.bf16.msra.mxu0 0
        %2742 = vmatprep.subr.bf16.mxu0 0
        %2743 = vmatpush1.bf16.msra.mxu0 0
        %2744 = vmatprep.subr.bf16.mxu0 0
        %2745 = vmatpush1.bf16.msra.mxu0 0
        %2746 = vmatprep.subr.bf16.mxu0 0
        %2747 = vmatpush1.bf16.msra.mxu0 0
        %2748 = vmatprep.subr.bf16.mxu0 0
        %2749 = vmatpush1.bf16.msra.mxu0 0
        %2750 = vmatprep.subr.bf16.mxu0 0
        %2751 = vmatpush1.bf16.msra.mxu0 0
        %2752 = vmatprep.mubr.bf16.mxu0 0
        %2753 = vmatmul.mubr.bf16.gmra.mrb[0].mxu0 %v2718
        %v2754 = vpop.f32.mrb[0].mxu0
        %v2755 = vadd.f32 %v2703, %v2754
        %v2756 = vpop.f32.mrb[0].mxu0
        %v2757 = vpop.f32.mrb[0].mxu0
        %v2758 = vadd.f32 %v2703, %v2757
        %v2759 = vpop.f32.mrb[0].mxu0
        %2760 = vdwg.mxu0
        %v2761 = vadd.f32 %v554, %v2755
        %v2762 = vadd.f32 %v555, %v2758
        %v2763 = vld [vmem:[#allocation8] sm:$0x1]
        %v2764 = vld [vmem:[#allocation9] sm:$0x1]
        %v2765 = vsel %vm580, %v2761, 0.0
        %2766 = vadd.xlane.f32.xlu0 %v2765
        %v2767 = vpop.xlane.xlu0 %2766
        %v2768 = vsel %vm580, %v2762, 0.0
        %2769 = vadd.xlane.f32.xlu0 %v2768
        %v2770 = vpop.xlane.xlu0 %2769
        %v2771 = vrcp.pop 32.0
        %v2772 = vmul.f32 %v2767, %v2771
        %v2773 = vmul.f32 %v2770, %v2771
        %v2774 = vsub.f32 %v2761, %v2772
        %v2775 = vsub.f32 %v2762, %v2773
        %v2776 = vmul.f32 %v2774, %v2774
        %v2777 = vmul.f32 %v2775, %v2775
        %v2778 = vsel %vm580, %v2776, 0.0
        %2779 = vadd.xlane.f32.xlu0 %v2778
        %v2780 = vpop.xlane.xlu0 %2779
        %v2781 = vsel %vm580, %v2777, 0.0
        %2782 = vadd.xlane.f32.xlu0 %v2781
        %v2783 = vpop.xlane.xlu0 %2782
        %v2784 = vmul.f32 %v2780, %v2771
        %v2785 = vmul.f32 %v2783, %v2771
        %v2786 = vadd.f32 %v2784, 1e-12
        %v2787 = vadd.f32 %v2785, 1e-12
        %v2788 = vrsqrt.pop %v2786
        %v2789 = vrsqrt.pop %v2787
        %v2790 = vmul.f32 %v2774, %v2788
        %v2791 = vmul.f32 %v2775, %v2789
        %v2793 = vlaneseq
        %v2794 = vshrl.u32 %v2793, 7
        %v2795 = vsub.s32 0, %v2794
        %v2796 = vrot.slane %v2763, %v2795
        %v2798 = vmul.f32 %v2796, %v2790
        %v2799 = vmul.f32 %v2796, %v2791
        %v2801 = vlaneseq
        %v2802 = vshrl.u32 %v2801, 7
        %v2803 = vsub.s32 0, %v2802
        %v2804 = vrot.slane %v2764, %v2803
        %v2806 = vadd.f32 %v2798, %v2804
        %v2807 = vadd.f32 %v2799, %v2804
        %v2808 = vpack.c.bf16 %v2807, %v2806
        %v2809 = vld [vmem:[#allocation11] sm:$0xf]
        %v2810 = vld [vmem:[#allocation11 + $0x4] sm:$0xf]
        %v2811 = vld [vmem:[#allocation11 + $0x8] sm:$0xf]
        %v2812 = vld [vmem:[#allocation11 + $0xc] sm:$0xf]
        %v2813 = vld [vmem:[%s9] sm:$0x1]
        %v2815 = vlaneseq
        %v2816 = vshrl.u32 %v2815, 7
        %v2817 = vsub.s32 0, %v2816
        %v2818 = vrot.slane %v2813, %v2817
        %v2824 = vunpack.c.l.b16 %v2809
        %v2825 = vunpack.c.l.b16 %v2810
        %v2826 = vunpack.c.l.b16 %v2811
        %v2827 = vunpack.c.l.b16 %v2812
        %v2828 = vpack.c.b16 %v2825, %v2824
        %v2829 = vpack.c.b16 %v2827, %v2826
        %v2833 = vsel %vm580, %v2808, 0
        %2835 = vmatprep.subr.bf16.mxu0 0
        %2836 = vmatpush1.bf16.msra.mxu0 %v2828
        %2837 = vmatprep.subr.bf16.mxu0 0
        %2838 = vmatpush1.bf16.msra.mxu0 %v2829
        %2839 = vmatprep.subr.bf16.mxu0 0
        %2840 = vmatpush1.bf16.msra.mxu0 0
        %2841 = vmatprep.subr.bf16.mxu0 0
        %2842 = vmatpush1.bf16.msra.mxu0 0
        %2843 = vmatprep.subr.bf16.mxu0 0
        %2844 = vmatpush1.bf16.msra.mxu0 0
        %2845 = vmatprep.subr.bf16.mxu0 0
        %2846 = vmatpush1.bf16.msra.mxu0 0
        %2847 = vmatprep.subr.bf16.mxu0 0
        %2848 = vmatpush1.bf16.msra.mxu0 0
        %2849 = vmatprep.subr.bf16.mxu0 0
        %2850 = vmatpush1.bf16.msra.mxu0 0
        %2851 = vmatprep.subr.bf16.mxu0 0
        %2852 = vmatpush1.bf16.msra.mxu0 0
        %2853 = vmatprep.subr.bf16.mxu0 0
        %2854 = vmatpush1.bf16.msra.mxu0 0
        %2855 = vmatprep.subr.bf16.mxu0 0
        %2856 = vmatpush1.bf16.msra.mxu0 0
        %2857 = vmatprep.subr.bf16.mxu0 0
        %2858 = vmatpush1.bf16.msra.mxu0 0
        %2859 = vmatprep.subr.bf16.mxu0 0
        %2860 = vmatpush1.bf16.msra.mxu0 0
        %2861 = vmatprep.subr.bf16.mxu0 0
        %2862 = vmatpush1.bf16.msra.mxu0 0
        %2863 = vmatprep.subr.bf16.mxu0 0
        %2864 = vmatpush1.bf16.msra.mxu0 0
        %2865 = vmatprep.subr.bf16.mxu0 0
        %2866 = vmatpush1.bf16.msra.mxu0 0
        %2867 = vmatprep.mubr.bf16.mxu0 0
        %2868 = vmatmul.mubr.bf16.gmra.mrb[0].mxu0 %v2833
        %v2869 = vpop.f32.mrb[0].mxu0
        %v2870 = vadd.f32 %v2818, %v2869
        %v2871 = vpop.f32.mrb[0].mxu0
        %v2872 = vpop.f32.mrb[0].mxu0
        %v2873 = vadd.f32 %v2818, %v2872
        %v2874 = vpop.f32.mrb[0].mxu0
        %2875 = vdwg.mxu0
        %v2876 = vmax.f32 %v2870, 0.0
        %v2877 = vmax.f32 %v2873, 0.0
        %v2878 = vpack.c.bf16 %v2877, %v2876
        %v2879 = vld [vmem:[%s10] sm:$0xf]
        %v2880 = vld [vmem:[%s10 + $0x4] sm:$0xf]
        %v2881 = vld [vmem:[%s10 + $0x8] sm:$0xf]
        %v2882 = vld [vmem:[%s10 + $0xc] sm:$0xf]
        %v2883 = vld [vmem:[%s10 + $0x10] sm:$0xf]
        %v2884 = vld [vmem:[%s10 + $0x14] sm:$0xf]
        %v2885 = vld [vmem:[%s10 + $0x18] sm:$0xf]
        %v2886 = vld [vmem:[%s10 + $0x1c] sm:$0xf]
        %v2887 = vld [vmem:[%s11] sm:$0x1]
        %v2889 = vlaneseq
        %v2890 = vshrl.u32 %v2889, 7
        %v2891 = vsub.s32 0, %v2890
        %v2892 = vrot.slane %v2887, %v2891
        %v2902 = vunpack.c.l.b16 %v2879
        %v2903 = vunpack.c.l.b16 %v2880
        %v2904 = vunpack.c.l.b16 %v2881
        %v2905 = vunpack.c.l.b16 %v2882
        %v2906 = vunpack.c.l.b16 %v2883
        %v2907 = vunpack.c.l.b16 %v2884
        %v2908 = vunpack.c.l.b16 %v2885
        %v2909 = vunpack.c.l.b16 %v2886
        %v2910 = vpack.c.b16 %v2903, %v2902
        %v2911 = vpack.c.b16 %v2905, %v2904
        %v2912 = vpack.c.b16 %v2907, %v2906
        %v2913 = vpack.c.b16 %v2909, %v2908
        %vm2918 = vcmask 523264
        %v2920 = vsel %vm2918, %v2878, 0
        %2922 = vmatprep.subr.bf16.mxu0 0
        %2923 = vmatpush1.bf16.msra.mxu0 %v2910
        %2924 = vmatprep.subr.bf16.mxu0 0
        %2925 = vmatpush1.bf16.msra.mxu0 %v2911
        %2926 = vmatprep.subr.bf16.mxu0 0
        %2927 = vmatpush1.bf16.msra.mxu0 %v2912
        %2928 = vmatprep.subr.bf16.mxu0 0
        %2929 = vmatpush1.bf16.msra.mxu0 %v2913
        %2930 = vmatprep.subr.bf16.mxu0 0
        %2931 = vmatpush1.bf16.msra.mxu0 0
        %2932 = vmatprep.subr.bf16.mxu0 0
        %2933 = vmatpush1.bf16.msra.mxu0 0
        %2934 = vmatprep.subr.bf16.mxu0 0
        %2935 = vmatpush1.bf16.msra.mxu0 0
        %2936 = vmatprep.subr.bf16.mxu0 0
        %2937 = vmatpush1.bf16.msra.mxu0 0
        %2938 = vmatprep.subr.bf16.mxu0 0
        %2939 = vmatpush1.bf16.msra.mxu0 0
        %2940 = vmatprep.subr.bf16.mxu0 0
        %2941 = vmatpush1.bf16.msra.mxu0 0
        %2942 = vmatprep.subr.bf16.mxu0 0
        %2943 = vmatpush1.bf16.msra.mxu0 0
        %2944 = vmatprep.subr.bf16.mxu0 0
        %2945 = vmatpush1.bf16.msra.mxu0 0
        %2946 = vmatprep.subr.bf16.mxu0 0
        %2947 = vmatpush1.bf16.msra.mxu0 0
        %2948 = vmatprep.subr.bf16.mxu0 0
        %2949 = vmatpush1.bf16.msra.mxu0 0
        %2950 = vmatprep.subr.bf16.mxu0 0
        %2951 = vmatpush1.bf16.msra.mxu0 0
        %2952 = vmatprep.subr.bf16.mxu0 0
        %2953 = vmatpush1.bf16.msra.mxu0 0
        %2954 = vmatprep.mubr.bf16.mxu0 0
        %2955 = vmatmul.mubr.bf16.gmra.mrb[0].mxu0 %v2920
        %v2956 = vpop.f32.mrb[0].mxu0
        %v2957 = vadd.f32 %v2892, %v2956
        %v2958 = vpop.f32.mrb[0].mxu0
        %v2959 = vpop.f32.mrb[0].mxu0
        %v2960 = vadd.f32 %v2892, %v2959
        %v2961 = vpop.f32.mrb[0].mxu0
        %2962 = vdwg.mxu0
        %v2963 = vadd.f32 %v2957, %v2806
        %v2964 = vadd.f32 %v2960, %v2807
        %v2965 = vld [vmem:[%s12] sm:$0x1]
        %v2966 = vld [vmem:[%s13] sm:$0x1]
        %v2967 = vsel %vm580, %v2963, 0.0
        %2968 = vadd.xlane.f32.xlu0 %v2967
        %v2969 = vpop.xlane.xlu0 %2968
        %v2970 = vsel %vm580, %v2964, 0.0
        %2971 = vadd.xlane.f32.xlu0 %v2970
        %v2972 = vpop.xlane.xlu0 %2971
        %v2973 = vmul.f32 %v2969, %v2771
        %v2974 = vmul.f32 %v2972, %v2771
        %v2975 = vsub.f32 %v2963, %v2973
        %v2976 = vsub.f32 %v2964, %v2974
        %v2977 = vmul.f32 %v2975, %v2975
        %v2978 = vmul.f32 %v2976, %v2976
        %v2979 = vsel %vm580, %v2977, 0.0
        %2980 = vadd.xlane.f32.xlu0 %v2979
        %v2981 = vpop.xlane.xlu0 %2980
        %v2982 = vsel %vm580, %v2978, 0.0
        %2983 = vadd.xlane.f32.xlu0 %v2982
        %v2984 = vpop.xlane.xlu0 %2983
        %v2985 = vmul.f32 %v2981, %v2771
        %v2986 = vmul.f32 %v2984, %v2771
        %v2987 = vadd.f32 %v2985, 1e-12
        %v2988 = vadd.f32 %v2986, 1e-12
        %v2989 = vrsqrt.pop %v2987
        %v2990 = vrsqrt.pop %v2988
        %v2991 = vmul.f32 %v2975, %v2989
        %v2992 = vmul.f32 %v2976, %v2990
        %v2994 = vlaneseq
        %v2995 = vshrl.u32 %v2994, 7
        %v2996 = vsub.s32 0, %v2995
        %v2997 = vrot.slane %v2965, %v2996
        %v2999 = vmul.f32 %v2997, %v2991
        %v3000 = vmul.f32 %v2997, %v2992
        %v3002 = vlaneseq
        %v3003 = vshrl.u32 %v3002, 7
        %v3004 = vsub.s32 0, %v3003
        %v3005 = vrot.slane %v2966, %v3004
        %v3007 = vadd.f32 %v2999, %v3005
        %v3008 = vadd.f32 %v3000, %v3005
        %3009 = vst.msk [vmem:[%s540] sm:$0xff] %vm580, %v3007
        %3010 = vst.msk [vmem:[%s540 + $0x8] sm:$0xff] %vm580, %v3008
        %s3011 = sand.u32 %s343, 1
        %s3012 = scalar_lea.sflag [#allocation5], %s3011
        %s3013 = sand.u32 %s343, 1
        %s3014 = smul.addr %s3013, 16
        %s3015 = scalar_lea.vmem [#allocation12], %s3014
        // Predicated region
        $region97: #{tpu_custom_call.1} parent=75 // pred_check
          %p3016 = pneg %p353
        $region98: #{tpu_custom_call.1} parent=75 // pred_check_branch
          %3018 = sbr.rel (%p3016) target = $region100
        $region99: #{tpu_custom_call.1} parent=75 // pred_region
          %s3019 = smul.u32 2, %s31
          %s3021 = ssub.s32 256, 256
          %3022 = vsyncadd %s3012, %s3021
          %s3023 = smul.addr %s3019, 128
          %s3024 = scalar_lea.hbm %s14, %s3023
          %s3025 = sshll.u32 %s3015, 4
          %s3026 = int_to_ptr.vmem [resolvable:$true] %s3025
          %3031 = dma.vmem_to_hbm [thread:$0]  %s3026, 256, %s3024, %s3012, 128, 128, 8
        $region100: #{tpu_custom_call.1} parent=75 // pred_fallthru
          _
      $region76: #{tpu_custom_call.1} parent=5 // pred_fallthru
        _
      %p3032 = scmp.le.s32.totalorder 2, %s26
      // Predicated region
      $region101: #{tpu_custom_call.1} parent=5 // pred_check
        %p3033 = pneg %p3032
      $region102: #{tpu_custom_call.1} parent=5 // pred_check_branch
        %3035 = sbr.rel (%p3033) target = $region104
      $region103: #{tpu_custom_call.1} parent=5 // pred_region
        %s3036 = ssub.s32 %s26, 2
        // Predicated region
        $region105: #{tpu_custom_call.1} parent=103 // pred_check
          %p3037 = pneg %p359
        $region106: #{tpu_custom_call.1} parent=103 // pred_check_branch
          %3039 = sbr.rel (%p3037) target = $region108
        $region107: #{tpu_custom_call.1} parent=103 // pred_region
          %s3040 = sand.u32 %s344, 1
          %s3041 = scalar_lea.sflag [#allocation5], %s3040
          %s3042 = sand.u32 %s344, 1
          %s3043 = smul.addr %s3042, 16
          %s3044 = scalar_lea.vmem [#allocation12], %s3043
          %3045 = dma.done %s3041, 256
        $region108: #{tpu_custom_call.1} parent=103 // pred_fallthru
          _
      $region104: #{tpu_custom_call.1} parent=5 // pred_fallthru
        _
    $region6: #{tpu_custom_call.1} parent=1 // loop_footer
      %s30 = sadd.s32 1, %s26
    $region7: #{tpu_custom_call.1} parent=1 // loop_footer_branch
      %25 = sbr.rel target = $region3
    $region8: #{tpu_custom_call.1} parent=1 // loop_exit
      _
    %3046 = vsyncpa [#allocation4], 1
    %s3047 = scalar_lea.sflag [#allocation4], 1
    %3048 = vsyncpa %s3047, 1
    %3049 = vsyncpa [#allocation7], 1
    %3050 = vsyncpa [#allocation10], 1
    %3051 = vsyncpa [#allocation5], 1
    %s3052 = scalar_lea.sflag [#allocation5], 1
    %3053 = vsyncpa %s3052, 1

</llo_original>
